<compile_context>
chip_gen: v7x
topology: tpu7x:2x2x1
jax: 0.10.0
libtpu: 0.0.40
codegen_flags: <defaults>
</compile_context>

<pallas_src>
import math

import jax
import jax.numpy as jnp
import numpy as np
from jax import lax
from jax.experimental import pallas as pl
from jax.experimental.pallas import tpu as pltpu

# Small, module-consistent shapes.
B, L, D, H, DFF, NLAYERS, VOCAB = 2, 8, 32, 4, 64, 2, 50
DK = D // H
BL = B * L
EPS = 1e-6
_SCALE = 1.0 / math.sqrt(DK)

assert H * DK == D, "head_dim * num_heads must equal d_model (ctx reassembly relies on it)"


# ---------------------------------------------------------------------------
# In-kernel helpers
# ---------------------------------------------------------------------------
def _layer_norm(x, g, b):
    # Annotated-Transformer LayerNorm: a_2 * (x - mean) / (std + eps) + b_2,
    # with torch's default *unbiased* std (ddof=1).  Divide goes to the EUP.
    mean = jnp.mean(x, axis=-1, keepdims=True)
    d = x - mean
    var = jnp.sum(d * d, axis=-1, keepdims=True) * (1.0 / (x.shape[-1] - 1))
    std = jnp.sqrt(var)
    return g * d * pl.reciprocal(std + EPS, approx=True) + b


# ---------------------------------------------------------------------------
# Single fused encoder kernel (one invocation, everything VMEM-resident)
# ---------------------------------------------------------------------------
def _encoder_kernel(x_ref, bias_ref, wqkv_ref, bqkv_ref, wo_ref, bo_ref,
                    w1_ref, b1_ref, w2_ref, b2_ref,
                    ln1g_ref, ln1b_ref, ln2g_ref, ln2b_ref,
                    ng_ref, nb_ref,
                    y_ref, att_ref):
    x = x_ref[...]                                   # (B*L, D), stays in registers/VMEM
    neg = bias_ref[...]                              # (B*L, B*L) block-diag additive bias

    for li in range(NLAYERS):                        # static unroll over layers
        # ---------- pre-norm multi-head self-attention sublayer ----------
        h = _layer_norm(x, ln1g_ref[li], ln1b_ref[li])
        # Fused Q|K|V projection: one (B*L, D) x (D, 3D) matmul + one bias add.
        qkv = jnp.dot(h, wqkv_ref[li],
                      preferred_element_type=jnp.float32) + bqkv_ref[li]

        ctx_heads = []
        for hd in range(H):                          # static unroll over heads only
            q = qkv[:, hd * DK:(hd + 1) * DK]                      # (BL, DK)
            k = qkv[:, D + hd * DK:D + (hd + 1) * DK]              # (BL, DK)
            v = qkv[:, 2 * D + hd * DK:2 * D + (hd + 1) * DK]      # (BL, DK)
            # Single score matmul for ALL batch rows of this head; the block-diagonal
            # bias (-1e30 on cross-batch pairs) keeps the softmax per batch element.
            s = lax.dot_general(q, k, (((1,), (1,)), ((), ())),
                                preferred_element_type=jnp.float32) * _SCALE + neg
            # TODO(synk): external mask path (masked_fill with -1e9) not implemented.
            s = s - jnp.max(s, axis=-1, keepdims=True)
            p = jnp.exp(s)                                          # cross-batch -> 0.0
            p = p * pl.reciprocal(jnp.sum(p, axis=-1, keepdims=True), approx=True)
            if li == NLAYERS - 1:                    # only the last layer's att survives
                att_ref[hd] = p                      # (BL, BL) block-diag slab
            ctx_heads.append(jnp.dot(p, v, preferred_element_type=jnp.float32))

        ctx = jnp.concatenate(ctx_heads, axis=-1)    # (BL, D), in-register (no scratch)
        o = jnp.dot(ctx, wo_ref[li],
                    preferred_element_type=jnp.float32) + bo_ref[li]
        x = x + o                                    # residual (dropout == identity)

        # ---------- pre-norm position-wise feed-forward sublayer ----------
        h2 = _layer_norm(x, ln2g_ref[li], ln2b_ref[li])
        z = jnp.dot(h2, w1_ref[li], preferred_element_type=jnp.float32) + b1_ref[li]
        z = jnp.maximum(z, 0.0)                      # ReLU
        z = jnp.dot(z, w2_ref[li], preferred_element_type=jnp.float32) + b2_ref[li]
        x = x + z                                    # residual

    # ---------- final LayerNorm fused as epilogue ----------
    y_ref[...] = _layer_norm(x, ng_ref[...], nb_ref[...])


# ---------------------------------------------------------------------------
# pallas_call wrapper (grid-less single launch, VMEM memory-space specs)
# ---------------------------------------------------------------------------
@jax.jit
def encoder_fused(x2d, wqkv, bqkv, wo, bo, w1, b1, w2, b2,
                  ln1g, ln1b, ln2g, ln2b, ng, nb):
    # Block-diagonal additive bias for batching all B*L rows in one score matmul.
    bidx = jnp.repeat(jnp.arange(B, dtype=jnp.int32), L)            # (BL,)
    attn_bias = jnp.where(bidx[:, None] == bidx[None, :],
                          0.0, -1e30).astype(jnp.float32)           # (BL, BL)

    args = (x2d, attn_bias, wqkv, bqkv, wo, bo, w1, b1, w2, b2,
            ln1g, ln1b, ln2g, ln2b, ng, nb)
    vmem = lambda: pl.BlockSpec(memory_space=pltpu.MemorySpace.VMEM)
    return pl.pallas_call(
        _encoder_kernel,
        in_specs=[vmem() for _ in args],
        out_specs=[vmem(), vmem()],
        out_shape=[jax.ShapeDtypeStruct((BL, D), jnp.float32),
                   jax.ShapeDtypeStruct((H, BL, BL), jnp.float32)],
    )(*args)


# ---------------------------------------------------------------------------
# Parameters & glue (embedding lookup, positional encoding stay in plain JAX)
# ---------------------------------------------------------------------------
def _sinusoidal_pe(max_len, d_model):
    pos = np.arange(max_len)[:, None].astype(np.float32)
    div = np.exp(np.arange(0, d_model, 2).astype(np.float32)
                 * -(math.log(10000.0) / d_model))
    pe = np.zeros((max_len, d_model), dtype=np.float32)
    pe[:, 0::2] = np.sin(pos * div)
    pe[:, 1::2] = np.cos(pos * div)
    return jnp.asarray(pe)


def init_params(key):
    def nrm(k, shape, scale=0.02):
        return scale * jax.random.normal(k, shape, dtype=jnp.float32)

    keys = jax.random.split(key, 1 + NLAYERS)
    emb = nrm(keys[0], (VOCAB, D), scale=1.0)

    wqkv, bqkv, wo, bo, w1, b1, w2, b2 = [], [], [], [], [], [], [], []
    for li in range(NLAYERS):
        ks = jax.random.split(keys[1 + li], 6)
        wq, wk, wv = nrm(ks[0], (D, D)), nrm(ks[1], (D, D)), nrm(ks[2], (D, D))
        wqkv.append(jnp.concatenate([wq, wk, wv], axis=-1))      # fused (D, 3D)
        bqkv.append(jnp.zeros((1, 3 * D), jnp.float32))
        wo.append(nrm(ks[3], (D, D)));   bo.append(jnp.zeros((1, D), jnp.float32))
        w1.append(nrm(ks[4], (D, DFF))); b1.append(jnp.zeros((1, DFF), jnp.float32))
        w2.append(nrm(ks[5], (DFF, D))); b2.append(jnp.zeros((1, D), jnp.float32))

    stack = lambda xs: jnp.stack(xs, axis=0)
    ones = jnp.ones((NLAYERS, 1, D), jnp.float32)
    zeros = jnp.zeros((NLAYERS, 1, D), jnp.float32)
    return dict(
        emb=emb, pe=_sinusoidal_pe(64, D),
        wqkv=stack(wqkv), bqkv=stack(bqkv), wo=stack(wo), bo=stack(bo),
        w1=stack(w1), b1=stack(b1), w2=stack(w2), b2=stack(b2),
        ln1_g=ones, ln1_b=zeros, ln2_g=ones, ln2_b=zeros,
        norm_g=jnp.ones((1, D), jnp.float32), norm_b=jnp.zeros((1, D), jnp.float32))


def self_att_encoder(token_ids, params, mask=None):
    """Mirrors SelfAttEncoder.forward: returns (norm(x), att_of_last_layer)."""
    # src_emb: embedding * sqrt(d_model) + positional encoding  (glue, gather)
    x = params["emb"][token_ids] * math.sqrt(D) + params["pe"][None, :token_ids.shape[1], :]
    x2d = x.reshape(-1, D).astype(jnp.float32)                    # (B*L, D)

    y2d, att_full = encoder_fused(
        x2d,
        params["wqkv"], params["bqkv"], params["wo"], params["bo"],
        params["w1"], params["b1"], params["w2"], params["b2"],
        params["ln1_g"], params["ln1_b"], params["ln2_g"], params["ln2_b"],
        params["norm_g"], params["norm_b"])

    y = y2d.reshape(B, L, D)
    # att_full[h, b*L+i, b*L+j] holds att[b, h, i, j]; take the diagonal blocks.
    att = jnp.stack([att_full[:, b * L:(b + 1) * L, b * L:(b + 1) * L]
                     for b in range(B)], axis=0)                  # (B, H, L, L)
    return y, att


# ---------------------------------------------------------------------------
if __name__ == "__main__":
    key = jax.random.PRNGKey(0)
    k_param, k_ids = jax.random.split(key)
    params = init_params(k_param)
    token_ids = jax.random.randint(k_ids, (B, L), 0, VOCAB, dtype=jnp.int32)

    out, att = self_att_encoder(token_ids, params, mask=None)
    jax.block_until_ready((out, att))
    assert out.shape == (B, L, D) and att.shape == (B, H, L, L)
    print("KERNEL_OK")
</pallas_src>

<mosaic_0001>
module attributes {stable_mosaic.version = 11 : i64} {
  func.func @_encoder_kernel(%arg0: memref<16x32xf32, #tpu.memory_space<vmem>>, %arg1: memref<16x16xf32, #tpu.memory_space<vmem>>, %arg2: memref<2x32x96xf32, #tpu.memory_space<vmem>>, %arg3: memref<2x1x96xf32, #tpu.memory_space<vmem>>, %arg4: memref<2x32x32xf32, #tpu.memory_space<vmem>>, %arg5: memref<2x1x32xf32, #tpu.memory_space<vmem>>, %arg6: memref<2x32x64xf32, #tpu.memory_space<vmem>>, %arg7: memref<2x1x64xf32, #tpu.memory_space<vmem>>, %arg8: memref<2x64x32xf32, #tpu.memory_space<vmem>>, %arg9: memref<2x1x32xf32, #tpu.memory_space<vmem>>, %arg10: memref<2x1x32xf32, #tpu.memory_space<vmem>>, %arg11: memref<2x1x32xf32, #tpu.memory_space<vmem>>, %arg12: memref<2x1x32xf32, #tpu.memory_space<vmem>>, %arg13: memref<2x1x32xf32, #tpu.memory_space<vmem>>, %arg14: memref<1x32xf32, #tpu.memory_space<vmem>>, %arg15: memref<1x32xf32, #tpu.memory_space<vmem>>, %arg16: memref<16x32xf32, #tpu.memory_space<vmem>>, %arg17: memref<4x16x16xf32, #tpu.memory_space<vmem>>) attributes {dimension_semantics = [], scalar_prefetch = 0 : i64, scratch_operands = 0 : i64, tpu.core_type = #tpu.core_type<tc>} {
    %c0 = arith.constant 0 : index
    %c0_0 = arith.constant 0 : index
    %0 = vector.load %arg0[%c0, %c0_0] : memref<16x32xf32, #tpu.memory_space<vmem>>, vector<16x32xf32>
    %c0_1 = arith.constant 0 : index
    %c0_2 = arith.constant 0 : index
    %1 = vector.load %arg1[%c0_1, %c0_2] : memref<16x16xf32, #tpu.memory_space<vmem>>, vector<16x16xf32>
    %c0_3 = arith.constant 0 : index
    %c0_4 = arith.constant 0 : index
    %c0_5 = arith.constant 0 : index
    %2 = vector.load %arg10[%c0_3, %c0_4, %c0_5] : memref<2x1x32xf32, #tpu.memory_space<vmem>>, vector<1x1x32xf32>
    %3 = vector.shape_cast %2 : vector<1x1x32xf32> to vector<1x32xf32>
    %c0_6 = arith.constant 0 : index
    %c0_7 = arith.constant 0 : index
    %c0_8 = arith.constant 0 : index
    %4 = vector.load %arg11[%c0_6, %c0_7, %c0_8] : memref<2x1x32xf32, #tpu.memory_space<vmem>>, vector<1x1x32xf32>
    %5 = vector.shape_cast %4 : vector<1x1x32xf32> to vector<1x32xf32>
    %cst = arith.constant dense<0.000000e+00> : vector<16xf32>
    %6 = vector.multi_reduction <add>, %0, %cst [1] : vector<16x32xf32> to vector<16xf32>
    %7 = vector.shape_cast %6 : vector<16xf32> to vector<16x1xf32>
    %cst_9 = arith.constant 3.200000e+01 : f32
    %8 = vector.broadcast %cst_9 : f32 to vector<16x1xf32>
    %9 = arith.divf %7, %8 : vector<16x1xf32>
    %10 = vector.broadcast %9 : vector<16x1xf32> to vector<16x32xf32>
    %11 = arith.subf %0, %10 : vector<16x32xf32>
    %12 = arith.mulf %11, %11 : vector<16x32xf32>
    %cst_10 = arith.constant dense<0.000000e+00> : vector<16xf32>
    %13 = vector.multi_reduction <add>, %12, %cst_10 [1] : vector<16x32xf32> to vector<16xf32>
    %14 = vector.shape_cast %13 : vector<16xf32> to vector<16x1xf32>
    %cst_11 = arith.constant 0.0322580636 : f32
    %15 = vector.broadcast %cst_11 : f32 to vector<16x1xf32>
    %16 = arith.mulf %14, %15 : vector<16x1xf32>
    %17 = math.sqrt %16 : vector<16x1xf32>
    %18 = vector.broadcast %3 : vector<1x32xf32> to vector<16x32xf32>
    %19 = arith.mulf %18, %11 : vector<16x32xf32>
    %cst_12 = arith.constant 9.99999997E-7 : f32
    %20 = vector.broadcast %cst_12 : f32 to vector<16x1xf32>
    %21 = arith.addf %17, %20 : vector<16x1xf32>
    %22 = tpu.reciprocal %21 {approx = true} : vector<16x1xf32> -> vector<16x1xf32>
    %23 = vector.broadcast %22 : vector<16x1xf32> to vector<16x32xf32>
    %24 = arith.mulf %19, %23 : vector<16x32xf32>
    %25 = vector.broadcast %5 : vector<1x32xf32> to vector<16x32xf32>
    %26 = arith.addf %24, %25 : vector<16x32xf32>
    %c0_13 = arith.constant 0 : index
    %c0_14 = arith.constant 0 : index
    %c0_15 = arith.constant 0 : index
    %27 = vector.load %arg2[%c0_13, %c0_14, %c0_15] : memref<2x32x96xf32, #tpu.memory_space<vmem>>, vector<1x32x96xf32>
    %28 = vector.shape_cast %27 : vector<1x32x96xf32> to vector<32x96xf32>
    %cst_16 = arith.constant dense<0.000000e+00> : vector<16x96xf32>
    %29 = tpu.matmul %26, %28, %cst_16 {dimension_numbers = #tpu.dot_dimension_numbers<[1], [0], [0], [1], [0, 0, 1, 1], [], []>} : vector<16x32xf32>, vector<32x96xf32>, vector<16x96xf32> -> vector<16x96xf32>
    %c0_17 = arith.constant 0 : index
    %c0_18 = arith.constant 0 : index
    %c0_19 = arith.constant 0 : index
    %30 = vector.load %arg3[%c0_17, %c0_18, %c0_19] : memref<2x1x96xf32, #tpu.memory_space<vmem>>, vector<1x1x96xf32>
    %31 = vector.shape_cast %30 : vector<1x1x96xf32> to vector<1x96xf32>
    %32 = vector.broadcast %31 : vector<1x96xf32> to vector<16x96xf32>
    %33 = arith.addf %29, %32 : vector<16x96xf32>
    %34 = vector.extract_strided_slice %33 {offsets = [0, 0], sizes = [16, 8], strides = [1, 1]} : vector<16x96xf32> to vector<16x8xf32>
    %35 = vector.extract_strided_slice %33 {offsets = [0, 32], sizes = [16, 8], strides = [1, 1]} : vector<16x96xf32> to vector<16x8xf32>
    %36 = vector.extract_strided_slice %33 {offsets = [0, 64], sizes = [16, 8], strides = [1, 1]} : vector<16x96xf32> to vector<16x8xf32>
    %cst_20 = arith.constant dense<0.000000e+00> : vector<16x16xf32>
    %37 = tpu.matmul %34, %35, %cst_20 {dimension_numbers = #tpu.dot_dimension_numbers<[1], [1], [0], [0], [0, 0, 1, 0], [], []>} : vector<16x8xf32>, vector<16x8xf32>, vector<16x16xf32> -> vector<16x16xf32>
    %cst_21 = arith.constant 0.353553385 : f32
    %38 = vector.broadcast %cst_21 : f32 to vector<16x16xf32>
    %39 = arith.mulf %37, %38 : vector<16x16xf32>
    %40 = arith.addf %39, %1 : vector<16x16xf32>
    %cst_22 = arith.constant dense<0xFF800000> : vector<16xf32>
    %41 = vector.multi_reduction <maximumf>, %40, %cst_22 [1] : vector<16x16xf32> to vector<16xf32>
    %42 = vector.shape_cast %41 : vector<16xf32> to vector<16x1xf32>
    %43 = vector.broadcast %42 : vector<16x1xf32> to vector<16x16xf32>
    %44 = arith.subf %40, %43 : vector<16x16xf32>
    %45 = math.exp %44 : vector<16x16xf32>
    %cst_23 = arith.constant dense<0.000000e+00> : vector<16xf32>
    %46 = vector.multi_reduction <add>, %45, %cst_23 [1] : vector<16x16xf32> to vector<16xf32>
    %47 = vector.shape_cast %46 : vector<16xf32> to vector<16x1xf32>
    %48 = tpu.reciprocal %47 {approx = true} : vector<16x1xf32> -> vector<16x1xf32>
    %49 = vector.broadcast %48 : vector<16x1xf32> to vector<16x16xf32>
    %50 = arith.mulf %45, %49 : vector<16x16xf32>
    %cst_24 = arith.constant dense<0.000000e+00> : vector<16x8xf32>
    %51 = tpu.matmul %50, %36, %cst_24 {dimension_numbers = #tpu.dot_dimension_numbers<[1], [0], [0], [1], [0, 0, 1, 1], [], []>} : vector<16x16xf32>, vector<16x8xf32>, vector<16x8xf32> -> vector<16x8xf32>
    %52 = vector.extract_strided_slice %33 {offsets = [0, 8], sizes = [16, 8], strides = [1, 1]} : vector<16x96xf32> to vector<16x8xf32>
    %53 = vector.extract_strided_slice %33 {offsets = [0, 40], sizes = [16, 8], strides = [1, 1]} : vector<16x96xf32> to vector<16x8xf32>
    %54 = vector.extract_strided_slice %33 {offsets = [0, 72], sizes = [16, 8], strides = [1, 1]} : vector<16x96xf32> to vector<16x8xf32>
    %cst_25 = arith.constant dense<0.000000e+00> : vector<16x16xf32>
    %55 = tpu.matmul %52, %53, %cst_25 {dimension_numbers = #tpu.dot_dimension_numbers<[1], [1], [0], [0], [0, 0, 1, 0], [], []>} : vector<16x8xf32>, vector<16x8xf32>, vector<16x16xf32> -> vector<16x16xf32>
    %cst_26 = arith.constant 0.353553385 : f32
    %56 = vector.broadcast %cst_26 : f32 to vector<16x16xf32>
    %57 = arith.mulf %55, %56 : vector<16x16xf32>
    %58 = arith.addf %57, %1 : vector<16x16xf32>
    %cst_27 = arith.constant dense<0xFF800000> : vector<16xf32>
    %59 = vector.multi_reduction <maximumf>, %58, %cst_27 [1] : vector<16x16xf32> to vector<16xf32>
    %60 = vector.shape_cast %59 : vector<16xf32> to vector<16x1xf32>
    %61 = vector.broadcast %60 : vector<16x1xf32> to vector<16x16xf32>
    %62 = arith.subf %58, %61 : vector<16x16xf32>
    %63 = math.exp %62 : vector<16x16xf32>
    %cst_28 = arith.constant dense<0.000000e+00> : vector<16xf32>
    %64 = vector.multi_reduction <add>, %63, %cst_28 [1] : vector<16x16xf32> to vector<16xf32>
    %65 = vector.shape_cast %64 : vector<16xf32> to vector<16x1xf32>
    %66 = tpu.reciprocal %65 {approx = true} : vector<16x1xf32> -> vector<16x1xf32>
    %67 = vector.broadcast %66 : vector<16x1xf32> to vector<16x16xf32>
    %68 = arith.mulf %63, %67 : vector<16x16xf32>
    %cst_29 = arith.constant dense<0.000000e+00> : vector<16x8xf32>
    %69 = tpu.matmul %68, %54, %cst_29 {dimension_numbers = #tpu.dot_dimension_numbers<[1], [0], [0], [1], [0, 0, 1, 1], [], []>} : vector<16x16xf32>, vector<16x8xf32>, vector<16x8xf32> -> vector<16x8xf32>
    %70 = vector.extract_strided_slice %33 {offsets = [0, 16], sizes = [16, 8], strides = [1, 1]} : vector<16x96xf32> to vector<16x8xf32>
    %71 = vector.extract_strided_slice %33 {offsets = [0, 48], sizes = [16, 8], strides = [1, 1]} : vector<16x96xf32> to vector<16x8xf32>
    %72 = vector.extract_strided_slice %33 {offsets = [0, 80], sizes = [16, 8], strides = [1, 1]} : vector<16x96xf32> to vector<16x8xf32>
    %cst_30 = arith.constant dense<0.000000e+00> : vector<16x16xf32>
    %73 = tpu.matmul %70, %71, %cst_30 {dimension_numbers = #tpu.dot_dimension_numbers<[1], [1], [0], [0], [0, 0, 1, 0], [], []>} : vector<16x8xf32>, vector<16x8xf32>, vector<16x16xf32> -> vector<16x16xf32>
    %cst_31 = arith.constant 0.353553385 : f32
    %74 = vector.broadcast %cst_31 : f32 to vector<16x16xf32>
    %75 = arith.mulf %73, %74 : vector<16x16xf32>
    %76 = arith.addf %75, %1 : vector<16x16xf32>
    %cst_32 = arith.constant dense<0xFF800000> : vector<16xf32>
    %77 = vector.multi_reduction <maximumf>, %76, %cst_32 [1] : vector<16x16xf32> to vector<16xf32>
    %78 = vector.shape_cast %77 : vector<16xf32> to vector<16x1xf32>
    %79 = vector.broadcast %78 : vector<16x1xf32> to vector<16x16xf32>
    %80 = arith.subf %76, %79 : vector<16x16xf32>
    %81 = math.exp %80 : vector<16x16xf32>
    %cst_33 = arith.constant dense<0.000000e+00> : vector<16xf32>
    %82 = vector.multi_reduction <add>, %81, %cst_33 [1] : vector<16x16xf32> to vector<16xf32>
    %83 = vector.shape_cast %82 : vector<16xf32> to vector<16x1xf32>
    %84 = tpu.reciprocal %83 {approx = true} : vector<16x1xf32> -> vector<16x1xf32>
    %85 = vector.broadcast %84 : vector<16x1xf32> to vector<16x16xf32>
    %86 = arith.mulf %81, %85 : vector<16x16xf32>
    %cst_34 = arith.constant dense<0.000000e+00> : vector<16x8xf32>
    %87 = tpu.matmul %86, %72, %cst_34 {dimension_numbers = #tpu.dot_dimension_numbers<[1], [0], [0], [1], [0, 0, 1, 1], [], []>} : vector<16x16xf32>, vector<16x8xf32>, vector<16x8xf32> -> vector<16x8xf32>
    %88 = vector.extract_strided_slice %33 {offsets = [0, 24], sizes = [16, 8], strides = [1, 1]} : vector<16x96xf32> to vector<16x8xf32>
    %89 = vector.extract_strided_slice %33 {offsets = [0, 56], sizes = [16, 8], strides = [1, 1]} : vector<16x96xf32> to vector<16x8xf32>
    %90 = vector.extract_strided_slice %33 {offsets = [0, 88], sizes = [16, 8], strides = [1, 1]} : vector<16x96xf32> to vector<16x8xf32>
    %cst_35 = arith.constant dense<0.000000e+00> : vector<16x16xf32>
    %91 = tpu.matmul %88, %89, %cst_35 {dimension_numbers = #tpu.dot_dimension_numbers<[1], [1], [0], [0], [0, 0, 1, 0], [], []>} : vector<16x8xf32>, vector<16x8xf32>, vector<16x16xf32> -> vector<16x16xf32>
    %cst_36 = arith.constant 0.353553385 : f32
    %92 = vector.broadcast %cst_36 : f32 to vector<16x16xf32>
    %93 = arith.mulf %91, %92 : vector<16x16xf32>
    %94 = arith.addf %93, %1 : vector<16x16xf32>
    %cst_37 = arith.constant dense<0xFF800000> : vector<16xf32>
    %95 = vector.multi_reduction <maximumf>, %94, %cst_37 [1] : vector<16x16xf32> to vector<16xf32>
    %96 = vector.shape_cast %95 : vector<16xf32> to vector<16x1xf32>
    %97 = vector.broadcast %96 : vector<16x1xf32> to vector<16x16xf32>
    %98 = arith.subf %94, %97 : vector<16x16xf32>
    %99 = math.exp %98 : vector<16x16xf32>
    %cst_38 = arith.constant dense<0.000000e+00> : vector<16xf32>
    %100 = vector.multi_reduction <add>, %99, %cst_38 [1] : vector<16x16xf32> to vector<16xf32>
    %101 = vector.shape_cast %100 : vector<16xf32> to vector<16x1xf32>
    %102 = tpu.reciprocal %101 {approx = true} : vector<16x1xf32> -> vector<16x1xf32>
    %103 = vector.broadcast %102 : vector<16x1xf32> to vector<16x16xf32>
    %104 = arith.mulf %99, %103 : vector<16x16xf32>
    %cst_39 = arith.constant dense<0.000000e+00> : vector<16x8xf32>
    %105 = tpu.matmul %104, %90, %cst_39 {dimension_numbers = #tpu.dot_dimension_numbers<[1], [0], [0], [1], [0, 0, 1, 1], [], []>} : vector<16x16xf32>, vector<16x8xf32>, vector<16x8xf32> -> vector<16x8xf32>
    %106 = tpu.concatenate %51, %69, %87, %105 in 1 : vector<16x8xf32>, vector<16x8xf32>, vector<16x8xf32>, vector<16x8xf32> -> vector<16x32xf32>
    %c0_40 = arith.constant 0 : index
    %c0_41 = arith.constant 0 : index
    %c0_42 = arith.constant 0 : index
    %107 = vector.load %arg4[%c0_40, %c0_41, %c0_42] : memref<2x32x32xf32, #tpu.memory_space<vmem>>, vector<1x32x32xf32>
    %108 = vector.shape_cast %107 : vector<1x32x32xf32> to vector<32x32xf32>
    %cst_43 = arith.constant dense<0.000000e+00> : vector<16x32xf32>
    %109 = tpu.matmul %106, %108, %cst_43 {dimension_numbers = #tpu.dot_dimension_numbers<[1], [0], [0], [1], [0, 0, 1, 1], [], []>} : vector<16x32xf32>, vector<32x32xf32>, vector<16x32xf32> -> vector<16x32xf32>
    %c0_44 = arith.constant 0 : index
    %c0_45 = arith.constant 0 : index
    %c0_46 = arith.constant 0 : index
    %110 = vector.load %arg5[%c0_44, %c0_45, %c0_46] : memref<2x1x32xf32, #tpu.memory_space<vmem>>, vector<1x1x32xf32>
    %111 = vector.shape_cast %110 : vector<1x1x32xf32> to vector<1x32xf32>
    %112 = vector.broadcast %111 : vector<1x32xf32> to vector<16x32xf32>
    %113 = arith.addf %109, %112 : vector<16x32xf32>
    %114 = arith.addf %0, %113 : vector<16x32xf32>
    %c0_47 = arith.constant 0 : index
    %c0_48 = arith.constant 0 : index
    %c0_49 = arith.constant 0 : index
    %115 = vector.load %arg12[%c0_47, %c0_48, %c0_49] : memref<2x1x32xf32, #tpu.memory_space<vmem>>, vector<1x1x32xf32>
    %116 = vector.shape_cast %115 : vector<1x1x32xf32> to vector<1x32xf32>
    %c0_50 = arith.constant 0 : index
    %c0_51 = arith.constant 0 : index
    %c0_52 = arith.constant 0 : index
    %117 = vector.load %arg13[%c0_50, %c0_51, %c0_52] : memref<2x1x32xf32, #tpu.memory_space<vmem>>, vector<1x1x32xf32>
    %118 = vector.shape_cast %117 : vector<1x1x32xf32> to vector<1x32xf32>
    %cst_53 = arith.constant dense<0.000000e+00> : vector<16xf32>
    %119 = vector.multi_reduction <add>, %114, %cst_53 [1] : vector<16x32xf32> to vector<16xf32>
    %120 = vector.shape_cast %119 : vector<16xf32> to vector<16x1xf32>
    %cst_54 = arith.constant 3.200000e+01 : f32
    %121 = vector.broadcast %cst_54 : f32 to vector<16x1xf32>
    %122 = arith.divf %120, %121 : vector<16x1xf32>
    %123 = vector.broadcast %122 : vector<16x1xf32> to vector<16x32xf32>
    %124 = arith.subf %114, %123 : vector<16x32xf32>
    %125 = arith.mulf %124, %124 : vector<16x32xf32>
    %cst_55 = arith.constant dense<0.000000e+00> : vector<16xf32>
    %126 = vector.multi_reduction <add>, %125, %cst_55 [1] : vector<16x32xf32> to vector<16xf32>
    %127 = vector.shape_cast %126 : vector<16xf32> to vector<16x1xf32>
    %cst_56 = arith.constant 0.0322580636 : f32
    %128 = vector.broadcast %cst_56 : f32 to vector<16x1xf32>
    %129 = arith.mulf %127, %128 : vector<16x1xf32>
    %130 = math.sqrt %129 : vector<16x1xf32>
    %131 = vector.broadcast %116 : vector<1x32xf32> to vector<16x32xf32>
    %132 = arith.mulf %131, %124 : vector<16x32xf32>
    %cst_57 = arith.constant 9.99999997E-7 : f32
    %133 = vector.broadcast %cst_57 : f32 to vector<16x1xf32>
    %134 = arith.addf %130, %133 : vector<16x1xf32>
    %135 = tpu.reciprocal %134 {approx = true} : vector<16x1xf32> -> vector<16x1xf32>
    %136 = vector.broadcast %135 : vector<16x1xf32> to vector<16x32xf32>
    %137 = arith.mulf %132, %136 : vector<16x32xf32>
    %138 = vector.broadcast %118 : vector<1x32xf32> to vector<16x32xf32>
    %139 = arith.addf %137, %138 : vector<16x32xf32>
    %c0_58 = arith.constant 0 : index
    %c0_59 = arith.constant 0 : index
    %c0_60 = arith.constant 0 : index
    %140 = vector.load %arg6[%c0_58, %c0_59, %c0_60] : memref<2x32x64xf32, #tpu.memory_space<vmem>>, vector<1x32x64xf32>
    %141 = vector.shape_cast %140 : vector<1x32x64xf32> to vector<32x64xf32>
    %cst_61 = arith.constant dense<0.000000e+00> : vector<16x64xf32>
    %142 = tpu.matmul %139, %141, %cst_61 {dimension_numbers = #tpu.dot_dimension_numbers<[1], [0], [0], [1], [0, 0, 1, 1], [], []>} : vector<16x32xf32>, vector<32x64xf32>, vector<16x64xf32> -> vector<16x64xf32>
    %c0_62 = arith.constant 0 : index
    %c0_63 = arith.constant 0 : index
    %c0_64 = arith.constant 0 : index
    %143 = vector.load %arg7[%c0_62, %c0_63, %c0_64] : memref<2x1x64xf32, #tpu.memory_space<vmem>>, vector<1x1x64xf32>
    %144 = vector.shape_cast %143 : vector<1x1x64xf32> to vector<1x64xf32>
    %145 = vector.broadcast %144 : vector<1x64xf32> to vector<16x64xf32>
    %146 = arith.addf %142, %145 : vector<16x64xf32>
    %cst_65 = arith.constant 0.000000e+00 : f32
    %147 = vector.broadcast %cst_65 : f32 to vector<16x64xf32>
    %148 = arith.maximumf %146, %147 : vector<16x64xf32>
    %c0_66 = arith.constant 0 : index
    %c0_67 = arith.constant 0 : index
    %c0_68 = arith.constant 0 : index
    %149 = vector.load %arg8[%c0_66, %c0_67, %c0_68] : memref<2x64x32xf32, #tpu.memory_space<vmem>>, vector<1x64x32xf32>
    %150 = vector.shape_cast %149 : vector<1x64x32xf32> to vector<64x32xf32>
    %cst_69 = arith.constant dense<0.000000e+00> : vector<16x32xf32>
    %151 = tpu.matmul %148, %150, %cst_69 {dimension_numbers = #tpu.dot_dimension_numbers<[1], [0], [0], [1], [0, 0, 1, 1], [], []>} : vector<16x64xf32>, vector<64x32xf32>, vector<16x32xf32> -> vector<16x32xf32>
    %c0_70 = arith.constant 0 : index
    %c0_71 = arith.constant 0 : index
    %c0_72 = arith.constant 0 : index
    %152 = vector.load %arg9[%c0_70, %c0_71, %c0_72] : memref<2x1x32xf32, #tpu.memory_space<vmem>>, vector<1x1x32xf32>
    %153 = vector.shape_cast %152 : vector<1x1x32xf32> to vector<1x32xf32>
    %154 = vector.broadcast %153 : vector<1x32xf32> to vector<16x32xf32>
    %155 = arith.addf %151, %154 : vector<16x32xf32>
    %156 = arith.addf %114, %155 : vector<16x32xf32>
    %c1 = arith.constant 1 : index
    %c0_73 = arith.constant 0 : index
    %c0_74 = arith.constant 0 : index
    %157 = vector.load %arg10[%c1, %c0_73, %c0_74] : memref<2x1x32xf32, #tpu.memory_space<vmem>>, vector<1x1x32xf32>
    %158 = vector.shape_cast %157 : vector<1x1x32xf32> to vector<1x32xf32>
    %c1_75 = arith.constant 1 : index
    %c0_76 = arith.constant 0 : index
    %c0_77 = arith.constant 0 : index
    %159 = vector.load %arg11[%c1_75, %c0_76, %c0_77] : memref<2x1x32xf32, #tpu.memory_space<vmem>>, vector<1x1x32xf32>
    %160 = vector.shape_cast %159 : vector<1x1x32xf32> to vector<1x32xf32>
    %cst_78 = arith.constant dense<0.000000e+00> : vector<16xf32>
    %161 = vector.multi_reduction <add>, %156, %cst_78 [1] : vector<16x32xf32> to vector<16xf32>
    %162 = vector.shape_cast %161 : vector<16xf32> to vector<16x1xf32>
    %cst_79 = arith.constant 3.200000e+01 : f32
    %163 = vector.broadcast %cst_79 : f32 to vector<16x1xf32>
    %164 = arith.divf %162, %163 : vector<16x1xf32>
    %165 = vector.broadcast %164 : vector<16x1xf32> to vector<16x32xf32>
    %166 = arith.subf %156, %165 : vector<16x32xf32>
    %167 = arith.mulf %166, %166 : vector<16x32xf32>
    %cst_80 = arith.constant dense<0.000000e+00> : vector<16xf32>
    %168 = vector.multi_reduction <add>, %167, %cst_80 [1] : vector<16x32xf32> to vector<16xf32>
    %169 = vector.shape_cast %168 : vector<16xf32> to vector<16x1xf32>
    %cst_81 = arith.constant 0.0322580636 : f32
    %170 = vector.broadcast %cst_81 : f32 to vector<16x1xf32>
    %171 = arith.mulf %169, %170 : vector<16x1xf32>
    %172 = math.sqrt %171 : vector<16x1xf32>
    %173 = vector.broadcast %158 : vector<1x32xf32> to vector<16x32xf32>
    %174 = arith.mulf %173, %166 : vector<16x32xf32>
    %cst_82 = arith.constant 9.99999997E-7 : f32
    %175 = vector.broadcast %cst_82 : f32 to vector<16x1xf32>
    %176 = arith.addf %172, %175 : vector<16x1xf32>
    %177 = tpu.reciprocal %176 {approx = true} : vector<16x1xf32> -> vector<16x1xf32>
    %178 = vector.broadcast %177 : vector<16x1xf32> to vector<16x32xf32>
    %179 = arith.mulf %174, %178 : vector<16x32xf32>
    %180 = vector.broadcast %160 : vector<1x32xf32> to vector<16x32xf32>
    %181 = arith.addf %179, %180 : vector<16x32xf32>
    %c1_83 = arith.constant 1 : index
    %c0_84 = arith.constant 0 : index
    %c0_85 = arith.constant 0 : index
    %182 = vector.load %arg2[%c1_83, %c0_84, %c0_85] : memref<2x32x96xf32, #tpu.memory_space<vmem>>, vector<1x32x96xf32>
    %183 = vector.shape_cast %182 : vector<1x32x96xf32> to vector<32x96xf32>
    %cst_86 = arith.constant dense<0.000000e+00> : vector<16x96xf32>
    %184 = tpu.matmul %181, %183, %cst_86 {dimension_numbers = #tpu.dot_dimension_numbers<[1], [0], [0], [1], [0, 0, 1, 1], [], []>} : vector<16x32xf32>, vector<32x96xf32>, vector<16x96xf32> -> vector<16x96xf32>
    %c1_87 = arith.constant 1 : index
    %c0_88 = arith.constant 0 : index
    %c0_89 = arith.constant 0 : index
    %185 = vector.load %arg3[%c1_87, %c0_88, %c0_89] : memref<2x1x96xf32, #tpu.memory_space<vmem>>, vector<1x1x96xf32>
    %186 = vector.shape_cast %185 : vector<1x1x96xf32> to vector<1x96xf32>
    %187 = vector.broadcast %186 : vector<1x96xf32> to vector<16x96xf32>
    %188 = arith.addf %184, %187 : vector<16x96xf32>
    %189 = vector.extract_strided_slice %188 {offsets = [0, 0], sizes = [16, 8], strides = [1, 1]} : vector<16x96xf32> to vector<16x8xf32>
    %190 = vector.extract_strided_slice %188 {offsets = [0, 32], sizes = [16, 8], strides = [1, 1]} : vector<16x96xf32> to vector<16x8xf32>
    %191 = vector.extract_strided_slice %188 {offsets = [0, 64], sizes = [16, 8], strides = [1, 1]} : vector<16x96xf32> to vector<16x8xf32>
    %cst_90 = arith.constant dense<0.000000e+00> : vector<16x16xf32>
    %192 = tpu.matmul %189, %190, %cst_90 {dimension_numbers = #tpu.dot_dimension_numbers<[1], [1], [0], [0], [0, 0, 1, 0], [], []>} : vector<16x8xf32>, vector<16x8xf32>, vector<16x16xf32> -> vector<16x16xf32>
    %cst_91 = arith.constant 0.353553385 : f32
    %193 = vector.broadcast %cst_91 : f32 to vector<16x16xf32>
    %194 = arith.mulf %192, %193 : vector<16x16xf32>
    %195 = arith.addf %194, %1 : vector<16x16xf32>
    %cst_92 = arith.constant dense<0xFF800000> : vector<16xf32>
    %196 = vector.multi_reduction <maximumf>, %195, %cst_92 [1] : vector<16x16xf32> to vector<16xf32>
    %197 = vector.shape_cast %196 : vector<16xf32> to vector<16x1xf32>
    %198 = vector.broadcast %197 : vector<16x1xf32> to vector<16x16xf32>
    %199 = arith.subf %195, %198 : vector<16x16xf32>
    %200 = math.exp %199 : vector<16x16xf32>
    %cst_93 = arith.constant dense<0.000000e+00> : vector<16xf32>
    %201 = vector.multi_reduction <add>, %200, %cst_93 [1] : vector<16x16xf32> to vector<16xf32>
    %202 = vector.shape_cast %201 : vector<16xf32> to vector<16x1xf32>
    %203 = tpu.reciprocal %202 {approx = true} : vector<16x1xf32> -> vector<16x1xf32>
    %204 = vector.broadcast %203 : vector<16x1xf32> to vector<16x16xf32>
    %205 = arith.mulf %200, %204 : vector<16x16xf32>
    %c0_94 = arith.constant 0 : index
    %c0_95 = arith.constant 0 : index
    %c0_96 = arith.constant 0 : index
    %206 = vector.load %arg17[%c0_94, %c0_95, %c0_96] : memref<4x16x16xf32, #tpu.memory_space<vmem>>, vector<1x16x16xf32>
    %207 = vector.shape_cast %206 : vector<1x16x16xf32> to vector<16x16xf32>
    %208 = vector.shape_cast %205 : vector<16x16xf32> to vector<1x16x16xf32>
    tpu.vector_store %arg17[%c0_94, %c0_95, %c0_96], %208 {strides = array<i32>} : memref<4x16x16xf32, #tpu.memory_space<vmem>>, vector<1x16x16xf32>,
    %cst_97 = arith.constant dense<0.000000e+00> : vector<16x8xf32>
    %209 = tpu.matmul %205, %191, %cst_97 {dimension_numbers = #tpu.dot_dimension_numbers<[1], [0], [0], [1], [0, 0, 1, 1], [], []>} : vector<16x16xf32>, vector<16x8xf32>, vector<16x8xf32> -> vector<16x8xf32>
    %210 = vector.extract_strided_slice %188 {offsets = [0, 8], sizes = [16, 8], strides = [1, 1]} : vector<16x96xf32> to vector<16x8xf32>
    %211 = vector.extract_strided_slice %188 {offsets = [0, 40], sizes = [16, 8], strides = [1, 1]} : vector<16x96xf32> to vector<16x8xf32>
    %212 = vector.extract_strided_slice %188 {offsets = [0, 72], sizes = [16, 8], strides = [1, 1]} : vector<16x96xf32> to vector<16x8xf32>
    %cst_98 = arith.constant dense<0.000000e+00> : vector<16x16xf32>
    %213 = tpu.matmul %210, %211, %cst_98 {dimension_numbers = #tpu.dot_dimension_numbers<[1], [1], [0], [0], [0, 0, 1, 0], [], []>} : vector<16x8xf32>, vector<16x8xf32>, vector<16x16xf32> -> vector<16x16xf32>
    %cst_99 = arith.constant 0.353553385 : f32
    %214 = vector.broadcast %cst_99 : f32 to vector<16x16xf32>
    %215 = arith.mulf %213, %214 : vector<16x16xf32>
    %216 = arith.addf %215, %1 : vector<16x16xf32>
    %cst_100 = arith.constant dense<0xFF800000> : vector<16xf32>
    %217 = vector.multi_reduction <maximumf>, %216, %cst_100 [1] : vector<16x16xf32> to vector<16xf32>
    %218 = vector.shape_cast %217 : vector<16xf32> to vector<16x1xf32>
    %219 = vector.broadcast %218 : vector<16x1xf32> to vector<16x16xf32>
    %220 = arith.subf %216, %219 : vector<16x16xf32>
    %221 = math.exp %220 : vector<16x16xf32>
    %cst_101 = arith.constant dense<0.000000e+00> : vector<16xf32>
    %222 = vector.multi_reduction <add>, %221, %cst_101 [1] : vector<16x16xf32> to vector<16xf32>
    %223 = vector.shape_cast %222 : vector<16xf32> to vector<16x1xf32>
    %224 = tpu.reciprocal %223 {approx = true} : vector<16x1xf32> -> vector<16x1xf32>
    %225 = vector.broadcast %224 : vector<16x1xf32> to vector<16x16xf32>
    %226 = arith.mulf %221, %225 : vector<16x16xf32>
    %c1_102 = arith.constant 1 : index
    %c0_103 = arith.constant 0 : index
    %c0_104 = arith.constant 0 : index
    %227 = vector.load %arg17[%c1_102, %c0_103, %c0_104] : memref<4x16x16xf32, #tpu.memory_space<vmem>>, vector<1x16x16xf32>
    %228 = vector.shape_cast %227 : vector<1x16x16xf32> to vector<16x16xf32>
    %229 = vector.shape_cast %226 : vector<16x16xf32> to vector<1x16x16xf32>
    tpu.vector_store %arg17[%c1_102, %c0_103, %c0_104], %229 {strides = array<i32>} : memref<4x16x16xf32, #tpu.memory_space<vmem>>, vector<1x16x16xf32>,
    %cst_105 = arith.constant dense<0.000000e+00> : vector<16x8xf32>
    %230 = tpu.matmul %226, %212, %cst_105 {dimension_numbers = #tpu.dot_dimension_numbers<[1], [0], [0], [1], [0, 0, 1, 1], [], []>} : vector<16x16xf32>, vector<16x8xf32>, vector<16x8xf32> -> vector<16x8xf32>
    %231 = vector.extract_strided_slice %188 {offsets = [0, 16], sizes = [16, 8], strides = [1, 1]} : vector<16x96xf32> to vector<16x8xf32>
    %232 = vector.extract_strided_slice %188 {offsets = [0, 48], sizes = [16, 8], strides = [1, 1]} : vector<16x96xf32> to vector<16x8xf32>
    %233 = vector.extract_strided_slice %188 {offsets = [0, 80], sizes = [16, 8], strides = [1, 1]} : vector<16x96xf32> to vector<16x8xf32>
    %cst_106 = arith.constant dense<0.000000e+00> : vector<16x16xf32>
    %234 = tpu.matmul %231, %232, %cst_106 {dimension_numbers = #tpu.dot_dimension_numbers<[1], [1], [0], [0], [0, 0, 1, 0], [], []>} : vector<16x8xf32>, vector<16x8xf32>, vector<16x16xf32> -> vector<16x16xf32>
    %cst_107 = arith.constant 0.353553385 : f32
    %235 = vector.broadcast %cst_107 : f32 to vector<16x16xf32>
    %236 = arith.mulf %234, %235 : vector<16x16xf32>
    %237 = arith.addf %236, %1 : vector<16x16xf32>
    %cst_108 = arith.constant dense<0xFF800000> : vector<16xf32>
    %238 = vector.multi_reduction <maximumf>, %237, %cst_108 [1] : vector<16x16xf32> to vector<16xf32>
    %239 = vector.shape_cast %238 : vector<16xf32> to vector<16x1xf32>
    %240 = vector.broadcast %239 : vector<16x1xf32> to vector<16x16xf32>
    %241 = arith.subf %237, %240 : vector<16x16xf32>
    %242 = math.exp %241 : vector<16x16xf32>
    %cst_109 = arith.constant dense<0.000000e+00> : vector<16xf32>
    %243 = vector.multi_reduction <add>, %242, %cst_109 [1] : vector<16x16xf32> to vector<16xf32>
    %244 = vector.shape_cast %243 : vector<16xf32> to vector<16x1xf32>
    %245 = tpu.reciprocal %244 {approx = true} : vector<16x1xf32> -> vector<16x1xf32>
    %246 = vector.broadcast %245 : vector<16x1xf32> to vector<16x16xf32>
    %247 = arith.mulf %242, %246 : vector<16x16xf32>
    %c2 = arith.constant 2 : index
    %c0_110 = arith.constant 0 : index
    %c0_111 = arith.constant 0 : index
    %248 = vector.load %arg17[%c2, %c0_110, %c0_111] : memref<4x16x16xf32, #tpu.memory_space<vmem>>, vector<1x16x16xf32>
    %249 = vector.shape_cast %248 : vector<1x16x16xf32> to vector<16x16xf32>
    %250 = vector.shape_cast %247 : vector<16x16xf32> to vector<1x16x16xf32>
    tpu.vector_store %arg17[%c2, %c0_110, %c0_111], %250 {strides = array<i32>} : memref<4x16x16xf32, #tpu.memory_space<vmem>>, vector<1x16x16xf32>,
    %cst_112 = arith.constant dense<0.000000e+00> : vector<16x8xf32>
    %251 = tpu.matmul %247, %233, %cst_112 {dimension_numbers = #tpu.dot_dimension_numbers<[1], [0], [0], [1], [0, 0, 1, 1], [], []>} : vector<16x16xf32>, vector<16x8xf32>, vector<16x8xf32> -> vector<16x8xf32>
    %252 = vector.extract_strided_slice %188 {offsets = [0, 24], sizes = [16, 8], strides = [1, 1]} : vector<16x96xf32> to vector<16x8xf32>
    %253 = vector.extract_strided_slice %188 {offsets = [0, 56], sizes = [16, 8], strides = [1, 1]} : vector<16x96xf32> to vector<16x8xf32>
    %254 = vector.extract_strided_slice %188 {offsets = [0, 88], sizes = [16, 8], strides = [1, 1]} : vector<16x96xf32> to vector<16x8xf32>
    %cst_113 = arith.constant dense<0.000000e+00> : vector<16x16xf32>
    %255 = tpu.matmul %252, %253, %cst_113 {dimension_numbers = #tpu.dot_dimension_numbers<[1], [1], [0], [0], [0, 0, 1, 0], [], []>} : vector<16x8xf32>, vector<16x8xf32>, vector<16x16xf32> -> vector<16x16xf32>
    %cst_114 = arith.constant 0.353553385 : f32
    %256 = vector.broadcast %cst_114 : f32 to vector<16x16xf32>
    %257 = arith.mulf %255, %256 : vector<16x16xf32>
    %258 = arith.addf %257, %1 : vector<16x16xf32>
    %cst_115 = arith.constant dense<0xFF800000> : vector<16xf32>
    %259 = vector.multi_reduction <maximumf>, %258, %cst_115 [1] : vector<16x16xf32> to vector<16xf32>
    %260 = vector.shape_cast %259 : vector<16xf32> to vector<16x1xf32>
    %261 = vector.broadcast %260 : vector<16x1xf32> to vector<16x16xf32>
    %262 = arith.subf %258, %261 : vector<16x16xf32>
    %263 = math.exp %262 : vector<16x16xf32>
    %cst_116 = arith.constant dense<0.000000e+00> : vector<16xf32>
    %264 = vector.multi_reduction <add>, %263, %cst_116 [1] : vector<16x16xf32> to vector<16xf32>
    %265 = vector.shape_cast %264 : vector<16xf32> to vector<16x1xf32>
    %266 = tpu.reciprocal %265 {approx = true} : vector<16x1xf32> -> vector<16x1xf32>
    %267 = vector.broadcast %266 : vector<16x1xf32> to vector<16x16xf32>
    %268 = arith.mulf %263, %267 : vector<16x16xf32>
    %c3 = arith.constant 3 : index
    %c0_117 = arith.constant 0 : index
    %c0_118 = arith.constant 0 : index
    %269 = vector.load %arg17[%c3, %c0_117, %c0_118] : memref<4x16x16xf32, #tpu.memory_space<vmem>>, vector<1x16x16xf32>
    %270 = vector.shape_cast %269 : vector<1x16x16xf32> to vector<16x16xf32>
    %271 = vector.shape_cast %268 : vector<16x16xf32> to vector<1x16x16xf32>
    tpu.vector_store %arg17[%c3, %c0_117, %c0_118], %271 {strides = array<i32>} : memref<4x16x16xf32, #tpu.memory_space<vmem>>, vector<1x16x16xf32>,
    %cst_119 = arith.constant dense<0.000000e+00> : vector<16x8xf32>
    %272 = tpu.matmul %268, %254, %cst_119 {dimension_numbers = #tpu.dot_dimension_numbers<[1], [0], [0], [1], [0, 0, 1, 1], [], []>} : vector<16x16xf32>, vector<16x8xf32>, vector<16x8xf32> -> vector<16x8xf32>
    %273 = tpu.concatenate %209, %230, %251, %272 in 1 : vector<16x8xf32>, vector<16x8xf32>, vector<16x8xf32>, vector<16x8xf32> -> vector<16x32xf32>
    %c1_120 = arith.constant 1 : index
    %c0_121 = arith.constant 0 : index
    %c0_122 = arith.constant 0 : index
    %274 = vector.load %arg4[%c1_120, %c0_121, %c0_122] : memref<2x32x32xf32, #tpu.memory_space<vmem>>, vector<1x32x32xf32>
    %275 = vector.shape_cast %274 : vector<1x32x32xf32> to vector<32x32xf32>
    %cst_123 = arith.constant dense<0.000000e+00> : vector<16x32xf32>
    %276 = tpu.matmul %273, %275, %cst_123 {dimension_numbers = #tpu.dot_dimension_numbers<[1], [0], [0], [1], [0, 0, 1, 1], [], []>} : vector<16x32xf32>, vector<32x32xf32>, vector<16x32xf32> -> vector<16x32xf32>
    %c1_124 = arith.constant 1 : index
    %c0_125 = arith.constant 0 : index
    %c0_126 = arith.constant 0 : index
    %277 = vector.load %arg5[%c1_124, %c0_125, %c0_126] : memref<2x1x32xf32, #tpu.memory_space<vmem>>, vector<1x1x32xf32>
    %278 = vector.shape_cast %277 : vector<1x1x32xf32> to vector<1x32xf32>
    %279 = vector.broadcast %278 : vector<1x32xf32> to vector<16x32xf32>
    %280 = arith.addf %276, %279 : vector<16x32xf32>
    %281 = arith.addf %156, %280 : vector<16x32xf32>
    %c1_127 = arith.constant 1 : index
    %c0_128 = arith.constant 0 : index
    %c0_129 = arith.constant 0 : index
    %282 = vector.load %arg12[%c1_127, %c0_128, %c0_129] : memref<2x1x32xf32, #tpu.memory_space<vmem>>, vector<1x1x32xf32>
    %283 = vector.shape_cast %282 : vector<1x1x32xf32> to vector<1x32xf32>
    %c1_130 = arith.constant 1 : index
    %c0_131 = arith.constant 0 : index
    %c0_132 = arith.constant 0 : index
    %284 = vector.load %arg13[%c1_130, %c0_131, %c0_132] : memref<2x1x32xf32, #tpu.memory_space<vmem>>, vector<1x1x32xf32>
    %285 = vector.shape_cast %284 : vector<1x1x32xf32> to vector<1x32xf32>
    %cst_133 = arith.constant dense<0.000000e+00> : vector<16xf32>
    %286 = vector.multi_reduction <add>, %281, %cst_133 [1] : vector<16x32xf32> to vector<16xf32>
    %287 = vector.shape_cast %286 : vector<16xf32> to vector<16x1xf32>
    %cst_134 = arith.constant 3.200000e+01 : f32
    %288 = vector.broadcast %cst_134 : f32 to vector<16x1xf32>
    %289 = arith.divf %287, %288 : vector<16x1xf32>
    %290 = vector.broadcast %289 : vector<16x1xf32> to vector<16x32xf32>
    %291 = arith.subf %281, %290 : vector<16x32xf32>
    %292 = arith.mulf %291, %291 : vector<16x32xf32>
    %cst_135 = arith.constant dense<0.000000e+00> : vector<16xf32>
    %293 = vector.multi_reduction <add>, %292, %cst_135 [1] : vector<16x32xf32> to vector<16xf32>
    %294 = vector.shape_cast %293 : vector<16xf32> to vector<16x1xf32>
    %cst_136 = arith.constant 0.0322580636 : f32
    %295 = vector.broadcast %cst_136 : f32 to vector<16x1xf32>
    %296 = arith.mulf %294, %295 : vector<16x1xf32>
    %297 = math.sqrt %296 : vector<16x1xf32>
    %298 = vector.broadcast %283 : vector<1x32xf32> to vector<16x32xf32>
    %299 = arith.mulf %298, %291 : vector<16x32xf32>
    %cst_137 = arith.constant 9.99999997E-7 : f32
    %300 = vector.broadcast %cst_137 : f32 to vector<16x1xf32>
    %301 = arith.addf %297, %300 : vector<16x1xf32>
    %302 = tpu.reciprocal %301 {approx = true} : vector<16x1xf32> -> vector<16x1xf32>
    %303 = vector.broadcast %302 : vector<16x1xf32> to vector<16x32xf32>
    %304 = arith.mulf %299, %303 : vector<16x32xf32>
    %305 = vector.broadcast %285 : vector<1x32xf32> to vector<16x32xf32>
    %306 = arith.addf %304, %305 : vector<16x32xf32>
    %c1_138 = arith.constant 1 : index
    %c0_139 = arith.constant 0 : index
    %c0_140 = arith.constant 0 : index
    %307 = vector.load %arg6[%c1_138, %c0_139, %c0_140] : memref<2x32x64xf32, #tpu.memory_space<vmem>>, vector<1x32x64xf32>
    %308 = vector.shape_cast %307 : vector<1x32x64xf32> to vector<32x64xf32>
    %cst_141 = arith.constant dense<0.000000e+00> : vector<16x64xf32>
    %309 = tpu.matmul %306, %308, %cst_141 {dimension_numbers = #tpu.dot_dimension_numbers<[1], [0], [0], [1], [0, 0, 1, 1], [], []>} : vector<16x32xf32>, vector<32x64xf32>, vector<16x64xf32> -> vector<16x64xf32>
    %c1_142 = arith.constant 1 : index
    %c0_143 = arith.constant 0 : index
    %c0_144 = arith.constant 0 : index
    %310 = vector.load %arg7[%c1_142, %c0_143, %c0_144] : memref<2x1x64xf32, #tpu.memory_space<vmem>>, vector<1x1x64xf32>
    %311 = vector.shape_cast %310 : vector<1x1x64xf32> to vector<1x64xf32>
    %312 = vector.broadcast %311 : vector<1x64xf32> to vector<16x64xf32>
    %313 = arith.addf %309, %312 : vector<16x64xf32>
    %cst_145 = arith.constant 0.000000e+00 : f32
    %314 = vector.broadcast %cst_145 : f32 to vector<16x64xf32>
    %315 = arith.maximumf %313, %314 : vector<16x64xf32>
    %c1_146 = arith.constant 1 : index
    %c0_147 = arith.constant 0 : index
    %c0_148 = arith.constant 0 : index
    %316 = vector.load %arg8[%c1_146, %c0_147, %c0_148] : memref<2x64x32xf32, #tpu.memory_space<vmem>>, vector<1x64x32xf32>
    %317 = vector.shape_cast %316 : vector<1x64x32xf32> to vector<64x32xf32>
    %cst_149 = arith.constant dense<0.000000e+00> : vector<16x32xf32>
    %318 = tpu.matmul %315, %317, %cst_149 {dimension_numbers = #tpu.dot_dimension_numbers<[1], [0], [0], [1], [0, 0, 1, 1], [], []>} : vector<16x64xf32>, vector<64x32xf32>, vector<16x32xf32> -> vector<16x32xf32>
    %c1_150 = arith.constant 1 : index
    %c0_151 = arith.constant 0 : index
    %c0_152 = arith.constant 0 : index
    %319 = vector.load %arg9[%c1_150, %c0_151, %c0_152] : memref<2x1x32xf32, #tpu.memory_space<vmem>>, vector<1x1x32xf32>
    %320 = vector.shape_cast %319 : vector<1x1x32xf32> to vector<1x32xf32>
    %321 = vector.broadcast %320 : vector<1x32xf32> to vector<16x32xf32>
    %322 = arith.addf %318, %321 : vector<16x32xf32>
    %323 = arith.addf %281, %322 : vector<16x32xf32>
    %c0_153 = arith.constant 0 : index
    %c0_154 = arith.constant 0 : index
    %324 = vector.load %arg14[%c0_153, %c0_154] : memref<1x32xf32, #tpu.memory_space<vmem>>, vector<1x32xf32>
    %c0_155 = arith.constant 0 : index
    %c0_156 = arith.constant 0 : index
    %325 = vector.load %arg15[%c0_155, %c0_156] : memref<1x32xf32, #tpu.memory_space<vmem>>, vector<1x32xf32>
    %cst_157 = arith.constant dense<0.000000e+00> : vector<16xf32>
    %326 = vector.multi_reduction <add>, %323, %cst_157 [1] : vector<16x32xf32> to vector<16xf32>
    %327 = vector.shape_cast %326 : vector<16xf32> to vector<16x1xf32>
    %cst_158 = arith.constant 3.200000e+01 : f32
    %328 = vector.broadcast %cst_158 : f32 to vector<16x1xf32>
    %329 = arith.divf %327, %328 : vector<16x1xf32>
    %330 = vector.broadcast %329 : vector<16x1xf32> to vector<16x32xf32>
    %331 = arith.subf %323, %330 : vector<16x32xf32>
    %332 = arith.mulf %331, %331 : vector<16x32xf32>
    %cst_159 = arith.constant dense<0.000000e+00> : vector<16xf32>
    %333 = vector.multi_reduction <add>, %332, %cst_159 [1] : vector<16x32xf32> to vector<16xf32>
    %334 = vector.shape_cast %333 : vector<16xf32> to vector<16x1xf32>
    %cst_160 = arith.constant 0.0322580636 : f32
    %335 = vector.broadcast %cst_160 : f32 to vector<16x1xf32>
    %336 = arith.mulf %334, %335 : vector<16x1xf32>
    %337 = math.sqrt %336 : vector<16x1xf32>
    %338 = vector.broadcast %324 : vector<1x32xf32> to vector<16x32xf32>
    %339 = arith.mulf %338, %331 : vector<16x32xf32>
    %cst_161 = arith.constant 9.99999997E-7 : f32
    %340 = vector.broadcast %cst_161 : f32 to vector<16x1xf32>
    %341 = arith.addf %337, %340 : vector<16x1xf32>
    %342 = tpu.reciprocal %341 {approx = true} : vector<16x1xf32> -> vector<16x1xf32>
    %343 = vector.broadcast %342 : vector<16x1xf32> to vector<16x32xf32>
    %344 = arith.mulf %339, %343 : vector<16x32xf32>
    %345 = vector.broadcast %325 : vector<1x32xf32> to vector<16x32xf32>
    %346 = arith.addf %344, %345 : vector<16x32xf32>
    %c0_162 = arith.constant 0 : index
    %c0_163 = arith.constant 0 : index
    %347 = vector.load %arg16[%c0_162, %c0_163] : memref<16x32xf32, #tpu.memory_space<vmem>>, vector<16x32xf32>
    tpu.vector_store %arg16[%c0_162, %c0_163], %346 {strides = array<i32>} : memref<16x32xf32, #tpu.memory_space<vmem>>, vector<16x32xf32>,
    return
  }
}

</mosaic_0001>

<llo_original>
// kernel: eq.8
$region0: #{eq.8}
  %s0 = inlined_call_operand.vmem [shape: s32[2,8], index: 0, kind: input, shape index: {}]
  %s1 = inlined_call_operand.vmem [shape: s32[16], index: 1, kind: output, shape index: {}]
  $region1: #{eq.8} parent=0
    #allocation0 [shape = 'u8[4096]{0}', space=vmem, size = 0x1000, scoped, tag = 'scoped mem for output reshape']
    #allocation1 [shape = 'u8[4096]{0}', space=vmem, size = 0x1000, scoped, tag = 'scoped mem for input reshape']
    %s3 = sshllo.u32 0, 2
    %v4 = vld [vmem:[%s0] sm:%s3]
    %5 = vst [vmem:[#allocation1] sm:%s3] %v4
    %v6 = vld [vmem:[#allocation1] sm:$0x1]
    %vm7 = vcmask 64512
    %8 = vst.msk [vmem:[#allocation0] sm:$0x1] %vm7, %v6
    %s9 = scalar_lea.vmem [#allocation1], 1
    %v10 = vld [vmem:[%s9] sm:$0x1]
    %11 = vrot.lane.b32.xlu0 %v10, 8
    %v12 = vpop.permute.xlu0 %11
    %vm13 = vcmask 130112
    %14 = vst.msk [vmem:[#allocation0] sm:$0x1] %vm13, %v12
    %s16 = sshllo.u32 0, 1
    %v18 = vld [vmem:[#allocation0] sm:%s16]
    %s19 = sshllo.u32 0, 1
    %20 = vst [vmem:[%s1] sm:%s19] %v18

// kernel: encoder_fused.1
$region0: #{encoder_fused.1}
  #allocation0 [shape = 'u32[]', space=smem, size = 0x4, offset = 0x4, fixed_abs, tag = 'smem constant byte address 0x4 - core index']
  #allocation1 [shape = 'u32[144,128]{1,0:T(1,128)}', space=vmem, size = 0x12000, scoped, tag = 'internal scratch']
  %s0 = inlined_call_operand.vmem [shape: f32[16,32], index: 0, kind: input, shape index: {}]
  %s1 = inlined_call_operand.vmem [shape: f32[16,16], index: 1, kind: input, shape index: {}]
  %s2 = inlined_call_operand.vmem [shape: f32[2,32,96], index: 2, kind: input, shape index: {}]
  %s3 = inlined_call_operand.vmem [shape: f32[2,1,96], index: 3, kind: input, shape index: {}]
  %s4 = inlined_call_operand.vmem [shape: f32[2,32,32], index: 4, kind: input, shape index: {}]
  %s5 = inlined_call_operand.vmem [shape: f32[2,1,32], index: 5, kind: input, shape index: {}]
  %s6 = inlined_call_operand.vmem [shape: f32[2,32,64], index: 6, kind: input, shape index: {}]
  %s7 = inlined_call_operand.vmem [shape: f32[2,1,64], index: 7, kind: input, shape index: {}]
  %s8 = inlined_call_operand.vmem [shape: f32[2,64,32], index: 8, kind: input, shape index: {}]
  %s9 = inlined_call_operand.vmem [shape: f32[2,1,32], index: 9, kind: input, shape index: {}]
  %s10 = inlined_call_operand.vmem [shape: f32[2,1,32], index: 10, kind: input, shape index: {}]
  %s11 = inlined_call_operand.vmem [shape: f32[2,1,32], index: 11, kind: input, shape index: {}]
  %s12 = inlined_call_operand.vmem [shape: f32[2,1,32], index: 12, kind: input, shape index: {}]
  %s13 = inlined_call_operand.vmem [shape: f32[2,1,32], index: 13, kind: input, shape index: {}]
  %s14 = inlined_call_operand.vmem [shape: f32[1,32], index: 14, kind: input, shape index: {}]
  %s15 = inlined_call_operand.vmem [shape: f32[1,32], index: 15, kind: input, shape index: {}]
  %s16 = inlined_call_operand.hbm [shape: f32[16,32], index: 16, kind: output, shape index: {0}]
  %s17 = inlined_call_operand.hbm [shape: f32[4,16,16], index: 17, kind: output, shape index: {1}]
  %18 = xla_tuple %s16, %s17
  %s19 = sld [smem:[#allocation0]]
  $region82: #{encoder_fused.1} parent=0
    _
  %s21 = ssub.s32 1, %s19
  %s22 = scalar_select 0, %s21, %s19
  $region1: #{encoder_fused.1} parent=0
    #allocation2 [shape = 'u8[8192]{0}', space=vmem, size = 0x2000, scoped, tag = 'output window, operand 0, single buffered']
    #allocation3 [shape = 's32[1]{0}', space=sflag, size = 0x4, scoped, tag = 'scoped memory for encoder_fused.1']
    #allocation4 [shape = 'u8[32768]{0}', space=vmem, size = 0x8000, scoped, tag = 'output window, operand 1, single buffered']
    #allocation5 [shape = 's32[1]{0}', space=sflag, size = 0x4, scoped, tag = 'scoped memory for encoder_fused.1']
    %23 = vsyncpa [#allocation3], 0
    %24 = vsyncpa [#allocation5], 0
    // Predicated region
    $region2: #{encoder_fused.1} parent=1 // pred_check
      _
    $region3: #{encoder_fused.1} parent=1 // pred_check_branch
      %26 = sbr.rel (0) target = $region5
    $region4: #{encoder_fused.1} parent=1 // pred_region
      _
    $region5: #{encoder_fused.1} parent=1 // pred_fallthru
      _
    // Predicated region
    $region6: #{encoder_fused.1} parent=1 // pred_check
      _
    $region7: #{encoder_fused.1} parent=1 // pred_check_branch
      %28 = sbr.rel (0) target = $region9
    $region8: #{encoder_fused.1} parent=1 // pred_region
      _
    $region9: #{encoder_fused.1} parent=1 // pred_fallthru
      _
    // Predicated region
    $region10: #{encoder_fused.1} parent=1 // pred_check
      _
    $region11: #{encoder_fused.1} parent=1 // pred_check_branch
      %30 = sbr.rel (0) target = $region13
    $region12: #{encoder_fused.1} parent=1 // pred_region
      _
    $region13: #{encoder_fused.1} parent=1 // pred_fallthru
      _
    // Predicated region
    $region14: #{encoder_fused.1} parent=1 // pred_check
      _
    $region15: #{encoder_fused.1} parent=1 // pred_check_branch
      %32 = sbr.rel (0) target = $region17
    $region16: #{encoder_fused.1} parent=1 // pred_region
      _
    $region17: #{encoder_fused.1} parent=1 // pred_fallthru
      _
    // Predicated region
    $region18: #{encoder_fused.1} parent=1 // pred_check
      _
    $region19: #{encoder_fused.1} parent=1 // pred_check_branch
      %34 = sbr.rel (0) target = $region21
    $region20: #{encoder_fused.1} parent=1 // pred_region
      _
    $region21: #{encoder_fused.1} parent=1 // pred_fallthru
      _
    // Predicated region
    $region22: #{encoder_fused.1} parent=1 // pred_check
      _
    $region23: #{encoder_fused.1} parent=1 // pred_check_branch
      %36 = sbr.rel (0) target = $region25
    $region24: #{encoder_fused.1} parent=1 // pred_region
      _
    $region25: #{encoder_fused.1} parent=1 // pred_fallthru
      _
    // Predicated region
    $region26: #{encoder_fused.1} parent=1 // pred_check
      _
    $region27: #{encoder_fused.1} parent=1 // pred_check_branch
      %38 = sbr.rel (0) target = $region29
    $region28: #{encoder_fused.1} parent=1 // pred_region
      _
    $region29: #{encoder_fused.1} parent=1 // pred_fallthru
      _
    // Predicated region
    $region30: #{encoder_fused.1} parent=1 // pred_check
      _
    $region31: #{encoder_fused.1} parent=1 // pred_check_branch
      %40 = sbr.rel (0) target = $region33
    $region32: #{encoder_fused.1} parent=1 // pred_region
      _
    $region33: #{encoder_fused.1} parent=1 // pred_fallthru
      _
    // Predicated region
    $region34: #{encoder_fused.1} parent=1 // pred_check
      _
    $region35: #{encoder_fused.1} parent=1 // pred_check_branch
      %42 = sbr.rel (0) target = $region37
    $region36: #{encoder_fused.1} parent=1 // pred_region
      _
    $region37: #{encoder_fused.1} parent=1 // pred_fallthru
      _
    // Predicated region
    $region38: #{encoder_fused.1} parent=1 // pred_check
      _
    $region39: #{encoder_fused.1} parent=1 // pred_check_branch
      %44 = sbr.rel (0) target = $region41
    $region40: #{encoder_fused.1} parent=1 // pred_region
      _
    $region41: #{encoder_fused.1} parent=1 // pred_fallthru
      _
    // Predicated region
    $region42: #{encoder_fused.1} parent=1 // pred_check
      _
    $region43: #{encoder_fused.1} parent=1 // pred_check_branch
      %46 = sbr.rel (0) target = $region45
    $region44: #{encoder_fused.1} parent=1 // pred_region
      _
    $region45: #{encoder_fused.1} parent=1 // pred_fallthru
      _
    // Predicated region
    $region46: #{encoder_fused.1} parent=1 // pred_check
      _
    $region47: #{encoder_fused.1} parent=1 // pred_check_branch
      %48 = sbr.rel (0) target = $region49
    $region48: #{encoder_fused.1} parent=1 // pred_region
      _
    $region49: #{encoder_fused.1} parent=1 // pred_fallthru
      _
    // Predicated region
    $region50: #{encoder_fused.1} parent=1 // pred_check
      _
    $region51: #{encoder_fused.1} parent=1 // pred_check_branch
      %50 = sbr.rel (0) target = $region53
    $region52: #{encoder_fused.1} parent=1 // pred_region
      _
    $region53: #{encoder_fused.1} parent=1 // pred_fallthru
      _
    // Predicated region
    $region54: #{encoder_fused.1} parent=1 // pred_check
      _
    $region55: #{encoder_fused.1} parent=1 // pred_check_branch
      %52 = sbr.rel (0) target = $region57
    $region56: #{encoder_fused.1} parent=1 // pred_region
      _
    $region57: #{encoder_fused.1} parent=1 // pred_fallthru
      _
    // Predicated region
    $region58: #{encoder_fused.1} parent=1 // pred_check
      _
    $region59: #{encoder_fused.1} parent=1 // pred_check_branch
      %54 = sbr.rel (0) target = $region61
    $region60: #{encoder_fused.1} parent=1 // pred_region
      _
    $region61: #{encoder_fused.1} parent=1 // pred_fallthru
      _
    // Predicated region
    $region62: #{encoder_fused.1} parent=1 // pred_check
      _
    $region63: #{encoder_fused.1} parent=1 // pred_check_branch
      %56 = sbr.rel (0) target = $region65
    $region64: #{encoder_fused.1} parent=1 // pred_region
      _
    $region65: #{encoder_fused.1} parent=1 // pred_fallthru
      _
    %v57 = vld [vmem:[%s0] sm:$0xff]
    %v58 = vld [vmem:[%s0 + $0x8] sm:$0xff]
    %v59 = vld [vmem:[%s1] sm:$0xff]
    %v60 = vld [vmem:[%s1 + $0x8] sm:$0xff]
    %v61 = vld [vmem:[%s10] sm:$0x1]
    %v62 = vld [vmem:[%s11] sm:$0x1]
    %vm63 = vcmask 261120
    %v64 = vsel %vm63, %v57, 0.0
    %65 = vadd.xlane.f32.xlu0 %v64
    %v66 = vpop.xlane.xlu0 %65
    %v67 = vsel %vm63, %v58, 0.0
    %68 = vadd.xlane.f32.xlu0 %v67
    %v69 = vpop.xlane.xlu0 %68
    %v70 = vrcp.pop 32.0
    %v71 = vmul.f32 %v66, %v70
    %v72 = vmul.f32 %v69, %v70
    %v73 = vsub.f32 %v57, %v71
    %v74 = vsub.f32 %v58, %v72
    %v75 = vmul.f32 %v73, %v73
    %v76 = vmul.f32 %v74, %v74
    %v77 = vsel %vm63, %v75, 0.0
    %78 = vadd.xlane.f32.xlu0 %v77
    %v79 = vpop.xlane.xlu0 %78
    %v80 = vsel %vm63, %v76, 0.0
    %81 = vadd.xlane.f32.xlu0 %v80
    %v82 = vpop.xlane.xlu0 %81
    %v83 = vmul.f32 %v79, 0.032258064
    %v84 = vmul.f32 %v82, 0.032258064
    %v85 = vrsqrt.pop %v83
    %v86 = vmul.f32 %v83, %v85
    %vm87 = vcmp.eq.f32.partialorder %v83, inf
    %v88 = vsel %vm87, %v83, %v86
    %vm89 = vcmp.eq.f32.partialorder %v83, 0.0
    %v90 = vand.u32 %v83, 2147483648
    %v91 = vsel %vm89, %v90, %v88
    %v92 = vrsqrt.pop %v84
    %v93 = vmul.f32 %v84, %v92
    %vm94 = vcmp.eq.f32.partialorder %v84, inf
    %v95 = vsel %vm94, %v84, %v93
    %vm96 = vcmp.eq.f32.partialorder %v84, 0.0
    %v97 = vand.u32 %v84, 2147483648
    %v98 = vsel %vm96, %v97, %v95
    %v100 = vlaneseq
    %v101 = vshrl.u32 %v100, 7
    %v102 = vsub.s32 0, %v101
    %v103 = vrot.slane %v61, %v102
    %v105 = vmul.f32 %v103, %v73
    %v106 = vmul.f32 %v103, %v74
    %v107 = vadd.f32 %v91, 1e-06
    %v108 = vadd.f32 %v98, 1e-06
    %v109 = vrcp.pop %v107
    %v110 = vrcp.pop %v108
    %v111 = vmul.f32 %v105, %v109
    %v112 = vmul.f32 %v106, %v110
    %v114 = vlaneseq
    %v115 = vshrl.u32 %v114, 7
    %v116 = vsub.s32 0, %v115
    %v117 = vrot.slane %v62, %v116
    %v119 = vadd.f32 %v111, %v117
    %v120 = vadd.f32 %v112, %v117
    %v121 = vld [vmem:[%s2] sm:$0xff]
    %v122 = vld [vmem:[%s2 + $0x8] sm:$0xff]
    %v123 = vld [vmem:[%s2 + $0x10] sm:$0xff]
    %v124 = vld [vmem:[%s2 + $0x18] sm:$0xff]
    %v125 = vld [vmem:[%s3] sm:$0x1]
    %v127 = vlaneseq
    %v128 = vshrl.u32 %v127, 7
    %v129 = vsub.s32 0, %v128
    %v130 = vrot.slane %v125, %v129
    %v133 = vsel %vm63, %v119, 0
    %v136 = vsel %vm63, %v120, 0
    %138 = vmatprep.subr.mxu0 0.0
    %139 = vmatpush1.msra.mxu0 %v121
    %140 = vmatprep.subr.mxu0 0.0
    %141 = vmatpush1.msra.mxu0 %v122
    %142 = vmatprep.subr.mxu0 0.0
    %143 = vmatpush1.msra.mxu0 %v123
    %144 = vmatprep.subr.mxu0 0.0
    %145 = vmatpush1.msra.mxu0 %v124
    %146 = vmatprep.subr.mxu0 0.0
    %147 = vmatpush1.msra.mxu0 0.0
    %148 = vmatprep.subr.mxu0 0.0
    %149 = vmatpush1.msra.mxu0 0.0
    %150 = vmatprep.subr.mxu0 0.0
    %151 = vmatpush1.msra.mxu0 0.0
    %152 = vmatprep.subr.mxu0 0.0
    %153 = vmatpush1.msra.mxu0 0.0
    %154 = vmatprep.subr.mxu0 0.0
    %155 = vmatpush1.msra.mxu0 0.0
    %156 = vmatprep.subr.mxu0 0.0
    %157 = vmatpush1.msra.mxu0 0.0
    %158 = vmatprep.subr.mxu0 0.0
    %159 = vmatpush1.msra.mxu0 0.0
    %160 = vmatprep.subr.mxu0 0.0
    %161 = vmatpush1.msra.mxu0 0.0
    %162 = vmatprep.subr.mxu0 0.0
    %163 = vmatpush1.msra.mxu0 0.0
    %164 = vmatprep.subr.mxu0 0.0
    %165 = vmatpush1.msra.mxu0 0.0
    %166 = vmatprep.subr.mxu0 0.0
    %167 = vmatpush1.msra.mxu0 0.0
    %168 = vmatprep.subr.mxu0 0.0
    %169 = vmatpush1.msra.mxu0 0.0
    %170 = vmatprep.subr.mxu0 0.0
    %171 = vmatpush1.msra.mxu0 0.0
    %172 = vmatprep.subr.mxu0 0.0
    %173 = vmatpush1.msra.mxu0 0.0
    %174 = vmatprep.subr.mxu0 0.0
    %175 = vmatpush1.msra.mxu0 0.0
    %176 = vmatprep.subr.mxu0 0.0
    %177 = vmatpush1.msra.mxu0 0.0
    %178 = vmatprep.subr.mxu0 0.0
    %179 = vmatpush1.msra.mxu0 0.0
    %180 = vmatprep.subr.mxu0 0.0
    %181 = vmatpush1.msra.mxu0 0.0
    %182 = vmatprep.subr.mxu0 0.0
    %183 = vmatpush1.msra.mxu0 0.0
    %184 = vmatprep.subr.mxu0 0.0
    %185 = vmatpush1.msra.mxu0 0.0
    %186 = vmatprep.subr.mxu0 0.0
    %187 = vmatpush1.msra.mxu0 0.0
    %188 = vmatprep.subr.mxu0 0.0
    %189 = vmatpush1.msra.mxu0 0.0
    %190 = vmatprep.subr.mxu0 0.0
    %191 = vmatpush1.msra.mxu0 0.0
    %192 = vmatprep.subr.mxu0 0.0
    %193 = vmatpush1.msra.mxu0 0.0
    %194 = vmatprep.subr.mxu0 0.0
    %195 = vmatpush1.msra.mxu0 0.0
    %196 = vmatprep.subr.mxu0 0.0
    %197 = vmatpush1.msra.mxu0 0.0
    %198 = vmatprep.subr.mxu0 0.0
    %199 = vmatpush1.msra.mxu0 0.0
    %200 = vmatprep.subr.mxu0 0.0
    %201 = vmatpush1.msra.mxu0 0.0
    %202 = vmatprep.mubr.f32.mxu0 0.0
    %203 = vmatmul.mubr.f32.gmra.mrb[0].mxu0 %v133
    %v204 = vpop.f32.mrb[0].mxu0
    %v205 = vadd.f32 %v130, %v204
    %v206 = vpop.f32.mrb[0].mxu0
    %207 = vmatprep.mubr.f32.mxu0 0.0
    %208 = vmatmul.mubr.f32.gmra.mrb[0].mxu0 %v136
    %v209 = vpop.f32.mrb[0].mxu0
    %v210 = vadd.f32 %v130, %v209
    %v211 = vpop.f32.mrb[0].mxu0
    %212 = vdwg.mxu0
    %215 = vrot.lane.b32.xlu0 %v205, 96
    %v216 = vpop.permute.xlu0 %215
    %217 = vrot.lane.b32.xlu0 %v210, 96
    %v218 = vpop.permute.xlu0 %217
    %vm219 = vcmask 64512
    %v220 = vsel %vm219, %v205, 0
    %v222 = vsel %vm219, %v210, 0
    %v224 = vsel %vm219, %v216, 0
    %v226 = vsel %vm219, %v218, 0
    %228 = vmatprep.subr.mxu0 0.0
    %229 = vmatpush1.xpose.msra.mxu0 %v224
    %230 = vmatprep.subr.mxu0 0.0
    %231 = vmatpush1.xpose.msra.mxu0 %v226
    %232 = vmatprep.subr.mxu0 0.0
    %233 = vmatpush1.xpose.msra.mxu0 0.0
    %234 = vmatprep.subr.mxu0 0.0
    %235 = vmatpush1.xpose.msra.mxu0 0.0
    %236 = vmatprep.subr.mxu0 0.0
    %237 = vmatpush1.xpose.msra.mxu0 0.0
    %238 = vmatprep.subr.mxu0 0.0
    %239 = vmatpush1.xpose.msra.mxu0 0.0
    %240 = vmatprep.subr.mxu0 0.0
    %241 = vmatpush1.xpose.msra.mxu0 0.0
    %242 = vmatprep.subr.mxu0 0.0
    %243 = vmatpush1.xpose.msra.mxu0 0.0
    %244 = vmatprep.subr.mxu0 0.0
    %245 = vmatpush1.xpose.msra.mxu0 0.0
    %246 = vmatprep.subr.mxu0 0.0
    %247 = vmatpush1.xpose.msra.mxu0 0.0
    %248 = vmatprep.subr.mxu0 0.0
    %249 = vmatpush1.xpose.msra.mxu0 0.0
    %250 = vmatprep.subr.mxu0 0.0
    %251 = vmatpush1.xpose.msra.mxu0 0.0
    %252 = vmatprep.subr.mxu0 0.0
    %253 = vmatpush1.xpose.msra.mxu0 0.0
    %254 = vmatprep.subr.mxu0 0.0
    %255 = vmatpush1.xpose.msra.mxu0 0.0
    %256 = vmatprep.subr.mxu0 0.0
    %257 = vmatpush1.xpose.msra.mxu0 0.0
    %258 = vmatprep.subr.mxu0 0.0
    %259 = vmatpush1.xpose.msra.mxu0 0.0
    %260 = vmatprep.subr.mxu0 0.0
    %261 = vmatpush1.xpose.msra.mxu0 0.0
    %262 = vmatprep.subr.mxu0 0.0
    %263 = vmatpush1.xpose.msra.mxu0 0.0
    %264 = vmatprep.subr.mxu0 0.0
    %265 = vmatpush1.xpose.msra.mxu0 0.0
    %266 = vmatprep.subr.mxu0 0.0
    %267 = vmatpush1.xpose.msra.mxu0 0.0
    %268 = vmatprep.subr.mxu0 0.0
    %269 = vmatpush1.xpose.msra.mxu0 0.0
    %270 = vmatprep.subr.mxu0 0.0
    %271 = vmatpush1.xpose.msra.mxu0 0.0
    %272 = vmatprep.subr.mxu0 0.0
    %273 = vmatpush1.xpose.msra.mxu0 0.0
    %274 = vmatprep.subr.mxu0 0.0
    %275 = vmatpush1.xpose.msra.mxu0 0.0
    %276 = vmatprep.subr.mxu0 0.0
    %277 = vmatpush1.xpose.msra.mxu0 0.0
    %278 = vmatprep.subr.mxu0 0.0
    %279 = vmatpush1.xpose.msra.mxu0 0.0
    %280 = vmatprep.subr.mxu0 0.0
    %281 = vmatpush1.xpose.msra.mxu0 0.0
    %282 = vmatprep.subr.mxu0 0.0
    %283 = vmatpush1.xpose.msra.mxu0 0.0
    %284 = vmatprep.subr.mxu0 0.0
    %285 = vmatpush1.xpose.msra.mxu0 0.0
    %286 = vmatprep.subr.mxu0 0.0
    %287 = vmatpush1.xpose.msra.mxu0 0.0
    %288 = vmatprep.subr.mxu0 0.0
    %289 = vmatpush1.xpose.msra.mxu0 0.0
    %290 = vmatprep.subr.mxu0 0.0
    %291 = vmatpush1.xpose.msra.mxu0 0.0
    %292 = vmatprep.mubr.f32.mxu0 0.0
    %293 = vmatmul.mubr.f32.gmra.mrb[0].mxu0 %v220
    %v294 = vpop.f32.mrb[0].mxu0
    %v295 = vadd.f32 0.0, %v294
    %v296 = vpop.f32.mrb[0].mxu0
    %297 = vmatprep.mubr.f32.mxu0 0.0
    %298 = vmatmul.mubr.f32.gmra.mrb[0].mxu0 %v222
    %v299 = vpop.f32.mrb[0].mxu0
    %v300 = vadd.f32 0.0, %v299
    %v301 = vpop.f32.mrb[0].mxu0
    %302 = vdwg.mxu0
    %v303 = vmul.f32 %v295, 0.35355338
    %v304 = vmul.f32 %v300, 0.35355338
    %v305 = vadd.f32 %v303, %v59
    %v306 = vadd.f32 %v304, %v60
    %vm307 = vcmask 130048
    %v308 = vsel %vm307, %v305, -inf
    %309 = vmax.xlane.f32.xlu0 %v308
    %v310 = vpop.xlane.xlu0 %309
    %v311 = vsel %vm307, %v306, -inf
    %312 = vmax.xlane.f32.xlu0 %v311
    %v313 = vpop.xlane.xlu0 %312
    %v314 = vsub.f32 %v305, %v310
    %v315 = vsub.f32 %v306, %v313
    %v316 = vmul.f32 %v314, 1.442695
    %v317 = vpow.pop %v316
    %v318 = vmul.f32 %v315, 1.442695
    %v319 = vpow.pop %v318
    %v320 = vsel %vm307, %v317, 0.0
    %321 = vadd.xlane.f32.xlu0 %v320
    %v322 = vpop.xlane.xlu0 %321
    %v323 = vsel %vm307, %v319, 0.0
    %324 = vadd.xlane.f32.xlu0 %v323
    %v325 = vpop.xlane.xlu0 %324
    %v326 = vrcp.pop %v322
    %v327 = vrcp.pop %v325
    %v328 = vmul.f32 %v317, %v326
    %v329 = vmul.f32 %v319, %v327
    %330 = vrot.lane.b32.xlu0 %v205, 64
    %v331 = vpop.permute.xlu0 %330
    %332 = vrot.lane.b32.xlu0 %v210, 64
    %v333 = vpop.permute.xlu0 %332
    %v337 = vsel %vm307, %v328, 0
    %v340 = vsel %vm307, %v329, 0
    %342 = vmatprep.subr.mxu0 0.0
    %343 = vmatpush1.msra.mxu0 %v331
    %344 = vmatprep.subr.mxu0 0.0
    %345 = vmatpush1.msra.mxu0 %v333
    %346 = vmatprep.subr.mxu0 0.0
    %347 = vmatpush1.msra.mxu0 0.0
    %348 = vmatprep.subr.mxu0 0.0
    %349 = vmatpush1.msra.mxu0 0.0
    %350 = vmatprep.subr.mxu0 0.0
    %351 = vmatpush1.msra.mxu0 0.0
    %352 = vmatprep.subr.mxu0 0.0
    %353 = vmatpush1.msra.mxu0 0.0
    %354 = vmatprep.subr.mxu0 0.0
    %355 = vmatpush1.msra.mxu0 0.0
    %356 = vmatprep.subr.mxu0 0.0
    %357 = vmatpush1.msra.mxu0 0.0
    %358 = vmatprep.subr.mxu0 0.0
    %359 = vmatpush1.msra.mxu0 0.0
    %360 = vmatprep.subr.mxu0 0.0
    %361 = vmatpush1.msra.mxu0 0.0
    %362 = vmatprep.subr.mxu0 0.0
    %363 = vmatpush1.msra.mxu0 0.0
    %364 = vmatprep.subr.mxu0 0.0
    %365 = vmatpush1.msra.mxu0 0.0
    %366 = vmatprep.subr.mxu0 0.0
    %367 = vmatpush1.msra.mxu0 0.0
    %368 = vmatprep.subr.mxu0 0.0
    %369 = vmatpush1.msra.mxu0 0.0
    %370 = vmatprep.subr.mxu0 0.0
    %371 = vmatpush1.msra.mxu0 0.0
    %372 = vmatprep.subr.mxu0 0.0
    %373 = vmatpush1.msra.mxu0 0.0
    %374 = vmatprep.subr.mxu0 0.0
    %375 = vmatpush1.msra.mxu0 0.0
    %376 = vmatprep.subr.mxu0 0.0
    %377 = vmatpush1.msra.mxu0 0.0
    %378 = vmatprep.subr.mxu0 0.0
    %379 = vmatpush1.msra.mxu0 0.0
    %380 = vmatprep.subr.mxu0 0.0
    %381 = vmatpush1.msra.mxu0 0.0
    %382 = vmatprep.subr.mxu0 0.0
    %383 = vmatpush1.msra.mxu0 0.0
    %384 = vmatprep.subr.mxu0 0.0
    %385 = vmatpush1.msra.mxu0 0.0
    %386 = vmatprep.subr.mxu0 0.0
    %387 = vmatpush1.msra.mxu0 0.0
    %388 = vmatprep.subr.mxu0 0.0
    %389 = vmatpush1.msra.mxu0 0.0
    %390 = vmatprep.subr.mxu0 0.0
    %391 = vmatpush1.msra.mxu0 0.0
    %392 = vmatprep.subr.mxu0 0.0
    %393 = vmatpush1.msra.mxu0 0.0
    %394 = vmatprep.subr.mxu0 0.0
    %395 = vmatpush1.msra.mxu0 0.0
    %396 = vmatprep.subr.mxu0 0.0
    %397 = vmatpush1.msra.mxu0 0.0
    %398 = vmatprep.subr.mxu0 0.0
    %399 = vmatpush1.msra.mxu0 0.0
    %400 = vmatprep.subr.mxu0 0.0
    %401 = vmatpush1.msra.mxu0 0.0
    %402 = vmatprep.subr.mxu0 0.0
    %403 = vmatpush1.msra.mxu0 0.0
    %404 = vmatprep.subr.mxu0 0.0
    %405 = vmatpush1.msra.mxu0 0.0
    %406 = vmatprep.mubr.f32.mxu0 0.0
    %407 = vmatmul.mubr.f32.gmra.mrb[0].mxu0 %v337
    %v408 = vpop.f32.mrb[0].mxu0
    %v409 = vadd.f32 0.0, %v408
    %v410 = vpop.f32.mrb[0].mxu0
    %411 = vmatprep.mubr.f32.mxu0 0.0
    %412 = vmatmul.mubr.f32.gmra.mrb[0].mxu0 %v340
    %v413 = vpop.f32.mrb[0].mxu0
    %v414 = vadd.f32 0.0, %v413
    %v415 = vpop.f32.mrb[0].mxu0
    %416 = vdwg.mxu0
    %417 = vrot.lane.b32.xlu0 %v205, 120
    %v418 = vpop.permute.xlu0 %417
    %419 = vrot.lane.b32.xlu0 %v210, 120
    %v420 = vpop.permute.xlu0 %419
    %421 = vrot.lane.b32.xlu0 %v205, 88
    %v422 = vpop.permute.xlu0 %421
    %423 = vrot.lane.b32.xlu0 %v210, 88
    %v424 = vpop.permute.xlu0 %423
    %v425 = vsel %vm219, %v418, 0
    %v427 = vsel %vm219, %v420, 0
    %v429 = vsel %vm219, %v422, 0
    %v431 = vsel %vm219, %v424, 0
    %433 = vmatprep.subr.mxu0 0.0
    %434 = vmatpush1.xpose.msra.mxu0 %v429
    %435 = vmatprep.subr.mxu0 0.0
    %436 = vmatpush1.xpose.msra.mxu0 %v431
    %437 = vmatprep.subr.mxu0 0.0
    %438 = vmatpush1.xpose.msra.mxu0 0.0
    %439 = vmatprep.subr.mxu0 0.0
    %440 = vmatpush1.xpose.msra.mxu0 0.0
    %441 = vmatprep.subr.mxu0 0.0
    %442 = vmatpush1.xpose.msra.mxu0 0.0
    %443 = vmatprep.subr.mxu0 0.0
    %444 = vmatpush1.xpose.msra.mxu0 0.0
    %445 = vmatprep.subr.mxu0 0.0
    %446 = vmatpush1.xpose.msra.mxu0 0.0
    %447 = vmatprep.subr.mxu0 0.0
    %448 = vmatpush1.xpose.msra.mxu0 0.0
    %449 = vmatprep.subr.mxu0 0.0
    %450 = vmatpush1.xpose.msra.mxu0 0.0
    %451 = vmatprep.subr.mxu0 0.0
    %452 = vmatpush1.xpose.msra.mxu0 0.0
    %453 = vmatprep.subr.mxu0 0.0
    %454 = vmatpush1.xpose.msra.mxu0 0.0
    %455 = vmatprep.subr.mxu0 0.0
    %456 = vmatpush1.xpose.msra.mxu0 0.0
    %457 = vmatprep.subr.mxu0 0.0
    %458 = vmatpush1.xpose.msra.mxu0 0.0
    %459 = vmatprep.subr.mxu0 0.0
    %460 = vmatpush1.xpose.msra.mxu0 0.0
    %461 = vmatprep.subr.mxu0 0.0
    %462 = vmatpush1.xpose.msra.mxu0 0.0
    %463 = vmatprep.subr.mxu0 0.0
    %464 = vmatpush1.xpose.msra.mxu0 0.0
    %465 = vmatprep.subr.mxu0 0.0
    %466 = vmatpush1.xpose.msra.mxu0 0.0
    %467 = vmatprep.subr.mxu0 0.0
    %468 = vmatpush1.xpose.msra.mxu0 0.0
    %469 = vmatprep.subr.mxu0 0.0
    %470 = vmatpush1.xpose.msra.mxu0 0.0
    %471 = vmatprep.subr.mxu0 0.0
    %472 = vmatpush1.xpose.msra.mxu0 0.0
    %473 = vmatprep.subr.mxu0 0.0
    %474 = vmatpush1.xpose.msra.mxu0 0.0
    %475 = vmatprep.subr.mxu0 0.0
    %476 = vmatpush1.xpose.msra.mxu0 0.0
    %477 = vmatprep.subr.mxu0 0.0
    %478 = vmatpush1.xpose.msra.mxu0 0.0
    %479 = vmatprep.subr.mxu0 0.0
    %480 = vmatpush1.xpose.msra.mxu0 0.0
    %481 = vmatprep.subr.mxu0 0.0
    %482 = vmatpush1.xpose.msra.mxu0 0.0
    %483 = vmatprep.subr.mxu0 0.0
    %484 = vmatpush1.xpose.msra.mxu0 0.0
    %485 = vmatprep.subr.mxu0 0.0
    %486 = vmatpush1.xpose.msra.mxu0 0.0
    %487 = vmatprep.subr.mxu0 0.0
    %488 = vmatpush1.xpose.msra.mxu0 0.0
    %489 = vmatprep.subr.mxu0 0.0
    %490 = vmatpush1.xpose.msra.mxu0 0.0
    %491 = vmatprep.subr.mxu0 0.0
    %492 = vmatpush1.xpose.msra.mxu0 0.0
    %493 = vmatprep.subr.mxu0 0.0
    %494 = vmatpush1.xpose.msra.mxu0 0.0
    %495 = vmatprep.subr.mxu0 0.0
    %496 = vmatpush1.xpose.msra.mxu0 0.0
    %497 = vmatprep.mubr.f32.mxu0 0.0
    %498 = vmatmul.mubr.f32.gmra.mrb[0].mxu0 %v425
    %v499 = vpop.f32.mrb[0].mxu0
    %v500 = vadd.f32 0.0, %v499
    %v501 = vpop.f32.mrb[0].mxu0
    %502 = vmatprep.mubr.f32.mxu0 0.0
    %503 = vmatmul.mubr.f32.gmra.mrb[0].mxu0 %v427
    %v504 = vpop.f32.mrb[0].mxu0
    %v505 = vadd.f32 0.0, %v504
    %v506 = vpop.f32.mrb[0].mxu0
    %507 = vdwg.mxu0
    %v508 = vmul.f32 %v500, 0.35355338
    %v509 = vmul.f32 %v505, 0.35355338
    %v510 = vadd.f32 %v508, %v59
    %v511 = vadd.f32 %v509, %v60
    %v512 = vsel %vm307, %v510, -inf
    %513 = vmax.xlane.f32.xlu0 %v512
    %v514 = vpop.xlane.xlu0 %513
    %v515 = vsel %vm307, %v511, -inf
    %516 = vmax.xlane.f32.xlu0 %v515
    %v517 = vpop.xlane.xlu0 %516
    %v518 = vsub.f32 %v510, %v514
    %v519 = vsub.f32 %v511, %v517
    %v520 = vmul.f32 %v518, 1.442695
    %v521 = vpow.pop %v520
    %v522 = vmul.f32 %v519, 1.442695
    %v523 = vpow.pop %v522
    %v524 = vsel %vm307, %v521, 0.0
    %525 = vadd.xlane.f32.xlu0 %v524
    %v526 = vpop.xlane.xlu0 %525
    %v527 = vsel %vm307, %v523, 0.0
    %528 = vadd.xlane.f32.xlu0 %v527
    %v529 = vpop.xlane.xlu0 %528
    %v530 = vrcp.pop %v526
    %v531 = vrcp.pop %v529
    %v532 = vmul.f32 %v521, %v530
    %v533 = vmul.f32 %v523, %v531
    %534 = vrot.lane.b32.xlu0 %v205, 56
    %v535 = vpop.permute.xlu0 %534
    %536 = vrot.lane.b32.xlu0 %v210, 56
    %v537 = vpop.permute.xlu0 %536
    %v541 = vsel %vm307, %v532, 0
    %v544 = vsel %vm307, %v533, 0
    %546 = vmatprep.subr.mxu0 0.0
    %547 = vmatpush1.msra.mxu0 %v535
    %548 = vmatprep.subr.mxu0 0.0
    %549 = vmatpush1.msra.mxu0 %v537
    %550 = vmatprep.subr.mxu0 0.0
    %551 = vmatpush1.msra.mxu0 0.0
    %552 = vmatprep.subr.mxu0 0.0
    %553 = vmatpush1.msra.mxu0 0.0
    %554 = vmatprep.subr.mxu0 0.0
    %555 = vmatpush1.msra.mxu0 0.0
    %556 = vmatprep.subr.mxu0 0.0
    %557 = vmatpush1.msra.mxu0 0.0
    %558 = vmatprep.subr.mxu0 0.0
    %559 = vmatpush1.msra.mxu0 0.0
    %560 = vmatprep.subr.mxu0 0.0
    %561 = vmatpush1.msra.mxu0 0.0
    %562 = vmatprep.subr.mxu0 0.0
    %563 = vmatpush1.msra.mxu0 0.0
    %564 = vmatprep.subr.mxu0 0.0
    %565 = vmatpush1.msra.mxu0 0.0
    %566 = vmatprep.subr.mxu0 0.0
    %567 = vmatpush1.msra.mxu0 0.0
    %568 = vmatprep.subr.mxu0 0.0
    %569 = vmatpush1.msra.mxu0 0.0
    %570 = vmatprep.subr.mxu0 0.0
    %571 = vmatpush1.msra.mxu0 0.0
    %572 = vmatprep.subr.mxu0 0.0
    %573 = vmatpush1.msra.mxu0 0.0
    %574 = vmatprep.subr.mxu0 0.0
    %575 = vmatpush1.msra.mxu0 0.0
    %576 = vmatprep.subr.mxu0 0.0
    %577 = vmatpush1.msra.mxu0 0.0
    %578 = vmatprep.subr.mxu0 0.0
    %579 = vmatpush1.msra.mxu0 0.0
    %580 = vmatprep.subr.mxu0 0.0
    %581 = vmatpush1.msra.mxu0 0.0
    %582 = vmatprep.subr.mxu0 0.0
    %583 = vmatpush1.msra.mxu0 0.0
    %584 = vmatprep.subr.mxu0 0.0
    %585 = vmatpush1.msra.mxu0 0.0
    %586 = vmatprep.subr.mxu0 0.0
    %587 = vmatpush1.msra.mxu0 0.0
    %588 = vmatprep.subr.mxu0 0.0
    %589 = vmatpush1.msra.mxu0 0.0
    %590 = vmatprep.subr.mxu0 0.0
    %591 = vmatpush1.msra.mxu0 0.0
    %592 = vmatprep.subr.mxu0 0.0
    %593 = vmatpush1.msra.mxu0 0.0
    %594 = vmatprep.subr.mxu0 0.0
    %595 = vmatpush1.msra.mxu0 0.0
    %596 = vmatprep.subr.mxu0 0.0
    %597 = vmatpush1.msra.mxu0 0.0
    %598 = vmatprep.subr.mxu0 0.0
    %599 = vmatpush1.msra.mxu0 0.0
    %600 = vmatprep.subr.mxu0 0.0
    %601 = vmatpush1.msra.mxu0 0.0
    %602 = vmatprep.subr.mxu0 0.0
    %603 = vmatpush1.msra.mxu0 0.0
    %604 = vmatprep.subr.mxu0 0.0
    %605 = vmatpush1.msra.mxu0 0.0
    %606 = vmatprep.subr.mxu0 0.0
    %607 = vmatpush1.msra.mxu0 0.0
    %608 = vmatprep.subr.mxu0 0.0
    %609 = vmatpush1.msra.mxu0 0.0
    %610 = vmatprep.mubr.f32.mxu0 0.0
    %611 = vmatmul.mubr.f32.gmra.mrb[0].mxu0 %v541
    %v612 = vpop.f32.mrb[0].mxu0
    %v613 = vadd.f32 0.0, %v612
    %v614 = vpop.f32.mrb[0].mxu0
    %615 = vmatprep.mubr.f32.mxu0 0.0
    %616 = vmatmul.mubr.f32.gmra.mrb[0].mxu0 %v544
    %v617 = vpop.f32.mrb[0].mxu0
    %v618 = vadd.f32 0.0, %v617
    %v619 = vpop.f32.mrb[0].mxu0
    %620 = vdwg.mxu0
    %621 = vrot.lane.b32.xlu0 %v205, 112
    %v622 = vpop.permute.xlu0 %621
    %623 = vrot.lane.b32.xlu0 %v210, 112
    %v624 = vpop.permute.xlu0 %623
    %625 = vrot.lane.b32.xlu0 %v205, 80
    %v626 = vpop.permute.xlu0 %625
    %627 = vrot.lane.b32.xlu0 %v210, 80
    %v628 = vpop.permute.xlu0 %627
    %v629 = vsel %vm219, %v622, 0
    %v631 = vsel %vm219, %v624, 0
    %v633 = vsel %vm219, %v626, 0
    %v635 = vsel %vm219, %v628, 0
    %637 = vmatprep.subr.mxu0 0.0
    %638 = vmatpush1.xpose.msra.mxu0 %v633
    %639 = vmatprep.subr.mxu0 0.0
    %640 = vmatpush1.xpose.msra.mxu0 %v635
    %641 = vmatprep.subr.mxu0 0.0
    %642 = vmatpush1.xpose.msra.mxu0 0.0
    %643 = vmatprep.subr.mxu0 0.0
    %644 = vmatpush1.xpose.msra.mxu0 0.0
    %645 = vmatprep.subr.mxu0 0.0
    %646 = vmatpush1.xpose.msra.mxu0 0.0
    %647 = vmatprep.subr.mxu0 0.0
    %648 = vmatpush1.xpose.msra.mxu0 0.0
    %649 = vmatprep.subr.mxu0 0.0
    %650 = vmatpush1.xpose.msra.mxu0 0.0
    %651 = vmatprep.subr.mxu0 0.0
    %652 = vmatpush1.xpose.msra.mxu0 0.0
    %653 = vmatprep.subr.mxu0 0.0
    %654 = vmatpush1.xpose.msra.mxu0 0.0
    %655 = vmatprep.subr.mxu0 0.0
    %656 = vmatpush1.xpose.msra.mxu0 0.0
    %657 = vmatprep.subr.mxu0 0.0
    %658 = vmatpush1.xpose.msra.mxu0 0.0
    %659 = vmatprep.subr.mxu0 0.0
    %660 = vmatpush1.xpose.msra.mxu0 0.0
    %661 = vmatprep.subr.mxu0 0.0
    %662 = vmatpush1.xpose.msra.mxu0 0.0
    %663 = vmatprep.subr.mxu0 0.0
    %664 = vmatpush1.xpose.msra.mxu0 0.0
    %665 = vmatprep.subr.mxu0 0.0
    %666 = vmatpush1.xpose.msra.mxu0 0.0
    %667 = vmatprep.subr.mxu0 0.0
    %668 = vmatpush1.xpose.msra.mxu0 0.0
    %669 = vmatprep.subr.mxu0 0.0
    %670 = vmatpush1.xpose.msra.mxu0 0.0
    %671 = vmatprep.subr.mxu0 0.0
    %672 = vmatpush1.xpose.msra.mxu0 0.0
    %673 = vmatprep.subr.mxu0 0.0
    %674 = vmatpush1.xpose.msra.mxu0 0.0
    %675 = vmatprep.subr.mxu0 0.0
    %676 = vmatpush1.xpose.msra.mxu0 0.0
    %677 = vmatprep.subr.mxu0 0.0
    %678 = vmatpush1.xpose.msra.mxu0 0.0
    %679 = vmatprep.subr.mxu0 0.0
    %680 = vmatpush1.xpose.msra.mxu0 0.0
    %681 = vmatprep.subr.mxu0 0.0
    %682 = vmatpush1.xpose.msra.mxu0 0.0
    %683 = vmatprep.subr.mxu0 0.0
    %684 = vmatpush1.xpose.msra.mxu0 0.0
    %685 = vmatprep.subr.mxu0 0.0
    %686 = vmatpush1.xpose.msra.mxu0 0.0
    %687 = vmatprep.subr.mxu0 0.0
    %688 = vmatpush1.xpose.msra.mxu0 0.0
    %689 = vmatprep.subr.mxu0 0.0
    %690 = vmatpush1.xpose.msra.mxu0 0.0
    %691 = vmatprep.subr.mxu0 0.0
    %692 = vmatpush1.xpose.msra.mxu0 0.0
    %693 = vmatprep.subr.mxu0 0.0
    %694 = vmatpush1.xpose.msra.mxu0 0.0
    %695 = vmatprep.subr.mxu0 0.0
    %696 = vmatpush1.xpose.msra.mxu0 0.0
    %697 = vmatprep.subr.mxu0 0.0
    %698 = vmatpush1.xpose.msra.mxu0 0.0
    %699 = vmatprep.subr.mxu0 0.0
    %700 = vmatpush1.xpose.msra.mxu0 0.0
    %701 = vmatprep.mubr.f32.mxu0 0.0
    %702 = vmatmul.mubr.f32.gmra.mrb[0].mxu0 %v629
    %v703 = vpop.f32.mrb[0].mxu0
    %v704 = vadd.f32 0.0, %v703
    %v705 = vpop.f32.mrb[0].mxu0
    %706 = vmatprep.mubr.f32.mxu0 0.0
    %707 = vmatmul.mubr.f32.gmra.mrb[0].mxu0 %v631
    %v708 = vpop.f32.mrb[0].mxu0
    %v709 = vadd.f32 0.0, %v708
    %v710 = vpop.f32.mrb[0].mxu0
    %711 = vdwg.mxu0
    %v712 = vmul.f32 %v704, 0.35355338
    %v713 = vmul.f32 %v709, 0.35355338
    %v714 = vadd.f32 %v712, %v59
    %v715 = vadd.f32 %v713, %v60
    %v716 = vsel %vm307, %v714, -inf
    %717 = vmax.xlane.f32.xlu0 %v716
    %v718 = vpop.xlane.xlu0 %717
    %v719 = vsel %vm307, %v715, -inf
    %720 = vmax.xlane.f32.xlu0 %v719
    %v721 = vpop.xlane.xlu0 %720
    %v722 = vsub.f32 %v714, %v718
    %v723 = vsub.f32 %v715, %v721
    %v724 = vmul.f32 %v722, 1.442695
    %v725 = vpow.pop %v724
    %v726 = vmul.f32 %v723, 1.442695
    %v727 = vpow.pop %v726
    %v728 = vsel %vm307, %v725, 0.0
    %729 = vadd.xlane.f32.xlu0 %v728
    %v730 = vpop.xlane.xlu0 %729
    %v731 = vsel %vm307, %v727, 0.0
    %732 = vadd.xlane.f32.xlu0 %v731
    %v733 = vpop.xlane.xlu0 %732
    %v734 = vrcp.pop %v730
    %v735 = vrcp.pop %v733
    %v736 = vmul.f32 %v725, %v734
    %v737 = vmul.f32 %v727, %v735
    %738 = vrot.lane.b32.xlu0 %v205, 48
    %v739 = vpop.permute.xlu0 %738
    %740 = vrot.lane.b32.xlu0 %v210, 48
    %v741 = vpop.permute.xlu0 %740
    %v745 = vsel %vm307, %v736, 0
    %v748 = vsel %vm307, %v737, 0
    %750 = vmatprep.subr.mxu0 0.0
    %751 = vmatpush1.msra.mxu0 %v739
    %752 = vmatprep.subr.mxu0 0.0
    %753 = vmatpush1.msra.mxu0 %v741
    %754 = vmatprep.subr.mxu0 0.0
    %755 = vmatpush1.msra.mxu0 0.0
    %756 = vmatprep.subr.mxu0 0.0
    %757 = vmatpush1.msra.mxu0 0.0
    %758 = vmatprep.subr.mxu0 0.0
    %759 = vmatpush1.msra.mxu0 0.0
    %760 = vmatprep.subr.mxu0 0.0
    %761 = vmatpush1.msra.mxu0 0.0
    %762 = vmatprep.subr.mxu0 0.0
    %763 = vmatpush1.msra.mxu0 0.0
    %764 = vmatprep.subr.mxu0 0.0
    %765 = vmatpush1.msra.mxu0 0.0
    %766 = vmatprep.subr.mxu0 0.0
    %767 = vmatpush1.msra.mxu0 0.0
    %768 = vmatprep.subr.mxu0 0.0
    %769 = vmatpush1.msra.mxu0 0.0
    %770 = vmatprep.subr.mxu0 0.0
    %771 = vmatpush1.msra.mxu0 0.0
    %772 = vmatprep.subr.mxu0 0.0
    %773 = vmatpush1.msra.mxu0 0.0
    %774 = vmatprep.subr.mxu0 0.0
    %775 = vmatpush1.msra.mxu0 0.0
    %776 = vmatprep.subr.mxu0 0.0
    %777 = vmatpush1.msra.mxu0 0.0
    %778 = vmatprep.subr.mxu0 0.0
    %779 = vmatpush1.msra.mxu0 0.0
    %780 = vmatprep.subr.mxu0 0.0
    %781 = vmatpush1.msra.mxu0 0.0
    %782 = vmatprep.subr.mxu0 0.0
    %783 = vmatpush1.msra.mxu0 0.0
    %784 = vmatprep.subr.mxu0 0.0
    %785 = vmatpush1.msra.mxu0 0.0
    %786 = vmatprep.subr.mxu0 0.0
    %787 = vmatpush1.msra.mxu0 0.0
    %788 = vmatprep.subr.mxu0 0.0
    %789 = vmatpush1.msra.mxu0 0.0
    %790 = vmatprep.subr.mxu0 0.0
    %791 = vmatpush1.msra.mxu0 0.0
    %792 = vmatprep.subr.mxu0 0.0
    %793 = vmatpush1.msra.mxu0 0.0
    %794 = vmatprep.subr.mxu0 0.0
    %795 = vmatpush1.msra.mxu0 0.0
    %796 = vmatprep.subr.mxu0 0.0
    %797 = vmatpush1.msra.mxu0 0.0
    %798 = vmatprep.subr.mxu0 0.0
    %799 = vmatpush1.msra.mxu0 0.0
    %800 = vmatprep.subr.mxu0 0.0
    %801 = vmatpush1.msra.mxu0 0.0
    %802 = vmatprep.subr.mxu0 0.0
    %803 = vmatpush1.msra.mxu0 0.0
    %804 = vmatprep.subr.mxu0 0.0
    %805 = vmatpush1.msra.mxu0 0.0
    %806 = vmatprep.subr.mxu0 0.0
    %807 = vmatpush1.msra.mxu0 0.0
    %808 = vmatprep.subr.mxu0 0.0
    %809 = vmatpush1.msra.mxu0 0.0
    %810 = vmatprep.subr.mxu0 0.0
    %811 = vmatpush1.msra.mxu0 0.0
    %812 = vmatprep.subr.mxu0 0.0
    %813 = vmatpush1.msra.mxu0 0.0
    %814 = vmatprep.mubr.f32.mxu0 0.0
    %815 = vmatmul.mubr.f32.gmra.mrb[0].mxu0 %v745
    %v816 = vpop.f32.mrb[0].mxu0
    %v817 = vadd.f32 0.0, %v816
    %v818 = vpop.f32.mrb[0].mxu0
    %819 = vmatprep.mubr.f32.mxu0 0.0
    %820 = vmatmul.mubr.f32.gmra.mrb[0].mxu0 %v748
    %v821 = vpop.f32.mrb[0].mxu0
    %v822 = vadd.f32 0.0, %v821
    %v823 = vpop.f32.mrb[0].mxu0
    %824 = vdwg.mxu0
    %825 = vrot.lane.b32.xlu0 %v205, 104
    %v826 = vpop.permute.xlu0 %825
    %827 = vrot.lane.b32.xlu0 %v210, 104
    %v828 = vpop.permute.xlu0 %827
    %829 = vrot.lane.b32.xlu0 %v205, 72
    %v830 = vpop.permute.xlu0 %829
    %831 = vrot.lane.b32.xlu0 %v210, 72
    %v832 = vpop.permute.xlu0 %831
    %v833 = vsel %vm219, %v826, 0
    %v835 = vsel %vm219, %v828, 0
    %v837 = vsel %vm219, %v830, 0
    %v839 = vsel %vm219, %v832, 0
    %841 = vmatprep.subr.mxu0 0.0
    %842 = vmatpush1.xpose.msra.mxu0 %v837
    %843 = vmatprep.subr.mxu0 0.0
    %844 = vmatpush1.xpose.msra.mxu0 %v839
    %845 = vmatprep.subr.mxu0 0.0
    %846 = vmatpush1.xpose.msra.mxu0 0.0
    %847 = vmatprep.subr.mxu0 0.0
    %848 = vmatpush1.xpose.msra.mxu0 0.0
    %849 = vmatprep.subr.mxu0 0.0
    %850 = vmatpush1.xpose.msra.mxu0 0.0
    %851 = vmatprep.subr.mxu0 0.0
    %852 = vmatpush1.xpose.msra.mxu0 0.0
    %853 = vmatprep.subr.mxu0 0.0
    %854 = vmatpush1.xpose.msra.mxu0 0.0
    %855 = vmatprep.subr.mxu0 0.0
    %856 = vmatpush1.xpose.msra.mxu0 0.0
    %857 = vmatprep.subr.mxu0 0.0
    %858 = vmatpush1.xpose.msra.mxu0 0.0
    %859 = vmatprep.subr.mxu0 0.0
    %860 = vmatpush1.xpose.msra.mxu0 0.0
    %861 = vmatprep.subr.mxu0 0.0
    %862 = vmatpush1.xpose.msra.mxu0 0.0
    %863 = vmatprep.subr.mxu0 0.0
    %864 = vmatpush1.xpose.msra.mxu0 0.0
    %865 = vmatprep.subr.mxu0 0.0
    %866 = vmatpush1.xpose.msra.mxu0 0.0
    %867 = vmatprep.subr.mxu0 0.0
    %868 = vmatpush1.xpose.msra.mxu0 0.0
    %869 = vmatprep.subr.mxu0 0.0
    %870 = vmatpush1.xpose.msra.mxu0 0.0
    %871 = vmatprep.subr.mxu0 0.0
    %872 = vmatpush1.xpose.msra.mxu0 0.0
    %873 = vmatprep.subr.mxu0 0.0
    %874 = vmatpush1.xpose.msra.mxu0 0.0
    %875 = vmatprep.subr.mxu0 0.0
    %876 = vmatpush1.xpose.msra.mxu0 0.0
    %877 = vmatprep.subr.mxu0 0.0
    %878 = vmatpush1.xpose.msra.mxu0 0.0
    %879 = vmatprep.subr.mxu0 0.0
    %880 = vmatpush1.xpose.msra.mxu0 0.0
    %881 = vmatprep.subr.mxu0 0.0
    %882 = vmatpush1.xpose.msra.mxu0 0.0
    %883 = vmatprep.subr.mxu0 0.0
    %884 = vmatpush1.xpose.msra.mxu0 0.0
    %885 = vmatprep.subr.mxu0 0.0
    %886 = vmatpush1.xpose.msra.mxu0 0.0
    %887 = vmatprep.subr.mxu0 0.0
    %888 = vmatpush1.xpose.msra.mxu0 0.0
    %889 = vmatprep.subr.mxu0 0.0
    %890 = vmatpush1.xpose.msra.mxu0 0.0
    %891 = vmatprep.subr.mxu0 0.0
    %892 = vmatpush1.xpose.msra.mxu0 0.0
    %893 = vmatprep.subr.mxu0 0.0
    %894 = vmatpush1.xpose.msra.mxu0 0.0
    %895 = vmatprep.subr.mxu0 0.0
    %896 = vmatpush1.xpose.msra.mxu0 0.0
    %897 = vmatprep.subr.mxu0 0.0
    %898 = vmatpush1.xpose.msra.mxu0 0.0
    %899 = vmatprep.subr.mxu0 0.0
    %900 = vmatpush1.xpose.msra.mxu0 0.0
    %901 = vmatprep.subr.mxu0 0.0
    %902 = vmatpush1.xpose.msra.mxu0 0.0
    %903 = vmatprep.subr.mxu0 0.0
    %904 = vmatpush1.xpose.msra.mxu0 0.0
    %905 = vmatprep.mubr.f32.mxu0 0.0
    %906 = vmatmul.mubr.f32.gmra.mrb[0].mxu0 %v833
    %v907 = vpop.f32.mrb[0].mxu0
    %v908 = vadd.f32 0.0, %v907
    %v909 = vpop.f32.mrb[0].mxu0
    %910 = vmatprep.mubr.f32.mxu0 0.0
    %911 = vmatmul.mubr.f32.gmra.mrb[0].mxu0 %v835
    %v912 = vpop.f32.mrb[0].mxu0
    %v913 = vadd.f32 0.0, %v912
    %v914 = vpop.f32.mrb[0].mxu0
    %915 = vdwg.mxu0
    %v916 = vmul.f32 %v908, 0.35355338
    %v917 = vmul.f32 %v913, 0.35355338
    %v918 = vadd.f32 %v916, %v59
    %v919 = vadd.f32 %v917, %v60
    %v920 = vsel %vm307, %v918, -inf
    %921 = vmax.xlane.f32.xlu0 %v920
    %v922 = vpop.xlane.xlu0 %921
    %v923 = vsel %vm307, %v919, -inf
    %924 = vmax.xlane.f32.xlu0 %v923
    %v925 = vpop.xlane.xlu0 %924
    %v926 = vsub.f32 %v918, %v922
    %v927 = vsub.f32 %v919, %v925
    %v928 = vmul.f32 %v926, 1.442695
    %v929 = vpow.pop %v928
    %v930 = vmul.f32 %v927, 1.442695
    %v931 = vpow.pop %v930
    %v932 = vsel %vm307, %v929, 0.0
    %933 = vadd.xlane.f32.xlu0 %v932
    %v934 = vpop.xlane.xlu0 %933
    %v935 = vsel %vm307, %v931, 0.0
    %936 = vadd.xlane.f32.xlu0 %v935
    %v937 = vpop.xlane.xlu0 %936
    %v938 = vrcp.pop %v934
    %v939 = vrcp.pop %v937
    %v940 = vmul.f32 %v929, %v938
    %v941 = vmul.f32 %v931, %v939
    %942 = vrot.lane.b32.xlu0 %v205, 40
    %v943 = vpop.permute.xlu0 %942
    %944 = vrot.lane.b32.xlu0 %v210, 40
    %v945 = vpop.permute.xlu0 %944
    %v949 = vsel %vm307, %v940, 0
    %v952 = vsel %vm307, %v941, 0
    %954 = vmatprep.subr.mxu0 0.0
    %955 = vmatpush1.msra.mxu0 %v943
    %956 = vmatprep.subr.mxu0 0.0
    %957 = vmatpush1.msra.mxu0 %v945
    %958 = vmatprep.subr.mxu0 0.0
    %959 = vmatpush1.msra.mxu0 0.0
    %960 = vmatprep.subr.mxu0 0.0
    %961 = vmatpush1.msra.mxu0 0.0
    %962 = vmatprep.subr.mxu0 0.0
    %963 = vmatpush1.msra.mxu0 0.0
    %964 = vmatprep.subr.mxu0 0.0
    %965 = vmatpush1.msra.mxu0 0.0
    %966 = vmatprep.subr.mxu0 0.0
    %967 = vmatpush1.msra.mxu0 0.0
    %968 = vmatprep.subr.mxu0 0.0
    %969 = vmatpush1.msra.mxu0 0.0
    %970 = vmatprep.subr.mxu0 0.0
    %971 = vmatpush1.msra.mxu0 0.0
    %972 = vmatprep.subr.mxu0 0.0
    %973 = vmatpush1.msra.mxu0 0.0
    %974 = vmatprep.subr.mxu0 0.0
    %975 = vmatpush1.msra.mxu0 0.0
    %976 = vmatprep.subr.mxu0 0.0
    %977 = vmatpush1.msra.mxu0 0.0
    %978 = vmatprep.subr.mxu0 0.0
    %979 = vmatpush1.msra.mxu0 0.0
    %980 = vmatprep.subr.mxu0 0.0
    %981 = vmatpush1.msra.mxu0 0.0
    %982 = vmatprep.subr.mxu0 0.0
    %983 = vmatpush1.msra.mxu0 0.0
    %984 = vmatprep.subr.mxu0 0.0
    %985 = vmatpush1.msra.mxu0 0.0
    %986 = vmatprep.subr.mxu0 0.0
    %987 = vmatpush1.msra.mxu0 0.0
    %988 = vmatprep.subr.mxu0 0.0
    %989 = vmatpush1.msra.mxu0 0.0
    %990 = vmatprep.subr.mxu0 0.0
    %991 = vmatpush1.msra.mxu0 0.0
    %992 = vmatprep.subr.mxu0 0.0
    %993 = vmatpush1.msra.mxu0 0.0
    %994 = vmatprep.subr.mxu0 0.0
    %995 = vmatpush1.msra.mxu0 0.0
    %996 = vmatprep.subr.mxu0 0.0
    %997 = vmatpush1.msra.mxu0 0.0
    %998 = vmatprep.subr.mxu0 0.0
    %999 = vmatpush1.msra.mxu0 0.0
    %1000 = vmatprep.subr.mxu0 0.0
    %1001 = vmatpush1.msra.mxu0 0.0
    %1002 = vmatprep.subr.mxu0 0.0
    %1003 = vmatpush1.msra.mxu0 0.0
    %1004 = vmatprep.subr.mxu0 0.0
    %1005 = vmatpush1.msra.mxu0 0.0
    %1006 = vmatprep.subr.mxu0 0.0
    %1007 = vmatpush1.msra.mxu0 0.0
    %1008 = vmatprep.subr.mxu0 0.0
    %1009 = vmatpush1.msra.mxu0 0.0
    %1010 = vmatprep.subr.mxu0 0.0
    %1011 = vmatpush1.msra.mxu0 0.0
    %1012 = vmatprep.subr.mxu0 0.0
    %1013 = vmatpush1.msra.mxu0 0.0
    %1014 = vmatprep.subr.mxu0 0.0
    %1015 = vmatpush1.msra.mxu0 0.0
    %1016 = vmatprep.subr.mxu0 0.0
    %1017 = vmatpush1.msra.mxu0 0.0
    %1018 = vmatprep.mubr.f32.mxu0 0.0
    %1019 = vmatmul.mubr.f32.gmra.mrb[0].mxu0 %v949
    %v1020 = vpop.f32.mrb[0].mxu0
    %v1021 = vadd.f32 0.0, %v1020
    %v1022 = vpop.f32.mrb[0].mxu0
    %1023 = vmatprep.mubr.f32.mxu0 0.0
    %1024 = vmatmul.mubr.f32.gmra.mrb[0].mxu0 %v952
    %v1025 = vpop.f32.mrb[0].mxu0
    %v1026 = vadd.f32 0.0, %v1025
    %v1027 = vpop.f32.mrb[0].mxu0
    %1028 = vdwg.mxu0
    %1031 = vrot.lane.b32.xlu0 %v613, 8
    %v1032 = vpop.permute.xlu0 %1031
    %1033 = vrot.lane.b32.xlu0 %v618, 8
    %v1034 = vpop.permute.xlu0 %1033
    %1039 = vrot.lane.b32.xlu0 %v817, 16
    %v1040 = vpop.permute.xlu0 %1039
    %1041 = vrot.lane.b32.xlu0 %v822, 16
    %v1042 = vpop.permute.xlu0 %1041
    %1047 = vrot.lane.b32.xlu0 %v1021, 24
    %v1048 = vpop.permute.xlu0 %1047
    %1049 = vrot.lane.b32.xlu0 %v1026, 24
    %v1050 = vpop.permute.xlu0 %1049
    %v1053 = vsel %vm219, %v409, %v1032
    %v1054 = vsel %vm219, %v414, %v1034
    %v1055 = vsel %vm307, %v1053, %v1040
    %v1056 = vsel %vm307, %v1054, %v1042
    %vm1057 = vcmask 195584
    %v1058 = vsel %vm1057, %v1055, %v1048
    %v1059 = vsel %vm1057, %v1056, %v1050
    %v1060 = vld [vmem:[%s4] sm:$0xff]
    %v1061 = vld [vmem:[%s4 + $0x8] sm:$0xff]
    %v1062 = vld [vmem:[%s4 + $0x10] sm:$0xff]
    %v1063 = vld [vmem:[%s4 + $0x18] sm:$0xff]
    %v1064 = vld [vmem:[%s5] sm:$0x1]
    %v1066 = vlaneseq
    %v1067 = vshrl.u32 %v1066, 7
    %v1068 = vsub.s32 0, %v1067
    %v1069 = vrot.slane %v1064, %v1068
    %v1072 = vsel %vm63, %v1058, 0
    %v1075 = vsel %vm63, %v1059, 0
    %1077 = vmatprep.subr.mxu0 0.0
    %1078 = vmatpush1.msra.mxu0 %v1060
    %1079 = vmatprep.subr.mxu0 0.0
    %1080 = vmatpush1.msra.mxu0 %v1061
    %1081 = vmatprep.subr.mxu0 0.0
    %1082 = vmatpush1.msra.mxu0 %v1062
    %1083 = vmatprep.subr.mxu0 0.0
    %1084 = vmatpush1.msra.mxu0 %v1063
    %1085 = vmatprep.subr.mxu0 0.0
    %1086 = vmatpush1.msra.mxu0 0.0
    %1087 = vmatprep.subr.mxu0 0.0
    %1088 = vmatpush1.msra.mxu0 0.0
    %1089 = vmatprep.subr.mxu0 0.0
    %1090 = vmatpush1.msra.mxu0 0.0
    %1091 = vmatprep.subr.mxu0 0.0
    %1092 = vmatpush1.msra.mxu0 0.0
    %1093 = vmatprep.subr.mxu0 0.0
    %1094 = vmatpush1.msra.mxu0 0.0
    %1095 = vmatprep.subr.mxu0 0.0
    %1096 = vmatpush1.msra.mxu0 0.0
    %1097 = vmatprep.subr.mxu0 0.0
    %1098 = vmatpush1.msra.mxu0 0.0
    %1099 = vmatprep.subr.mxu0 0.0
    %1100 = vmatpush1.msra.mxu0 0.0
    %1101 = vmatprep.subr.mxu0 0.0
    %1102 = vmatpush1.msra.mxu0 0.0
    %1103 = vmatprep.subr.mxu0 0.0
    %1104 = vmatpush1.msra.mxu0 0.0
    %1105 = vmatprep.subr.mxu0 0.0
    %1106 = vmatpush1.msra.mxu0 0.0
    %1107 = vmatprep.subr.mxu0 0.0
    %1108 = vmatpush1.msra.mxu0 0.0
    %1109 = vmatprep.subr.mxu0 0.0
    %1110 = vmatpush1.msra.mxu0 0.0
    %1111 = vmatprep.subr.mxu0 0.0
    %1112 = vmatpush1.msra.mxu0 0.0
    %1113 = vmatprep.subr.mxu0 0.0
    %1114 = vmatpush1.msra.mxu0 0.0
    %1115 = vmatprep.subr.mxu0 0.0
    %1116 = vmatpush1.msra.mxu0 0.0
    %1117 = vmatprep.subr.mxu0 0.0
    %1118 = vmatpush1.msra.mxu0 0.0
    %1119 = vmatprep.subr.mxu0 0.0
    %1120 = vmatpush1.msra.mxu0 0.0
    %1121 = vmatprep.subr.mxu0 0.0
    %1122 = vmatpush1.msra.mxu0 0.0
    %1123 = vmatprep.subr.mxu0 0.0
    %1124 = vmatpush1.msra.mxu0 0.0
    %1125 = vmatprep.subr.mxu0 0.0
    %1126 = vmatpush1.msra.mxu0 0.0
    %1127 = vmatprep.subr.mxu0 0.0
    %1128 = vmatpush1.msra.mxu0 0.0
    %1129 = vmatprep.subr.mxu0 0.0
    %1130 = vmatpush1.msra.mxu0 0.0
    %1131 = vmatprep.subr.mxu0 0.0
    %1132 = vmatpush1.msra.mxu0 0.0
    %1133 = vmatprep.subr.mxu0 0.0
    %1134 = vmatpush1.msra.mxu0 0.0
    %1135 = vmatprep.subr.mxu0 0.0
    %1136 = vmatpush1.msra.mxu0 0.0
    %1137 = vmatprep.subr.mxu0 0.0
    %1138 = vmatpush1.msra.mxu0 0.0
    %1139 = vmatprep.subr.mxu0 0.0
    %1140 = vmatpush1.msra.mxu0 0.0
    %1141 = vmatprep.mubr.f32.mxu0 0.0
    %1142 = vmatmul.mubr.f32.gmra.mrb[0].mxu0 %v1072
    %v1143 = vpop.f32.mrb[0].mxu0
    %v1144 = vadd.f32 %v1069, %v1143
    %v1145 = vpop.f32.mrb[0].mxu0
    %1146 = vmatprep.mubr.f32.mxu0 0.0
    %1147 = vmatmul.mubr.f32.gmra.mrb[0].mxu0 %v1075
    %v1148 = vpop.f32.mrb[0].mxu0
    %v1149 = vadd.f32 %v1069, %v1148
    %v1150 = vpop.f32.mrb[0].mxu0
    %1151 = vdwg.mxu0
    %v1152 = vadd.f32 %v57, %v1144
    %v1153 = vadd.f32 %v58, %v1149
    %v1154 = vld [vmem:[%s12] sm:$0x1]
    %v1155 = vld [vmem:[%s13] sm:$0x1]
    %v1156 = vsel %vm63, %v1152, 0.0
    %1157 = vadd.xlane.f32.xlu0 %v1156
    %v1158 = vpop.xlane.xlu0 %1157
    %v1159 = vsel %vm63, %v1153, 0.0
    %1160 = vadd.xlane.f32.xlu0 %v1159
    %v1161 = vpop.xlane.xlu0 %1160
    %v1162 = vmul.f32 %v1158, %v70
    %v1163 = vmul.f32 %v1161, %v70
    %v1164 = vsub.f32 %v1152, %v1162
    %v1165 = vsub.f32 %v1153, %v1163
    %v1166 = vmul.f32 %v1164, %v1164
    %v1167 = vmul.f32 %v1165, %v1165
    %v1168 = vsel %vm63, %v1166, 0.0
    %1169 = vadd.xlane.f32.xlu0 %v1168
    %v1170 = vpop.xlane.xlu0 %1169
    %v1171 = vsel %vm63, %v1167, 0.0
    %1172 = vadd.xlane.f32.xlu0 %v1171
    %v1173 = vpop.xlane.xlu0 %1172
    %v1174 = vmul.f32 %v1170, 0.032258064
    %v1175 = vmul.f32 %v1173, 0.032258064
    %v1176 = vrsqrt.pop %v1174
    %v1177 = vmul.f32 %v1174, %v1176
    %vm1178 = vcmp.eq.f32.partialorder %v1174, inf
    %v1179 = vsel %vm1178, %v1174, %v1177
    %vm1180 = vcmp.eq.f32.partialorder %v1174, 0.0
    %v1181 = vand.u32 %v1174, 2147483648
    %v1182 = vsel %vm1180, %v1181, %v1179
    %v1183 = vrsqrt.pop %v1175
    %v1184 = vmul.f32 %v1175, %v1183
    %vm1185 = vcmp.eq.f32.partialorder %v1175, inf
    %v1186 = vsel %vm1185, %v1175, %v1184
    %vm1187 = vcmp.eq.f32.partialorder %v1175, 0.0
    %v1188 = vand.u32 %v1175, 2147483648
    %v1189 = vsel %vm1187, %v1188, %v1186
    %v1191 = vlaneseq
    %v1192 = vshrl.u32 %v1191, 7
    %v1193 = vsub.s32 0, %v1192
    %v1194 = vrot.slane %v1154, %v1193
    %v1196 = vmul.f32 %v1194, %v1164
    %v1197 = vmul.f32 %v1194, %v1165
    %v1198 = vadd.f32 %v1182, 1e-06
    %v1199 = vadd.f32 %v1189, 1e-06
    %v1200 = vrcp.pop %v1198
    %v1201 = vrcp.pop %v1199
    %v1202 = vmul.f32 %v1196, %v1200
    %v1203 = vmul.f32 %v1197, %v1201
    %v1205 = vlaneseq
    %v1206 = vshrl.u32 %v1205, 7
    %v1207 = vsub.s32 0, %v1206
    %v1208 = vrot.slane %v1155, %v1207
    %v1210 = vadd.f32 %v1202, %v1208
    %v1211 = vadd.f32 %v1203, %v1208
    %v1212 = vld [vmem:[%s6] sm:$0xff]
    %v1213 = vld [vmem:[%s6 + $0x8] sm:$0xff]
    %v1214 = vld [vmem:[%s6 + $0x10] sm:$0xff]
    %v1215 = vld [vmem:[%s6 + $0x18] sm:$0xff]
    %v1216 = vld [vmem:[%s7] sm:$0x1]
    %v1218 = vlaneseq
    %v1219 = vshrl.u32 %v1218, 7
    %v1220 = vsub.s32 0, %v1219
    %v1221 = vrot.slane %v1216, %v1220
    %v1224 = vsel %vm63, %v1210, 0
    %v1227 = vsel %vm63, %v1211, 0
    %1229 = vmatprep.subr.mxu0 0.0
    %1230 = vmatpush1.msra.mxu0 %v1212
    %1231 = vmatprep.subr.mxu0 0.0
    %1232 = vmatpush1.msra.mxu0 %v1213
    %1233 = vmatprep.subr.mxu0 0.0
    %1234 = vmatpush1.msra.mxu0 %v1214
    %1235 = vmatprep.subr.mxu0 0.0
    %1236 = vmatpush1.msra.mxu0 %v1215
    %1237 = vmatprep.subr.mxu0 0.0
    %1238 = vmatpush1.msra.mxu0 0.0
    %1239 = vmatprep.subr.mxu0 0.0
    %1240 = vmatpush1.msra.mxu0 0.0
    %1241 = vmatprep.subr.mxu0 0.0
    %1242 = vmatpush1.msra.mxu0 0.0
    %1243 = vmatprep.subr.mxu0 0.0
    %1244 = vmatpush1.msra.mxu0 0.0
    %1245 = vmatprep.subr.mxu0 0.0
    %1246 = vmatpush1.msra.mxu0 0.0
    %1247 = vmatprep.subr.mxu0 0.0
    %1248 = vmatpush1.msra.mxu0 0.0
    %1249 = vmatprep.subr.mxu0 0.0
    %1250 = vmatpush1.msra.mxu0 0.0
    %1251 = vmatprep.subr.mxu0 0.0
    %1252 = vmatpush1.msra.mxu0 0.0
    %1253 = vmatprep.subr.mxu0 0.0
    %1254 = vmatpush1.msra.mxu0 0.0
    %1255 = vmatprep.subr.mxu0 0.0
    %1256 = vmatpush1.msra.mxu0 0.0
    %1257 = vmatprep.subr.mxu0 0.0
    %1258 = vmatpush1.msra.mxu0 0.0
    %1259 = vmatprep.subr.mxu0 0.0
    %1260 = vmatpush1.msra.mxu0 0.0
    %1261 = vmatprep.subr.mxu0 0.0
    %1262 = vmatpush1.msra.mxu0 0.0
    %1263 = vmatprep.subr.mxu0 0.0
    %1264 = vmatpush1.msra.mxu0 0.0
    %1265 = vmatprep.subr.mxu0 0.0
    %1266 = vmatpush1.msra.mxu0 0.0
    %1267 = vmatprep.subr.mxu0 0.0
    %1268 = vmatpush1.msra.mxu0 0.0
    %1269 = vmatprep.subr.mxu0 0.0
    %1270 = vmatpush1.msra.mxu0 0.0
    %1271 = vmatprep.subr.mxu0 0.0
    %1272 = vmatpush1.msra.mxu0 0.0
    %1273 = vmatprep.subr.mxu0 0.0
    %1274 = vmatpush1.msra.mxu0 0.0
    %1275 = vmatprep.subr.mxu0 0.0
    %1276 = vmatpush1.msra.mxu0 0.0
    %1277 = vmatprep.subr.mxu0 0.0
    %1278 = vmatpush1.msra.mxu0 0.0
    %1279 = vmatprep.subr.mxu0 0.0
    %1280 = vmatpush1.msra.mxu0 0.0
    %1281 = vmatprep.subr.mxu0 0.0
    %1282 = vmatpush1.msra.mxu0 0.0
    %1283 = vmatprep.subr.mxu0 0.0
    %1284 = vmatpush1.msra.mxu0 0.0
    %1285 = vmatprep.subr.mxu0 0.0
    %1286 = vmatpush1.msra.mxu0 0.0
    %1287 = vmatprep.subr.mxu0 0.0
    %1288 = vmatpush1.msra.mxu0 0.0
    %1289 = vmatprep.subr.mxu0 0.0
    %1290 = vmatpush1.msra.mxu0 0.0
    %1291 = vmatprep.subr.mxu0 0.0
    %1292 = vmatpush1.msra.mxu0 0.0
    %1293 = vmatprep.mubr.f32.mxu0 0.0
    %1294 = vmatmul.mubr.f32.gmra.mrb[0].mxu0 %v1224
    %v1295 = vpop.f32.mrb[0].mxu0
    %v1296 = vadd.f32 %v1221, %v1295
    %v1297 = vpop.f32.mrb[0].mxu0
    %1298 = vmatprep.mubr.f32.mxu0 0.0
    %1299 = vmatmul.mubr.f32.gmra.mrb[0].mxu0 %v1227
    %v1300 = vpop.f32.mrb[0].mxu0
    %v1301 = vadd.f32 %v1221, %v1300
    %v1302 = vpop.f32.mrb[0].mxu0
    %1303 = vdwg.mxu0
    %v1304 = vmax.f32 %v1296, 0.0
    %v1305 = vmax.f32 %v1301, 0.0
    %v1306 = vld [vmem:[%s8] sm:$0xff]
    %v1307 = vld [vmem:[%s8 + $0x8] sm:$0xff]
    %v1308 = vld [vmem:[%s8 + $0x10] sm:$0xff]
    %v1309 = vld [vmem:[%s8 + $0x18] sm:$0xff]
    %v1310 = vld [vmem:[%s8 + $0x20] sm:$0xff]
    %v1311 = vld [vmem:[%s8 + $0x28] sm:$0xff]
    %v1312 = vld [vmem:[%s8 + $0x30] sm:$0xff]
    %v1313 = vld [vmem:[%s8 + $0x38] sm:$0xff]
    %v1314 = vld [vmem:[%s9] sm:$0x1]
    %v1316 = vlaneseq
    %v1317 = vshrl.u32 %v1316, 7
    %v1318 = vsub.s32 0, %v1317
    %v1319 = vrot.slane %v1314, %v1318
    %vm1321 = vcmask 523264
    %v1323 = vsel %vm1321, %v1304, 0
    %v1326 = vsel %vm1321, %v1305, 0
    %1328 = vmatprep.subr.mxu0 0.0
    %1329 = vmatpush1.msra.mxu0 %v1306
    %1330 = vmatprep.subr.mxu0 0.0
    %1331 = vmatpush1.msra.mxu0 %v1307
    %1332 = vmatprep.subr.mxu0 0.0
    %1333 = vmatpush1.msra.mxu0 %v1308
    %1334 = vmatprep.subr.mxu0 0.0
    %1335 = vmatpush1.msra.mxu0 %v1309
    %1336 = vmatprep.subr.mxu0 0.0
    %1337 = vmatpush1.msra.mxu0 %v1310
    %1338 = vmatprep.subr.mxu0 0.0
    %1339 = vmatpush1.msra.mxu0 %v1311
    %1340 = vmatprep.subr.mxu0 0.0
    %1341 = vmatpush1.msra.mxu0 %v1312
    %1342 = vmatprep.subr.mxu0 0.0
    %1343 = vmatpush1.msra.mxu0 %v1313
    %1344 = vmatprep.subr.mxu0 0.0
    %1345 = vmatpush1.msra.mxu0 0.0
    %1346 = vmatprep.subr.mxu0 0.0
    %1347 = vmatpush1.msra.mxu0 0.0
    %1348 = vmatprep.subr.mxu0 0.0
    %1349 = vmatpush1.msra.mxu0 0.0
    %1350 = vmatprep.subr.mxu0 0.0
    %1351 = vmatpush1.msra.mxu0 0.0
    %1352 = vmatprep.subr.mxu0 0.0
    %1353 = vmatpush1.msra.mxu0 0.0
    %1354 = vmatprep.subr.mxu0 0.0
    %1355 = vmatpush1.msra.mxu0 0.0
    %1356 = vmatprep.subr.mxu0 0.0
    %1357 = vmatpush1.msra.mxu0 0.0
    %1358 = vmatprep.subr.mxu0 0.0
    %1359 = vmatpush1.msra.mxu0 0.0
    %1360 = vmatprep.subr.mxu0 0.0
    %1361 = vmatpush1.msra.mxu0 0.0
    %1362 = vmatprep.subr.mxu0 0.0
    %1363 = vmatpush1.msra.mxu0 0.0
    %1364 = vmatprep.subr.mxu0 0.0
    %1365 = vmatpush1.msra.mxu0 0.0
    %1366 = vmatprep.subr.mxu0 0.0
    %1367 = vmatpush1.msra.mxu0 0.0
    %1368 = vmatprep.subr.mxu0 0.0
    %1369 = vmatpush1.msra.mxu0 0.0
    %1370 = vmatprep.subr.mxu0 0.0
    %1371 = vmatpush1.msra.mxu0 0.0
    %1372 = vmatprep.subr.mxu0 0.0
    %1373 = vmatpush1.msra.mxu0 0.0
    %1374 = vmatprep.subr.mxu0 0.0
    %1375 = vmatpush1.msra.mxu0 0.0
    %1376 = vmatprep.subr.mxu0 0.0
    %1377 = vmatpush1.msra.mxu0 0.0
    %1378 = vmatprep.subr.mxu0 0.0
    %1379 = vmatpush1.msra.mxu0 0.0
    %1380 = vmatprep.subr.mxu0 0.0
    %1381 = vmatpush1.msra.mxu0 0.0
    %1382 = vmatprep.subr.mxu0 0.0
    %1383 = vmatpush1.msra.mxu0 0.0
    %1384 = vmatprep.subr.mxu0 0.0
    %1385 = vmatpush1.msra.mxu0 0.0
    %1386 = vmatprep.subr.mxu0 0.0
    %1387 = vmatpush1.msra.mxu0 0.0
    %1388 = vmatprep.subr.mxu0 0.0
    %1389 = vmatpush1.msra.mxu0 0.0
    %1390 = vmatprep.subr.mxu0 0.0
    %1391 = vmatpush1.msra.mxu0 0.0
    %1392 = vmatprep.mubr.f32.mxu0 0.0
    %1393 = vmatmul.mubr.f32.gmra.mrb[0].mxu0 %v1323
    %v1394 = vpop.f32.mrb[0].mxu0
    %v1395 = vadd.f32 %v1319, %v1394
    %v1396 = vpop.f32.mrb[0].mxu0
    %1397 = vmatprep.mubr.f32.mxu0 0.0
    %1398 = vmatmul.mubr.f32.gmra.mrb[0].mxu0 %v1326
    %v1399 = vpop.f32.mrb[0].mxu0
    %v1400 = vadd.f32 %v1319, %v1399
    %v1401 = vpop.f32.mrb[0].mxu0
    %1402 = vdwg.mxu0
    %v1403 = vadd.f32 %v1152, %v1395
    %v1404 = vadd.f32 %v1153, %v1400
    %s1405 = scalar_lea.vmem %s10, 1
    %v1406 = vld [vmem:[%s1405] sm:$0x1]
    %s1407 = scalar_lea.vmem %s11, 1
    %v1408 = vld [vmem:[%s1407] sm:$0x1]
    %v1409 = vsel %vm63, %v1403, 0.0
    %1410 = vadd.xlane.f32.xlu0 %v1409
    %v1411 = vpop.xlane.xlu0 %1410
    %v1412 = vsel %vm63, %v1404, 0.0
    %1413 = vadd.xlane.f32.xlu0 %v1412
    %v1414 = vpop.xlane.xlu0 %1413
    %v1415 = vmul.f32 %v1411, %v70
    %v1416 = vmul.f32 %v1414, %v70
    %v1417 = vsub.f32 %v1403, %v1415
    %v1418 = vsub.f32 %v1404, %v1416
    %v1419 = vmul.f32 %v1417, %v1417
    %v1420 = vmul.f32 %v1418, %v1418
    %v1421 = vsel %vm63, %v1419, 0.0
    %1422 = vadd.xlane.f32.xlu0 %v1421
    %v1423 = vpop.xlane.xlu0 %1422
    %v1424 = vsel %vm63, %v1420, 0.0
    %1425 = vadd.xlane.f32.xlu0 %v1424
    %v1426 = vpop.xlane.xlu0 %1425
    %v1427 = vmul.f32 %v1423, 0.032258064
    %v1428 = vmul.f32 %v1426, 0.032258064
    %v1429 = vrsqrt.pop %v1427
    %v1430 = vmul.f32 %v1427, %v1429
    %vm1431 = vcmp.eq.f32.partialorder %v1427, inf
    %v1432 = vsel %vm1431, %v1427, %v1430
    %vm1433 = vcmp.eq.f32.partialorder %v1427, 0.0
    %v1434 = vand.u32 %v1427, 2147483648
    %v1435 = vsel %vm1433, %v1434, %v1432
    %v1436 = vrsqrt.pop %v1428
    %v1437 = vmul.f32 %v1428, %v1436
    %vm1438 = vcmp.eq.f32.partialorder %v1428, inf
    %v1439 = vsel %vm1438, %v1428, %v1437
    %vm1440 = vcmp.eq.f32.partialorder %v1428, 0.0
    %v1441 = vand.u32 %v1428, 2147483648
    %v1442 = vsel %vm1440, %v1441, %v1439
    %v1444 = vlaneseq
    %v1445 = vshrl.u32 %v1444, 7
    %v1446 = vsub.s32 0, %v1445
    %v1447 = vrot.slane %v1406, %v1446
    %v1449 = vmul.f32 %v1447, %v1417
    %v1450 = vmul.f32 %v1447, %v1418
    %v1451 = vadd.f32 %v1435, 1e-06
    %v1452 = vadd.f32 %v1442, 1e-06
    %v1453 = vrcp.pop %v1451
    %v1454 = vrcp.pop %v1452
    %v1455 = vmul.f32 %v1449, %v1453
    %v1456 = vmul.f32 %v1450, %v1454
    %v1458 = vlaneseq
    %v1459 = vshrl.u32 %v1458, 7
    %v1460 = vsub.s32 0, %v1459
    %v1461 = vrot.slane %v1408, %v1460
    %v1463 = vadd.f32 %v1455, %v1461
    %v1464 = vadd.f32 %v1456, %v1461
    %s1465 = scalar_lea.vmem %s2, 32
    %v1466 = vld [vmem:[%s1465] sm:$0xff]
    %v1467 = vld [vmem:[%s1465 + $0x8] sm:$0xff]
    %v1468 = vld [vmem:[%s1465 + $0x10] sm:$0xff]
    %v1469 = vld [vmem:[%s1465 + $0x18] sm:$0xff]
    %s1470 = scalar_lea.vmem %s3, 1
    %v1471 = vld [vmem:[%s1470] sm:$0x1]
    %v1473 = vlaneseq
    %v1474 = vshrl.u32 %v1473, 7
    %v1475 = vsub.s32 0, %v1474
    %v1476 = vrot.slane %v1471, %v1475
    %v1479 = vsel %vm63, %v1463, 0
    %v1482 = vsel %vm63, %v1464, 0
    %1484 = vmatprep.subr.mxu0 0.0
    %1485 = vmatpush1.msra.mxu0 %v1466
    %1486 = vmatprep.subr.mxu0 0.0
    %1487 = vmatpush1.msra.mxu0 %v1467
    %1488 = vmatprep.subr.mxu0 0.0
    %1489 = vmatpush1.msra.mxu0 %v1468
    %1490 = vmatprep.subr.mxu0 0.0
    %1491 = vmatpush1.msra.mxu0 %v1469
    %1492 = vmatprep.subr.mxu0 0.0
    %1493 = vmatpush1.msra.mxu0 0.0
    %1494 = vmatprep.subr.mxu0 0.0
    %1495 = vmatpush1.msra.mxu0 0.0
    %1496 = vmatprep.subr.mxu0 0.0
    %1497 = vmatpush1.msra.mxu0 0.0
    %1498 = vmatprep.subr.mxu0 0.0
    %1499 = vmatpush1.msra.mxu0 0.0
    %1500 = vmatprep.subr.mxu0 0.0
    %1501 = vmatpush1.msra.mxu0 0.0
    %1502 = vmatprep.subr.mxu0 0.0
    %1503 = vmatpush1.msra.mxu0 0.0
    %1504 = vmatprep.subr.mxu0 0.0
    %1505 = vmatpush1.msra.mxu0 0.0
    %1506 = vmatprep.subr.mxu0 0.0
    %1507 = vmatpush1.msra.mxu0 0.0
    %1508 = vmatprep.subr.mxu0 0.0
    %1509 = vmatpush1.msra.mxu0 0.0
    %1510 = vmatprep.subr.mxu0 0.0
    %1511 = vmatpush1.msra.mxu0 0.0
    %1512 = vmatprep.subr.mxu0 0.0
    %1513 = vmatpush1.msra.mxu0 0.0
    %1514 = vmatprep.subr.mxu0 0.0
    %1515 = vmatpush1.msra.mxu0 0.0
    %1516 = vmatprep.subr.mxu0 0.0
    %1517 = vmatpush1.msra.mxu0 0.0
    %1518 = vmatprep.subr.mxu0 0.0
    %1519 = vmatpush1.msra.mxu0 0.0
    %1520 = vmatprep.subr.mxu0 0.0
    %1521 = vmatpush1.msra.mxu0 0.0
    %1522 = vmatprep.subr.mxu0 0.0
    %1523 = vmatpush1.msra.mxu0 0.0
    %1524 = vmatprep.subr.mxu0 0.0
    %1525 = vmatpush1.msra.mxu0 0.0
    %1526 = vmatprep.subr.mxu0 0.0
    %1527 = vmatpush1.msra.mxu0 0.0
    %1528 = vmatprep.subr.mxu0 0.0
    %1529 = vmatpush1.msra.mxu0 0.0
    %1530 = vmatprep.subr.mxu0 0.0
    %1531 = vmatpush1.msra.mxu0 0.0
    %1532 = vmatprep.subr.mxu0 0.0
    %1533 = vmatpush1.msra.mxu0 0.0
    %1534 = vmatprep.subr.mxu0 0.0
    %1535 = vmatpush1.msra.mxu0 0.0
    %1536 = vmatprep.subr.mxu0 0.0
    %1537 = vmatpush1.msra.mxu0 0.0
    %1538 = vmatprep.subr.mxu0 0.0
    %1539 = vmatpush1.msra.mxu0 0.0
    %1540 = vmatprep.subr.mxu0 0.0
    %1541 = vmatpush1.msra.mxu0 0.0
    %1542 = vmatprep.subr.mxu0 0.0
    %1543 = vmatpush1.msra.mxu0 0.0
    %1544 = vmatprep.subr.mxu0 0.0
    %1545 = vmatpush1.msra.mxu0 0.0
    %1546 = vmatprep.subr.mxu0 0.0
    %1547 = vmatpush1.msra.mxu0 0.0
    %1548 = vmatprep.mubr.f32.mxu0 0.0
    %1549 = vmatmul.mubr.f32.gmra.mrb[0].mxu0 %v1479
    %v1550 = vpop.f32.mrb[0].mxu0
    %v1551 = vadd.f32 %v1476, %v1550
    %v1552 = vpop.f32.mrb[0].mxu0
    %1553 = vmatprep.mubr.f32.mxu0 0.0
    %1554 = vmatmul.mubr.f32.gmra.mrb[0].mxu0 %v1482
    %v1555 = vpop.f32.mrb[0].mxu0
    %v1556 = vadd.f32 %v1476, %v1555
    %v1557 = vpop.f32.mrb[0].mxu0
    %1558 = vdwg.mxu0
    %1561 = vrot.lane.b32.xlu0 %v1551, 96
    %v1562 = vpop.permute.xlu0 %1561
    %1563 = vrot.lane.b32.xlu0 %v1556, 96
    %v1564 = vpop.permute.xlu0 %1563
    %v1565 = vsel %vm219, %v1551, 0
    %v1567 = vsel %vm219, %v1556, 0
    %v1569 = vsel %vm219, %v1562, 0
    %v1571 = vsel %vm219, %v1564, 0
    %1573 = vmatprep.subr.mxu0 0.0
    %1574 = vmatpush1.xpose.msra.mxu0 %v1569
    %1575 = vmatprep.subr.mxu0 0.0
    %1576 = vmatpush1.xpose.msra.mxu0 %v1571
    %1577 = vmatprep.subr.mxu0 0.0
    %1578 = vmatpush1.xpose.msra.mxu0 0.0
    %1579 = vmatprep.subr.mxu0 0.0
    %1580 = vmatpush1.xpose.msra.mxu0 0.0
    %1581 = vmatprep.subr.mxu0 0.0
    %1582 = vmatpush1.xpose.msra.mxu0 0.0
    %1583 = vmatprep.subr.mxu0 0.0
    %1584 = vmatpush1.xpose.msra.mxu0 0.0
    %1585 = vmatprep.subr.mxu0 0.0
    %1586 = vmatpush1.xpose.msra.mxu0 0.0
    %1587 = vmatprep.subr.mxu0 0.0
    %1588 = vmatpush1.xpose.msra.mxu0 0.0
    %1589 = vmatprep.subr.mxu0 0.0
    %1590 = vmatpush1.xpose.msra.mxu0 0.0
    %1591 = vmatprep.subr.mxu0 0.0
    %1592 = vmatpush1.xpose.msra.mxu0 0.0
    %1593 = vmatprep.subr.mxu0 0.0
    %1594 = vmatpush1.xpose.msra.mxu0 0.0
    %1595 = vmatprep.subr.mxu0 0.0
    %1596 = vmatpush1.xpose.msra.mxu0 0.0
    %1597 = vmatprep.subr.mxu0 0.0
    %1598 = vmatpush1.xpose.msra.mxu0 0.0
    %1599 = vmatprep.subr.mxu0 0.0
    %1600 = vmatpush1.xpose.msra.mxu0 0.0
    %1601 = vmatprep.subr.mxu0 0.0
    %1602 = vmatpush1.xpose.msra.mxu0 0.0
    %1603 = vmatprep.subr.mxu0 0.0
    %1604 = vmatpush1.xpose.msra.mxu0 0.0
    %1605 = vmatprep.subr.mxu0 0.0
    %1606 = vmatpush1.xpose.msra.mxu0 0.0
    %1607 = vmatprep.subr.mxu0 0.0
    %1608 = vmatpush1.xpose.msra.mxu0 0.0
    %1609 = vmatprep.subr.mxu0 0.0
    %1610 = vmatpush1.xpose.msra.mxu0 0.0
    %1611 = vmatprep.subr.mxu0 0.0
    %1612 = vmatpush1.xpose.msra.mxu0 0.0
    %1613 = vmatprep.subr.mxu0 0.0
    %1614 = vmatpush1.xpose.msra.mxu0 0.0
    %1615 = vmatprep.subr.mxu0 0.0
    %1616 = vmatpush1.xpose.msra.mxu0 0.0
    %1617 = vmatprep.subr.mxu0 0.0
    %1618 = vmatpush1.xpose.msra.mxu0 0.0
    %1619 = vmatprep.subr.mxu0 0.0
    %1620 = vmatpush1.xpose.msra.mxu0 0.0
    %1621 = vmatprep.subr.mxu0 0.0
    %1622 = vmatpush1.xpose.msra.mxu0 0.0
    %1623 = vmatprep.subr.mxu0 0.0
    %1624 = vmatpush1.xpose.msra.mxu0 0.0
    %1625 = vmatprep.subr.mxu0 0.0
    %1626 = vmatpush1.xpose.msra.mxu0 0.0
    %1627 = vmatprep.subr.mxu0 0.0
    %1628 = vmatpush1.xpose.msra.mxu0 0.0
    %1629 = vmatprep.subr.mxu0 0.0
    %1630 = vmatpush1.xpose.msra.mxu0 0.0
    %1631 = vmatprep.subr.mxu0 0.0
    %1632 = vmatpush1.xpose.msra.mxu0 0.0
    %1633 = vmatprep.subr.mxu0 0.0
    %1634 = vmatpush1.xpose.msra.mxu0 0.0
    %1635 = vmatprep.subr.mxu0 0.0
    %1636 = vmatpush1.xpose.msra.mxu0 0.0
    %1637 = vmatprep.mubr.f32.mxu0 0.0
    %1638 = vmatmul.mubr.f32.gmra.mrb[0].mxu0 %v1565
    %v1639 = vpop.f32.mrb[0].mxu0
    %v1640 = vadd.f32 0.0, %v1639
    %v1641 = vpop.f32.mrb[0].mxu0
    %1642 = vmatprep.mubr.f32.mxu0 0.0
    %1643 = vmatmul.mubr.f32.gmra.mrb[0].mxu0 %v1567
    %v1644 = vpop.f32.mrb[0].mxu0
    %v1645 = vadd.f32 0.0, %v1644
    %v1646 = vpop.f32.mrb[0].mxu0
    %1647 = vdwg.mxu0
    %v1648 = vmul.f32 %v1640, 0.35355338
    %v1649 = vmul.f32 %v1645, 0.35355338
    %v1650 = vadd.f32 %v1648, %v59
    %v1651 = vadd.f32 %v1649, %v60
    %v1652 = vsel %vm307, %v1650, -inf
    %1653 = vmax.xlane.f32.xlu0 %v1652
    %v1654 = vpop.xlane.xlu0 %1653
    %v1655 = vsel %vm307, %v1651, -inf
    %1656 = vmax.xlane.f32.xlu0 %v1655
    %v1657 = vpop.xlane.xlu0 %1656
    %v1658 = vsub.f32 %v1650, %v1654
    %v1659 = vsub.f32 %v1651, %v1657
    %v1660 = vmul.f32 %v1658, 1.442695
    %v1661 = vpow.pop %v1660
    %v1662 = vmul.f32 %v1659, 1.442695
    %v1663 = vpow.pop %v1662
    %v1664 = vsel %vm307, %v1661, 0.0
    %1665 = vadd.xlane.f32.xlu0 %v1664
    %v1666 = vpop.xlane.xlu0 %1665
    %v1667 = vsel %vm307, %v1663, 0.0
    %1668 = vadd.xlane.f32.xlu0 %v1667
    %v1669 = vpop.xlane.xlu0 %1668
    %v1670 = vrcp.pop %v1666
    %v1671 = vrcp.pop %v1669
    %v1672 = vmul.f32 %v1661, %v1670
    %v1673 = vmul.f32 %v1663, %v1671
    %1674 = vst.msk [vmem:[#allocation4] sm:$0xff] %vm307, %v1672
    %1675 = vst.msk [vmem:[#allocation4 + $0x8] sm:$0xff] %vm307, %v1673
    %1676 = vrot.lane.b32.xlu0 %v1551, 64
    %v1677 = vpop.permute.xlu0 %1676
    %1678 = vrot.lane.b32.xlu0 %v1556, 64
    %v1679 = vpop.permute.xlu0 %1678
    %v1683 = vsel %vm307, %v1672, 0
    %v1686 = vsel %vm307, %v1673, 0
    %1688 = vmatprep.subr.mxu0 0.0
    %1689 = vmatpush1.msra.mxu0 %v1677
    %1690 = vmatprep.subr.mxu0 0.0
    %1691 = vmatpush1.msra.mxu0 %v1679
    %1692 = vmatprep.subr.mxu0 0.0
    %1693 = vmatpush1.msra.mxu0 0.0
    %1694 = vmatprep.subr.mxu0 0.0
    %1695 = vmatpush1.msra.mxu0 0.0
    %1696 = vmatprep.subr.mxu0 0.0
    %1697 = vmatpush1.msra.mxu0 0.0
    %1698 = vmatprep.subr.mxu0 0.0
    %1699 = vmatpush1.msra.mxu0 0.0
    %1700 = vmatprep.subr.mxu0 0.0
    %1701 = vmatpush1.msra.mxu0 0.0
    %1702 = vmatprep.subr.mxu0 0.0
    %1703 = vmatpush1.msra.mxu0 0.0
    %1704 = vmatprep.subr.mxu0 0.0
    %1705 = vmatpush1.msra.mxu0 0.0
    %1706 = vmatprep.subr.mxu0 0.0
    %1707 = vmatpush1.msra.mxu0 0.0
    %1708 = vmatprep.subr.mxu0 0.0
    %1709 = vmatpush1.msra.mxu0 0.0
    %1710 = vmatprep.subr.mxu0 0.0
    %1711 = vmatpush1.msra.mxu0 0.0
    %1712 = vmatprep.subr.mxu0 0.0
    %1713 = vmatpush1.msra.mxu0 0.0
    %1714 = vmatprep.subr.mxu0 0.0
    %1715 = vmatpush1.msra.mxu0 0.0
    %1716 = vmatprep.subr.mxu0 0.0
    %1717 = vmatpush1.msra.mxu0 0.0
    %1718 = vmatprep.subr.mxu0 0.0
    %1719 = vmatpush1.msra.mxu0 0.0
    %1720 = vmatprep.subr.mxu0 0.0
    %1721 = vmatpush1.msra.mxu0 0.0
    %1722 = vmatprep.subr.mxu0 0.0
    %1723 = vmatpush1.msra.mxu0 0.0
    %1724 = vmatprep.subr.mxu0 0.0
    %1725 = vmatpush1.msra.mxu0 0.0
    %1726 = vmatprep.subr.mxu0 0.0
    %1727 = vmatpush1.msra.mxu0 0.0
    %1728 = vmatprep.subr.mxu0 0.0
    %1729 = vmatpush1.msra.mxu0 0.0
    %1730 = vmatprep.subr.mxu0 0.0
    %1731 = vmatpush1.msra.mxu0 0.0
    %1732 = vmatprep.subr.mxu0 0.0
    %1733 = vmatpush1.msra.mxu0 0.0
    %1734 = vmatprep.subr.mxu0 0.0
    %1735 = vmatpush1.msra.mxu0 0.0
    %1736 = vmatprep.subr.mxu0 0.0
    %1737 = vmatpush1.msra.mxu0 0.0
    %1738 = vmatprep.subr.mxu0 0.0
    %1739 = vmatpush1.msra.mxu0 0.0
    %1740 = vmatprep.subr.mxu0 0.0
    %1741 = vmatpush1.msra.mxu0 0.0
    %1742 = vmatprep.subr.mxu0 0.0
    %1743 = vmatpush1.msra.mxu0 0.0
    %1744 = vmatprep.subr.mxu0 0.0
    %1745 = vmatpush1.msra.mxu0 0.0
    %1746 = vmatprep.subr.mxu0 0.0
    %1747 = vmatpush1.msra.mxu0 0.0
    %1748 = vmatprep.subr.mxu0 0.0
    %1749 = vmatpush1.msra.mxu0 0.0
    %1750 = vmatprep.subr.mxu0 0.0
    %1751 = vmatpush1.msra.mxu0 0.0
    %1752 = vmatprep.mubr.f32.mxu0 0.0
    %1753 = vmatmul.mubr.f32.gmra.mrb[0].mxu0 %v1683
    %v1754 = vpop.f32.mrb[0].mxu0
    %v1755 = vadd.f32 0.0, %v1754
    %v1756 = vpop.f32.mrb[0].mxu0
    %1757 = vmatprep.mubr.f32.mxu0 0.0
    %1758 = vmatmul.mubr.f32.gmra.mrb[0].mxu0 %v1686
    %v1759 = vpop.f32.mrb[0].mxu0
    %v1760 = vadd.f32 0.0, %v1759
    %v1761 = vpop.f32.mrb[0].mxu0
    %1762 = vdwg.mxu0
    %1763 = vrot.lane.b32.xlu0 %v1551, 120
    %v1764 = vpop.permute.xlu0 %1763
    %1765 = vrot.lane.b32.xlu0 %v1556, 120
    %v1766 = vpop.permute.xlu0 %1765
    %1767 = vrot.lane.b32.xlu0 %v1551, 88
    %v1768 = vpop.permute.xlu0 %1767
    %1769 = vrot.lane.b32.xlu0 %v1556, 88
    %v1770 = vpop.permute.xlu0 %1769
    %v1771 = vsel %vm219, %v1764, 0
    %v1773 = vsel %vm219, %v1766, 0
    %v1775 = vsel %vm219, %v1768, 0
    %v1777 = vsel %vm219, %v1770, 0
    %1779 = vmatprep.subr.mxu0 0.0
    %1780 = vmatpush1.xpose.msra.mxu0 %v1775
    %1781 = vmatprep.subr.mxu0 0.0
    %1782 = vmatpush1.xpose.msra.mxu0 %v1777
    %1783 = vmatprep.subr.mxu0 0.0
    %1784 = vmatpush1.xpose.msra.mxu0 0.0
    %1785 = vmatprep.subr.mxu0 0.0
    %1786 = vmatpush1.xpose.msra.mxu0 0.0
    %1787 = vmatprep.subr.mxu0 0.0
    %1788 = vmatpush1.xpose.msra.mxu0 0.0
    %1789 = vmatprep.subr.mxu0 0.0
    %1790 = vmatpush1.xpose.msra.mxu0 0.0
    %1791 = vmatprep.subr.mxu0 0.0
    %1792 = vmatpush1.xpose.msra.mxu0 0.0
    %1793 = vmatprep.subr.mxu0 0.0
    %1794 = vmatpush1.xpose.msra.mxu0 0.0
    %1795 = vmatprep.subr.mxu0 0.0
    %1796 = vmatpush1.xpose.msra.mxu0 0.0
    %1797 = vmatprep.subr.mxu0 0.0
    %1798 = vmatpush1.xpose.msra.mxu0 0.0
    %1799 = vmatprep.subr.mxu0 0.0
    %1800 = vmatpush1.xpose.msra.mxu0 0.0
    %1801 = vmatprep.subr.mxu0 0.0
    %1802 = vmatpush1.xpose.msra.mxu0 0.0
    %1803 = vmatprep.subr.mxu0 0.0
    %1804 = vmatpush1.xpose.msra.mxu0 0.0
    %1805 = vmatprep.subr.mxu0 0.0
    %1806 = vmatpush1.xpose.msra.mxu0 0.0
    %1807 = vmatprep.subr.mxu0 0.0
    %1808 = vmatpush1.xpose.msra.mxu0 0.0
    %1809 = vmatprep.subr.mxu0 0.0
    %1810 = vmatpush1.xpose.msra.mxu0 0.0
    %1811 = vmatprep.subr.mxu0 0.0
    %1812 = vmatpush1.xpose.msra.mxu0 0.0
    %1813 = vmatprep.subr.mxu0 0.0
    %1814 = vmatpush1.xpose.msra.mxu0 0.0
    %1815 = vmatprep.subr.mxu0 0.0
    %1816 = vmatpush1.xpose.msra.mxu0 0.0
    %1817 = vmatprep.subr.mxu0 0.0
    %1818 = vmatpush1.xpose.msra.mxu0 0.0
    %1819 = vmatprep.subr.mxu0 0.0
    %1820 = vmatpush1.xpose.msra.mxu0 0.0
    %1821 = vmatprep.subr.mxu0 0.0
    %1822 = vmatpush1.xpose.msra.mxu0 0.0
    %1823 = vmatprep.subr.mxu0 0.0
    %1824 = vmatpush1.xpose.msra.mxu0 0.0
    %1825 = vmatprep.subr.mxu0 0.0
    %1826 = vmatpush1.xpose.msra.mxu0 0.0
    %1827 = vmatprep.subr.mxu0 0.0
    %1828 = vmatpush1.xpose.msra.mxu0 0.0
    %1829 = vmatprep.subr.mxu0 0.0
    %1830 = vmatpush1.xpose.msra.mxu0 0.0
    %1831 = vmatprep.subr.mxu0 0.0
    %1832 = vmatpush1.xpose.msra.mxu0 0.0
    %1833 = vmatprep.subr.mxu0 0.0
    %1834 = vmatpush1.xpose.msra.mxu0 0.0
    %1835 = vmatprep.subr.mxu0 0.0
    %1836 = vmatpush1.xpose.msra.mxu0 0.0
    %1837 = vmatprep.subr.mxu0 0.0
    %1838 = vmatpush1.xpose.msra.mxu0 0.0
    %1839 = vmatprep.subr.mxu0 0.0
    %1840 = vmatpush1.xpose.msra.mxu0 0.0
    %1841 = vmatprep.subr.mxu0 0.0
    %1842 = vmatpush1.xpose.msra.mxu0 0.0
    %1843 = vmatprep.mubr.f32.mxu0 0.0
    %1844 = vmatmul.mubr.f32.gmra.mrb[0].mxu0 %v1771
    %v1845 = vpop.f32.mrb[0].mxu0
    %v1846 = vadd.f32 0.0, %v1845
    %v1847 = vpop.f32.mrb[0].mxu0
    %1848 = vmatprep.mubr.f32.mxu0 0.0
    %1849 = vmatmul.mubr.f32.gmra.mrb[0].mxu0 %v1773
    %v1850 = vpop.f32.mrb[0].mxu0
    %v1851 = vadd.f32 0.0, %v1850
    %v1852 = vpop.f32.mrb[0].mxu0
    %1853 = vdwg.mxu0
    %v1854 = vmul.f32 %v1846, 0.35355338
    %v1855 = vmul.f32 %v1851, 0.35355338
    %v1856 = vadd.f32 %v1854, %v59
    %v1857 = vadd.f32 %v1855, %v60
    %v1858 = vsel %vm307, %v1856, -inf
    %1859 = vmax.xlane.f32.xlu0 %v1858
    %v1860 = vpop.xlane.xlu0 %1859
    %v1861 = vsel %vm307, %v1857, -inf
    %1862 = vmax.xlane.f32.xlu0 %v1861
    %v1863 = vpop.xlane.xlu0 %1862
    %v1864 = vsub.f32 %v1856, %v1860
    %v1865 = vsub.f32 %v1857, %v1863
    %v1866 = vmul.f32 %v1864, 1.442695
    %v1867 = vpow.pop %v1866
    %v1868 = vmul.f32 %v1865, 1.442695
    %v1869 = vpow.pop %v1868
    %v1870 = vsel %vm307, %v1867, 0.0
    %1871 = vadd.xlane.f32.xlu0 %v1870
    %v1872 = vpop.xlane.xlu0 %1871
    %v1873 = vsel %vm307, %v1869, 0.0
    %1874 = vadd.xlane.f32.xlu0 %v1873
    %v1875 = vpop.xlane.xlu0 %1874
    %v1876 = vrcp.pop %v1872
    %v1877 = vrcp.pop %v1875
    %v1878 = vmul.f32 %v1867, %v1876
    %v1879 = vmul.f32 %v1869, %v1877
    %s1880 = scalar_lea.vmem [#allocation4], 16
    %1881 = vst.msk [vmem:[%s1880] sm:$0xff] %vm307, %v1878
    %1882 = vst.msk [vmem:[%s1880 + $0x8] sm:$0xff] %vm307, %v1879
    %1883 = vrot.lane.b32.xlu0 %v1551, 56
    %v1884 = vpop.permute.xlu0 %1883
    %1885 = vrot.lane.b32.xlu0 %v1556, 56
    %v1886 = vpop.permute.xlu0 %1885
    %v1890 = vsel %vm307, %v1878, 0
    %v1893 = vsel %vm307, %v1879, 0
    %1895 = vmatprep.subr.mxu0 0.0
    %1896 = vmatpush1.msra.mxu0 %v1884
    %1897 = vmatprep.subr.mxu0 0.0
    %1898 = vmatpush1.msra.mxu0 %v1886
    %1899 = vmatprep.subr.mxu0 0.0
    %1900 = vmatpush1.msra.mxu0 0.0
    %1901 = vmatprep.subr.mxu0 0.0
    %1902 = vmatpush1.msra.mxu0 0.0
    %1903 = vmatprep.subr.mxu0 0.0
    %1904 = vmatpush1.msra.mxu0 0.0
    %1905 = vmatprep.subr.mxu0 0.0
    %1906 = vmatpush1.msra.mxu0 0.0
    %1907 = vmatprep.subr.mxu0 0.0
    %1908 = vmatpush1.msra.mxu0 0.0
    %1909 = vmatprep.subr.mxu0 0.0
    %1910 = vmatpush1.msra.mxu0 0.0
    %1911 = vmatprep.subr.mxu0 0.0
    %1912 = vmatpush1.msra.mxu0 0.0
    %1913 = vmatprep.subr.mxu0 0.0
    %1914 = vmatpush1.msra.mxu0 0.0
    %1915 = vmatprep.subr.mxu0 0.0
    %1916 = vmatpush1.msra.mxu0 0.0
    %1917 = vmatprep.subr.mxu0 0.0
    %1918 = vmatpush1.msra.mxu0 0.0
    %1919 = vmatprep.subr.mxu0 0.0
    %1920 = vmatpush1.msra.mxu0 0.0
    %1921 = vmatprep.subr.mxu0 0.0
    %1922 = vmatpush1.msra.mxu0 0.0
    %1923 = vmatprep.subr.mxu0 0.0
    %1924 = vmatpush1.msra.mxu0 0.0
    %1925 = vmatprep.subr.mxu0 0.0
    %1926 = vmatpush1.msra.mxu0 0.0
    %1927 = vmatprep.subr.mxu0 0.0
    %1928 = vmatpush1.msra.mxu0 0.0
    %1929 = vmatprep.subr.mxu0 0.0
    %1930 = vmatpush1.msra.mxu0 0.0
    %1931 = vmatprep.subr.mxu0 0.0
    %1932 = vmatpush1.msra.mxu0 0.0
    %1933 = vmatprep.subr.mxu0 0.0
    %1934 = vmatpush1.msra.mxu0 0.0
    %1935 = vmatprep.subr.mxu0 0.0
    %1936 = vmatpush1.msra.mxu0 0.0
    %1937 = vmatprep.subr.mxu0 0.0
    %1938 = vmatpush1.msra.mxu0 0.0
    %1939 = vmatprep.subr.mxu0 0.0
    %1940 = vmatpush1.msra.mxu0 0.0
    %1941 = vmatprep.subr.mxu0 0.0
    %1942 = vmatpush1.msra.mxu0 0.0
    %1943 = vmatprep.subr.mxu0 0.0
    %1944 = vmatpush1.msra.mxu0 0.0
    %1945 = vmatprep.subr.mxu0 0.0
    %1946 = vmatpush1.msra.mxu0 0.0
    %1947 = vmatprep.subr.mxu0 0.0
    %1948 = vmatpush1.msra.mxu0 0.0
    %1949 = vmatprep.subr.mxu0 0.0
    %1950 = vmatpush1.msra.mxu0 0.0
    %1951 = vmatprep.subr.mxu0 0.0
    %1952 = vmatpush1.msra.mxu0 0.0
    %1953 = vmatprep.subr.mxu0 0.0
    %1954 = vmatpush1.msra.mxu0 0.0
    %1955 = vmatprep.subr.mxu0 0.0
    %1956 = vmatpush1.msra.mxu0 0.0
    %1957 = vmatprep.subr.mxu0 0.0
    %1958 = vmatpush1.msra.mxu0 0.0
    %1959 = vmatprep.mubr.f32.mxu0 0.0
    %1960 = vmatmul.mubr.f32.gmra.mrb[0].mxu0 %v1890
    %v1961 = vpop.f32.mrb[0].mxu0
    %v1962 = vadd.f32 0.0, %v1961
    %v1963 = vpop.f32.mrb[0].mxu0
    %1964 = vmatprep.mubr.f32.mxu0 0.0
    %1965 = vmatmul.mubr.f32.gmra.mrb[0].mxu0 %v1893
    %v1966 = vpop.f32.mrb[0].mxu0
    %v1967 = vadd.f32 0.0, %v1966
    %v1968 = vpop.f32.mrb[0].mxu0
    %1969 = vdwg.mxu0
    %1970 = vrot.lane.b32.xlu0 %v1551, 112
    %v1971 = vpop.permute.xlu0 %1970
    %1972 = vrot.lane.b32.xlu0 %v1556, 112
    %v1973 = vpop.permute.xlu0 %1972
    %1974 = vrot.lane.b32.xlu0 %v1551, 80
    %v1975 = vpop.permute.xlu0 %1974
    %1976 = vrot.lane.b32.xlu0 %v1556, 80
    %v1977 = vpop.permute.xlu0 %1976
    %v1978 = vsel %vm219, %v1971, 0
    %v1980 = vsel %vm219, %v1973, 0
    %v1982 = vsel %vm219, %v1975, 0
    %v1984 = vsel %vm219, %v1977, 0
    %1986 = vmatprep.subr.mxu0 0.0
    %1987 = vmatpush1.xpose.msra.mxu0 %v1982
    %1988 = vmatprep.subr.mxu0 0.0
    %1989 = vmatpush1.xpose.msra.mxu0 %v1984
    %1990 = vmatprep.subr.mxu0 0.0
    %1991 = vmatpush1.xpose.msra.mxu0 0.0
    %1992 = vmatprep.subr.mxu0 0.0
    %1993 = vmatpush1.xpose.msra.mxu0 0.0
    %1994 = vmatprep.subr.mxu0 0.0
    %1995 = vmatpush1.xpose.msra.mxu0 0.0
    %1996 = vmatprep.subr.mxu0 0.0
    %1997 = vmatpush1.xpose.msra.mxu0 0.0
    %1998 = vmatprep.subr.mxu0 0.0
    %1999 = vmatpush1.xpose.msra.mxu0 0.0
    %2000 = vmatprep.subr.mxu0 0.0
    %2001 = vmatpush1.xpose.msra.mxu0 0.0
    %2002 = vmatprep.subr.mxu0 0.0
    %2003 = vmatpush1.xpose.msra.mxu0 0.0
    %2004 = vmatprep.subr.mxu0 0.0
    %2005 = vmatpush1.xpose.msra.mxu0 0.0
    %2006 = vmatprep.subr.mxu0 0.0
    %2007 = vmatpush1.xpose.msra.mxu0 0.0
    %2008 = vmatprep.subr.mxu0 0.0
    %2009 = vmatpush1.xpose.msra.mxu0 0.0
    %2010 = vmatprep.subr.mxu0 0.0
    %2011 = vmatpush1.xpose.msra.mxu0 0.0
    %2012 = vmatprep.subr.mxu0 0.0
    %2013 = vmatpush1.xpose.msra.mxu0 0.0
    %2014 = vmatprep.subr.mxu0 0.0
    %2015 = vmatpush1.xpose.msra.mxu0 0.0
    %2016 = vmatprep.subr.mxu0 0.0
    %2017 = vmatpush1.xpose.msra.mxu0 0.0
    %2018 = vmatprep.subr.mxu0 0.0
    %2019 = vmatpush1.xpose.msra.mxu0 0.0
    %2020 = vmatprep.subr.mxu0 0.0
    %2021 = vmatpush1.xpose.msra.mxu0 0.0
    %2022 = vmatprep.subr.mxu0 0.0
    %2023 = vmatpush1.xpose.msra.mxu0 0.0
    %2024 = vmatprep.subr.mxu0 0.0
    %2025 = vmatpush1.xpose.msra.mxu0 0.0
    %2026 = vmatprep.subr.mxu0 0.0
    %2027 = vmatpush1.xpose.msra.mxu0 0.0
    %2028 = vmatprep.subr.mxu0 0.0
    %2029 = vmatpush1.xpose.msra.mxu0 0.0
    %2030 = vmatprep.subr.mxu0 0.0
    %2031 = vmatpush1.xpose.msra.mxu0 0.0
    %2032 = vmatprep.subr.mxu0 0.0
    %2033 = vmatpush1.xpose.msra.mxu0 0.0
    %2034 = vmatprep.subr.mxu0 0.0
    %2035 = vmatpush1.xpose.msra.mxu0 0.0
    %2036 = vmatprep.subr.mxu0 0.0
    %2037 = vmatpush1.xpose.msra.mxu0 0.0
    %2038 = vmatprep.subr.mxu0 0.0
    %2039 = vmatpush1.xpose.msra.mxu0 0.0
    %2040 = vmatprep.subr.mxu0 0.0
    %2041 = vmatpush1.xpose.msra.mxu0 0.0
    %2042 = vmatprep.subr.mxu0 0.0
    %2043 = vmatpush1.xpose.msra.mxu0 0.0
    %2044 = vmatprep.subr.mxu0 0.0
    %2045 = vmatpush1.xpose.msra.mxu0 0.0
    %2046 = vmatprep.subr.mxu0 0.0
    %2047 = vmatpush1.xpose.msra.mxu0 0.0
    %2048 = vmatprep.subr.mxu0 0.0
    %2049 = vmatpush1.xpose.msra.mxu0 0.0
    %2050 = vmatprep.mubr.f32.mxu0 0.0
    %2051 = vmatmul.mubr.f32.gmra.mrb[0].mxu0 %v1978
    %v2052 = vpop.f32.mrb[0].mxu0
    %v2053 = vadd.f32 0.0, %v2052
    %v2054 = vpop.f32.mrb[0].mxu0
    %2055 = vmatprep.mubr.f32.mxu0 0.0
    %2056 = vmatmul.mubr.f32.gmra.mrb[0].mxu0 %v1980
    %v2057 = vpop.f32.mrb[0].mxu0
    %v2058 = vadd.f32 0.0, %v2057
    %v2059 = vpop.f32.mrb[0].mxu0
    %2060 = vdwg.mxu0
    %v2061 = vmul.f32 %v2053, 0.35355338
    %v2062 = vmul.f32 %v2058, 0.35355338
    %v2063 = vadd.f32 %v2061, %v59
    %v2064 = vadd.f32 %v2062, %v60
    %v2065 = vsel %vm307, %v2063, -inf
    %2066 = vmax.xlane.f32.xlu0 %v2065
    %v2067 = vpop.xlane.xlu0 %2066
    %v2068 = vsel %vm307, %v2064, -inf
    %2069 = vmax.xlane.f32.xlu0 %v2068
    %v2070 = vpop.xlane.xlu0 %2069
    %v2071 = vsub.f32 %v2063, %v2067
    %v2072 = vsub.f32 %v2064, %v2070
    %v2073 = vmul.f32 %v2071, 1.442695
    %v2074 = vpow.pop %v2073
    %v2075 = vmul.f32 %v2072, 1.442695
    %v2076 = vpow.pop %v2075
    %v2077 = vsel %vm307, %v2074, 0.0
    %2078 = vadd.xlane.f32.xlu0 %v2077
    %v2079 = vpop.xlane.xlu0 %2078
    %v2080 = vsel %vm307, %v2076, 0.0
    %2081 = vadd.xlane.f32.xlu0 %v2080
    %v2082 = vpop.xlane.xlu0 %2081
    %v2083 = vrcp.pop %v2079
    %v2084 = vrcp.pop %v2082
    %v2085 = vmul.f32 %v2074, %v2083
    %v2086 = vmul.f32 %v2076, %v2084
    %s2087 = scalar_lea.vmem [#allocation4], 32
    %2088 = vst.msk [vmem:[%s2087] sm:$0xff] %vm307, %v2085
    %2089 = vst.msk [vmem:[%s2087 + $0x8] sm:$0xff] %vm307, %v2086
    %2090 = vrot.lane.b32.xlu0 %v1551, 48
    %v2091 = vpop.permute.xlu0 %2090
    %2092 = vrot.lane.b32.xlu0 %v1556, 48
    %v2093 = vpop.permute.xlu0 %2092
    %v2097 = vsel %vm307, %v2085, 0
    %v2100 = vsel %vm307, %v2086, 0
    %2102 = vmatprep.subr.mxu0 0.0
    %2103 = vmatpush1.msra.mxu0 %v2091
    %2104 = vmatprep.subr.mxu0 0.0
    %2105 = vmatpush1.msra.mxu0 %v2093
    %2106 = vmatprep.subr.mxu0 0.0
    %2107 = vmatpush1.msra.mxu0 0.0
    %2108 = vmatprep.subr.mxu0 0.0
    %2109 = vmatpush1.msra.mxu0 0.0
    %2110 = vmatprep.subr.mxu0 0.0
    %2111 = vmatpush1.msra.mxu0 0.0
    %2112 = vmatprep.subr.mxu0 0.0
    %2113 = vmatpush1.msra.mxu0 0.0
    %2114 = vmatprep.subr.mxu0 0.0
    %2115 = vmatpush1.msra.mxu0 0.0
    %2116 = vmatprep.subr.mxu0 0.0
    %2117 = vmatpush1.msra.mxu0 0.0
    %2118 = vmatprep.subr.mxu0 0.0
    %2119 = vmatpush1.msra.mxu0 0.0
    %2120 = vmatprep.subr.mxu0 0.0
    %2121 = vmatpush1.msra.mxu0 0.0
    %2122 = vmatprep.subr.mxu0 0.0
    %2123 = vmatpush1.msra.mxu0 0.0
    %2124 = vmatprep.subr.mxu0 0.0
    %2125 = vmatpush1.msra.mxu0 0.0
    %2126 = vmatprep.subr.mxu0 0.0
    %2127 = vmatpush1.msra.mxu0 0.0
    %2128 = vmatprep.subr.mxu0 0.0
    %2129 = vmatpush1.msra.mxu0 0.0
    %2130 = vmatprep.subr.mxu0 0.0
    %2131 = vmatpush1.msra.mxu0 0.0
    %2132 = vmatprep.subr.mxu0 0.0
    %2133 = vmatpush1.msra.mxu0 0.0
    %2134 = vmatprep.subr.mxu0 0.0
    %2135 = vmatpush1.msra.mxu0 0.0
    %2136 = vmatprep.subr.mxu0 0.0
    %2137 = vmatpush1.msra.mxu0 0.0
    %2138 = vmatprep.subr.mxu0 0.0
    %2139 = vmatpush1.msra.mxu0 0.0
    %2140 = vmatprep.subr.mxu0 0.0
    %2141 = vmatpush1.msra.mxu0 0.0
    %2142 = vmatprep.subr.mxu0 0.0
    %2143 = vmatpush1.msra.mxu0 0.0
    %2144 = vmatprep.subr.mxu0 0.0
    %2145 = vmatpush1.msra.mxu0 0.0
    %2146 = vmatprep.subr.mxu0 0.0
    %2147 = vmatpush1.msra.mxu0 0.0
    %2148 = vmatprep.subr.mxu0 0.0
    %2149 = vmatpush1.msra.mxu0 0.0
    %2150 = vmatprep.subr.mxu0 0.0
    %2151 = vmatpush1.msra.mxu0 0.0
    %2152 = vmatprep.subr.mxu0 0.0
    %2153 = vmatpush1.msra.mxu0 0.0
    %2154 = vmatprep.subr.mxu0 0.0
    %2155 = vmatpush1.msra.mxu0 0.0
    %2156 = vmatprep.subr.mxu0 0.0
    %2157 = vmatpush1.msra.mxu0 0.0
    %2158 = vmatprep.subr.mxu0 0.0
    %2159 = vmatpush1.msra.mxu0 0.0
    %2160 = vmatprep.subr.mxu0 0.0
    %2161 = vmatpush1.msra.mxu0 0.0
    %2162 = vmatprep.subr.mxu0 0.0
    %2163 = vmatpush1.msra.mxu0 0.0
    %2164 = vmatprep.subr.mxu0 0.0
    %2165 = vmatpush1.msra.mxu0 0.0
    %2166 = vmatprep.mubr.f32.mxu0 0.0
    %2167 = vmatmul.mubr.f32.gmra.mrb[0].mxu0 %v2097
    %v2168 = vpop.f32.mrb[0].mxu0
    %v2169 = vadd.f32 0.0, %v2168
    %v2170 = vpop.f32.mrb[0].mxu0
    %2171 = vmatprep.mubr.f32.mxu0 0.0
    %2172 = vmatmul.mubr.f32.gmra.mrb[0].mxu0 %v2100
    %v2173 = vpop.f32.mrb[0].mxu0
    %v2174 = vadd.f32 0.0, %v2173
    %v2175 = vpop.f32.mrb[0].mxu0
    %2176 = vdwg.mxu0
    %2177 = vrot.lane.b32.xlu0 %v1551, 104
    %v2178 = vpop.permute.xlu0 %2177
    %2179 = vrot.lane.b32.xlu0 %v1556, 104
    %v2180 = vpop.permute.xlu0 %2179
    %2181 = vrot.lane.b32.xlu0 %v1551, 72
    %v2182 = vpop.permute.xlu0 %2181
    %2183 = vrot.lane.b32.xlu0 %v1556, 72
    %v2184 = vpop.permute.xlu0 %2183
    %v2185 = vsel %vm219, %v2178, 0
    %v2187 = vsel %vm219, %v2180, 0
    %v2189 = vsel %vm219, %v2182, 0
    %v2191 = vsel %vm219, %v2184, 0
    %2193 = vmatprep.subr.mxu0 0.0
    %2194 = vmatpush1.xpose.msra.mxu0 %v2189
    %2195 = vmatprep.subr.mxu0 0.0
    %2196 = vmatpush1.xpose.msra.mxu0 %v2191
    %2197 = vmatprep.subr.mxu0 0.0
    %2198 = vmatpush1.xpose.msra.mxu0 0.0
    %2199 = vmatprep.subr.mxu0 0.0
    %2200 = vmatpush1.xpose.msra.mxu0 0.0
    %2201 = vmatprep.subr.mxu0 0.0
    %2202 = vmatpush1.xpose.msra.mxu0 0.0
    %2203 = vmatprep.subr.mxu0 0.0
    %2204 = vmatpush1.xpose.msra.mxu0 0.0
    %2205 = vmatprep.subr.mxu0 0.0
    %2206 = vmatpush1.xpose.msra.mxu0 0.0
    %2207 = vmatprep.subr.mxu0 0.0
    %2208 = vmatpush1.xpose.msra.mxu0 0.0
    %2209 = vmatprep.subr.mxu0 0.0
    %2210 = vmatpush1.xpose.msra.mxu0 0.0
    %2211 = vmatprep.subr.mxu0 0.0
    %2212 = vmatpush1.xpose.msra.mxu0 0.0
    %2213 = vmatprep.subr.mxu0 0.0
    %2214 = vmatpush1.xpose.msra.mxu0 0.0
    %2215 = vmatprep.subr.mxu0 0.0
    %2216 = vmatpush1.xpose.msra.mxu0 0.0
    %2217 = vmatprep.subr.mxu0 0.0
    %2218 = vmatpush1.xpose.msra.mxu0 0.0
    %2219 = vmatprep.subr.mxu0 0.0
    %2220 = vmatpush1.xpose.msra.mxu0 0.0
    %2221 = vmatprep.subr.mxu0 0.0
    %2222 = vmatpush1.xpose.msra.mxu0 0.0
    %2223 = vmatprep.subr.mxu0 0.0
    %2224 = vmatpush1.xpose.msra.mxu0 0.0
    %2225 = vmatprep.subr.mxu0 0.0
    %2226 = vmatpush1.xpose.msra.mxu0 0.0
    %2227 = vmatprep.subr.mxu0 0.0
    %2228 = vmatpush1.xpose.msra.mxu0 0.0
    %2229 = vmatprep.subr.mxu0 0.0
    %2230 = vmatpush1.xpose.msra.mxu0 0.0
    %2231 = vmatprep.subr.mxu0 0.0
    %2232 = vmatpush1.xpose.msra.mxu0 0.0
    %2233 = vmatprep.subr.mxu0 0.0
    %2234 = vmatpush1.xpose.msra.mxu0 0.0
    %2235 = vmatprep.subr.mxu0 0.0
    %2236 = vmatpush1.xpose.msra.mxu0 0.0
    %2237 = vmatprep.subr.mxu0 0.0
    %2238 = vmatpush1.xpose.msra.mxu0 0.0
    %2239 = vmatprep.subr.mxu0 0.0
    %2240 = vmatpush1.xpose.msra.mxu0 0.0
    %2241 = vmatprep.subr.mxu0 0.0
    %2242 = vmatpush1.xpose.msra.mxu0 0.0
    %2243 = vmatprep.subr.mxu0 0.0
    %2244 = vmatpush1.xpose.msra.mxu0 0.0
    %2245 = vmatprep.subr.mxu0 0.0
    %2246 = vmatpush1.xpose.msra.mxu0 0.0
    %2247 = vmatprep.subr.mxu0 0.0
    %2248 = vmatpush1.xpose.msra.mxu0 0.0
    %2249 = vmatprep.subr.mxu0 0.0
    %2250 = vmatpush1.xpose.msra.mxu0 0.0
    %2251 = vmatprep.subr.mxu0 0.0
    %2252 = vmatpush1.xpose.msra.mxu0 0.0
    %2253 = vmatprep.subr.mxu0 0.0
    %2254 = vmatpush1.xpose.msra.mxu0 0.0
    %2255 = vmatprep.subr.mxu0 0.0
    %2256 = vmatpush1.xpose.msra.mxu0 0.0
    %2257 = vmatprep.mubr.f32.mxu0 0.0
    %2258 = vmatmul.mubr.f32.gmra.mrb[0].mxu0 %v2185
    %v2259 = vpop.f32.mrb[0].mxu0
    %v2260 = vadd.f32 0.0, %v2259
    %v2261 = vpop.f32.mrb[0].mxu0
    %2262 = vmatprep.mubr.f32.mxu0 0.0
    %2263 = vmatmul.mubr.f32.gmra.mrb[0].mxu0 %v2187
    %v2264 = vpop.f32.mrb[0].mxu0
    %v2265 = vadd.f32 0.0, %v2264
    %v2266 = vpop.f32.mrb[0].mxu0
    %2267 = vdwg.mxu0
    %v2268 = vmul.f32 %v2260, 0.35355338
    %v2269 = vmul.f32 %v2265, 0.35355338
    %v2270 = vadd.f32 %v2268, %v59
    %v2271 = vadd.f32 %v2269, %v60
    %v2272 = vsel %vm307, %v2270, -inf
    %2273 = vmax.xlane.f32.xlu0 %v2272
    %v2274 = vpop.xlane.xlu0 %2273
    %v2275 = vsel %vm307, %v2271, -inf
    %2276 = vmax.xlane.f32.xlu0 %v2275
    %v2277 = vpop.xlane.xlu0 %2276
    %v2278 = vsub.f32 %v2270, %v2274
    %v2279 = vsub.f32 %v2271, %v2277
    %v2280 = vmul.f32 %v2278, 1.442695
    %v2281 = vpow.pop %v2280
    %v2282 = vmul.f32 %v2279, 1.442695
    %v2283 = vpow.pop %v2282
    %v2284 = vsel %vm307, %v2281, 0.0
    %2285 = vadd.xlane.f32.xlu0 %v2284
    %v2286 = vpop.xlane.xlu0 %2285
    %v2287 = vsel %vm307, %v2283, 0.0
    %2288 = vadd.xlane.f32.xlu0 %v2287
    %v2289 = vpop.xlane.xlu0 %2288
    %v2290 = vrcp.pop %v2286
    %v2291 = vrcp.pop %v2289
    %v2292 = vmul.f32 %v2281, %v2290
    %v2293 = vmul.f32 %v2283, %v2291
    %s2294 = scalar_lea.vmem [#allocation4], 48
    %2295 = vst.msk [vmem:[%s2294] sm:$0xff] %vm307, %v2292
    %2296 = vst.msk [vmem:[%s2294 + $0x8] sm:$0xff] %vm307, %v2293
    %2297 = vrot.lane.b32.xlu0 %v1551, 40
    %v2298 = vpop.permute.xlu0 %2297
    %2299 = vrot.lane.b32.xlu0 %v1556, 40
    %v2300 = vpop.permute.xlu0 %2299
    %v2304 = vsel %vm307, %v2292, 0
    %v2307 = vsel %vm307, %v2293, 0
    %2309 = vmatprep.subr.mxu0 0.0
    %2310 = vmatpush1.msra.mxu0 %v2298
    %2311 = vmatprep.subr.mxu0 0.0
    %2312 = vmatpush1.msra.mxu0 %v2300
    %2313 = vmatprep.subr.mxu0 0.0
    %2314 = vmatpush1.msra.mxu0 0.0
    %2315 = vmatprep.subr.mxu0 0.0
    %2316 = vmatpush1.msra.mxu0 0.0
    %2317 = vmatprep.subr.mxu0 0.0
    %2318 = vmatpush1.msra.mxu0 0.0
    %2319 = vmatprep.subr.mxu0 0.0
    %2320 = vmatpush1.msra.mxu0 0.0
    %2321 = vmatprep.subr.mxu0 0.0
    %2322 = vmatpush1.msra.mxu0 0.0
    %2323 = vmatprep.subr.mxu0 0.0
    %2324 = vmatpush1.msra.mxu0 0.0
    %2325 = vmatprep.subr.mxu0 0.0
    %2326 = vmatpush1.msra.mxu0 0.0
    %2327 = vmatprep.subr.mxu0 0.0
    %2328 = vmatpush1.msra.mxu0 0.0
    %2329 = vmatprep.subr.mxu0 0.0
    %2330 = vmatpush1.msra.mxu0 0.0
    %2331 = vmatprep.subr.mxu0 0.0
    %2332 = vmatpush1.msra.mxu0 0.0
    %2333 = vmatprep.subr.mxu0 0.0
    %2334 = vmatpush1.msra.mxu0 0.0
    %2335 = vmatprep.subr.mxu0 0.0
    %2336 = vmatpush1.msra.mxu0 0.0
    %2337 = vmatprep.subr.mxu0 0.0
    %2338 = vmatpush1.msra.mxu0 0.0
    %2339 = vmatprep.subr.mxu0 0.0
    %2340 = vmatpush1.msra.mxu0 0.0
    %2341 = vmatprep.subr.mxu0 0.0
    %2342 = vmatpush1.msra.mxu0 0.0
    %2343 = vmatprep.subr.mxu0 0.0
    %2344 = vmatpush1.msra.mxu0 0.0
    %2345 = vmatprep.subr.mxu0 0.0
    %2346 = vmatpush1.msra.mxu0 0.0
    %2347 = vmatprep.subr.mxu0 0.0
    %2348 = vmatpush1.msra.mxu0 0.0
    %2349 = vmatprep.subr.mxu0 0.0
    %2350 = vmatpush1.msra.mxu0 0.0
    %2351 = vmatprep.subr.mxu0 0.0
    %2352 = vmatpush1.msra.mxu0 0.0
    %2353 = vmatprep.subr.mxu0 0.0
    %2354 = vmatpush1.msra.mxu0 0.0
    %2355 = vmatprep.subr.mxu0 0.0
    %2356 = vmatpush1.msra.mxu0 0.0
    %2357 = vmatprep.subr.mxu0 0.0
    %2358 = vmatpush1.msra.mxu0 0.0
    %2359 = vmatprep.subr.mxu0 0.0
    %2360 = vmatpush1.msra.mxu0 0.0
    %2361 = vmatprep.subr.mxu0 0.0
    %2362 = vmatpush1.msra.mxu0 0.0
    %2363 = vmatprep.subr.mxu0 0.0
    %2364 = vmatpush1.msra.mxu0 0.0
    %2365 = vmatprep.subr.mxu0 0.0
    %2366 = vmatpush1.msra.mxu0 0.0
    %2367 = vmatprep.subr.mxu0 0.0
    %2368 = vmatpush1.msra.mxu0 0.0
    %2369 = vmatprep.subr.mxu0 0.0
    %2370 = vmatpush1.msra.mxu0 0.0
    %2371 = vmatprep.subr.mxu0 0.0
    %2372 = vmatpush1.msra.mxu0 0.0
    %2373 = vmatprep.mubr.f32.mxu0 0.0
    %2374 = vmatmul.mubr.f32.gmra.mrb[0].mxu0 %v2304
    %v2375 = vpop.f32.mrb[0].mxu0
    %v2376 = vadd.f32 0.0, %v2375
    %v2377 = vpop.f32.mrb[0].mxu0
    %2378 = vmatprep.mubr.f32.mxu0 0.0
    %2379 = vmatmul.mubr.f32.gmra.mrb[0].mxu0 %v2307
    %v2380 = vpop.f32.mrb[0].mxu0
    %v2381 = vadd.f32 0.0, %v2380
    %v2382 = vpop.f32.mrb[0].mxu0
    %2383 = vdwg.mxu0
    %2386 = vrot.lane.b32.xlu0 %v1962, 8
    %v2387 = vpop.permute.xlu0 %2386
    %2388 = vrot.lane.b32.xlu0 %v1967, 8
    %v2389 = vpop.permute.xlu0 %2388
    %2394 = vrot.lane.b32.xlu0 %v2169, 16
    %v2395 = vpop.permute.xlu0 %2394
    %2396 = vrot.lane.b32.xlu0 %v2174, 16
    %v2397 = vpop.permute.xlu0 %2396
    %2402 = vrot.lane.b32.xlu0 %v2376, 24
    %v2403 = vpop.permute.xlu0 %2402
    %2404 = vrot.lane.b32.xlu0 %v2381, 24
    %v2405 = vpop.permute.xlu0 %2404
    %v2408 = vsel %vm219, %v1755, %v2387
    %v2409 = vsel %vm219, %v1760, %v2389
    %v2410 = vsel %vm307, %v2408, %v2395
    %v2411 = vsel %vm307, %v2409, %v2397
    %v2412 = vsel %vm1057, %v2410, %v2403
    %v2413 = vsel %vm1057, %v2411, %v2405
    %s2414 = scalar_lea.vmem %s4, 32
    %v2415 = vld [vmem:[%s2414] sm:$0xff]
    %v2416 = vld [vmem:[%s2414 + $0x8] sm:$0xff]
    %v2417 = vld [vmem:[%s2414 + $0x10] sm:$0xff]
    %v2418 = vld [vmem:[%s2414 + $0x18] sm:$0xff]
    %s2419 = scalar_lea.vmem %s5, 1
    %v2420 = vld [vmem:[%s2419] sm:$0x1]
    %v2422 = vlaneseq
    %v2423 = vshrl.u32 %v2422, 7
    %v2424 = vsub.s32 0, %v2423
    %v2425 = vrot.slane %v2420, %v2424
    %v2428 = vsel %vm63, %v2412, 0
    %v2431 = vsel %vm63, %v2413, 0
    %2433 = vmatprep.subr.mxu0 0.0
    %2434 = vmatpush1.msra.mxu0 %v2415
    %2435 = vmatprep.subr.mxu0 0.0
    %2436 = vmatpush1.msra.mxu0 %v2416
    %2437 = vmatprep.subr.mxu0 0.0
    %2438 = vmatpush1.msra.mxu0 %v2417
    %2439 = vmatprep.subr.mxu0 0.0
    %2440 = vmatpush1.msra.mxu0 %v2418
    %2441 = vmatprep.subr.mxu0 0.0
    %2442 = vmatpush1.msra.mxu0 0.0
    %2443 = vmatprep.subr.mxu0 0.0
    %2444 = vmatpush1.msra.mxu0 0.0
    %2445 = vmatprep.subr.mxu0 0.0
    %2446 = vmatpush1.msra.mxu0 0.0
    %2447 = vmatprep.subr.mxu0 0.0
    %2448 = vmatpush1.msra.mxu0 0.0
    %2449 = vmatprep.subr.mxu0 0.0
    %2450 = vmatpush1.msra.mxu0 0.0
    %2451 = vmatprep.subr.mxu0 0.0
    %2452 = vmatpush1.msra.mxu0 0.0
    %2453 = vmatprep.subr.mxu0 0.0
    %2454 = vmatpush1.msra.mxu0 0.0
    %2455 = vmatprep.subr.mxu0 0.0
    %2456 = vmatpush1.msra.mxu0 0.0
    %2457 = vmatprep.subr.mxu0 0.0
    %2458 = vmatpush1.msra.mxu0 0.0
    %2459 = vmatprep.subr.mxu0 0.0
    %2460 = vmatpush1.msra.mxu0 0.0
    %2461 = vmatprep.subr.mxu0 0.0
    %2462 = vmatpush1.msra.mxu0 0.0
    %2463 = vmatprep.subr.mxu0 0.0
    %2464 = vmatpush1.msra.mxu0 0.0
    %2465 = vmatprep.subr.mxu0 0.0
    %2466 = vmatpush1.msra.mxu0 0.0
    %2467 = vmatprep.subr.mxu0 0.0
    %2468 = vmatpush1.msra.mxu0 0.0
    %2469 = vmatprep.subr.mxu0 0.0
    %2470 = vmatpush1.msra.mxu0 0.0
    %2471 = vmatprep.subr.mxu0 0.0
    %2472 = vmatpush1.msra.mxu0 0.0
    %2473 = vmatprep.subr.mxu0 0.0
    %2474 = vmatpush1.msra.mxu0 0.0
    %2475 = vmatprep.subr.mxu0 0.0
    %2476 = vmatpush1.msra.mxu0 0.0
    %2477 = vmatprep.subr.mxu0 0.0
    %2478 = vmatpush1.msra.mxu0 0.0
    %2479 = vmatprep.subr.mxu0 0.0
    %2480 = vmatpush1.msra.mxu0 0.0
    %2481 = vmatprep.subr.mxu0 0.0
    %2482 = vmatpush1.msra.mxu0 0.0
    %2483 = vmatprep.subr.mxu0 0.0
    %2484 = vmatpush1.msra.mxu0 0.0
    %2485 = vmatprep.subr.mxu0 0.0
    %2486 = vmatpush1.msra.mxu0 0.0
    %2487 = vmatprep.subr.mxu0 0.0
    %2488 = vmatpush1.msra.mxu0 0.0
    %2489 = vmatprep.subr.mxu0 0.0
    %2490 = vmatpush1.msra.mxu0 0.0
    %2491 = vmatprep.subr.mxu0 0.0
    %2492 = vmatpush1.msra.mxu0 0.0
    %2493 = vmatprep.subr.mxu0 0.0
    %2494 = vmatpush1.msra.mxu0 0.0
    %2495 = vmatprep.subr.mxu0 0.0
    %2496 = vmatpush1.msra.mxu0 0.0
    %2497 = vmatprep.mubr.f32.mxu0 0.0
    %2498 = vmatmul.mubr.f32.gmra.mrb[0].mxu0 %v2428
    %v2499 = vpop.f32.mrb[0].mxu0
    %v2500 = vadd.f32 %v2425, %v2499
    %v2501 = vpop.f32.mrb[0].mxu0
    %2502 = vmatprep.mubr.f32.mxu0 0.0
    %2503 = vmatmul.mubr.f32.gmra.mrb[0].mxu0 %v2431
    %v2504 = vpop.f32.mrb[0].mxu0
    %v2505 = vadd.f32 %v2425, %v2504
    %v2506 = vpop.f32.mrb[0].mxu0
    %2507 = vdwg.mxu0
    %v2508 = vadd.f32 %v1403, %v2500
    %v2509 = vadd.f32 %v1404, %v2505
    %s2510 = scalar_lea.vmem %s12, 1
    %v2511 = vld [vmem:[%s2510] sm:$0x1]
    %s2512 = scalar_lea.vmem %s13, 1
    %v2513 = vld [vmem:[%s2512] sm:$0x1]
    %v2514 = vsel %vm63, %v2508, 0.0
    %2515 = vadd.xlane.f32.xlu0 %v2514
    %v2516 = vpop.xlane.xlu0 %2515
    %v2517 = vsel %vm63, %v2509, 0.0
    %2518 = vadd.xlane.f32.xlu0 %v2517
    %v2519 = vpop.xlane.xlu0 %2518
    %v2520 = vmul.f32 %v2516, %v70
    %v2521 = vmul.f32 %v2519, %v70
    %v2522 = vsub.f32 %v2508, %v2520
    %v2523 = vsub.f32 %v2509, %v2521
    %v2524 = vmul.f32 %v2522, %v2522
    %v2525 = vmul.f32 %v2523, %v2523
    %v2526 = vsel %vm63, %v2524, 0.0
    %2527 = vadd.xlane.f32.xlu0 %v2526
    %v2528 = vpop.xlane.xlu0 %2527
    %v2529 = vsel %vm63, %v2525, 0.0
    %2530 = vadd.xlane.f32.xlu0 %v2529
    %v2531 = vpop.xlane.xlu0 %2530
    %v2532 = vmul.f32 %v2528, 0.032258064
    %v2533 = vmul.f32 %v2531, 0.032258064
    %v2534 = vrsqrt.pop %v2532
    %v2535 = vmul.f32 %v2532, %v2534
    %vm2536 = vcmp.eq.f32.partialorder %v2532, inf
    %v2537 = vsel %vm2536, %v2532, %v2535
    %vm2538 = vcmp.eq.f32.partialorder %v2532, 0.0
    %v2539 = vand.u32 %v2532, 2147483648
    %v2540 = vsel %vm2538, %v2539, %v2537
    %v2541 = vrsqrt.pop %v2533
    %v2542 = vmul.f32 %v2533, %v2541
    %vm2543 = vcmp.eq.f32.partialorder %v2533, inf
    %v2544 = vsel %vm2543, %v2533, %v2542
    %vm2545 = vcmp.eq.f32.partialorder %v2533, 0.0
    %v2546 = vand.u32 %v2533, 2147483648
    %v2547 = vsel %vm2545, %v2546, %v2544
    %v2549 = vlaneseq
    %v2550 = vshrl.u32 %v2549, 7
    %v2551 = vsub.s32 0, %v2550
    %v2552 = vrot.slane %v2511, %v2551
    %v2554 = vmul.f32 %v2552, %v2522
    %v2555 = vmul.f32 %v2552, %v2523
    %v2556 = vadd.f32 %v2540, 1e-06
    %v2557 = vadd.f32 %v2547, 1e-06
    %v2558 = vrcp.pop %v2556
    %v2559 = vrcp.pop %v2557
    %v2560 = vmul.f32 %v2554, %v2558
    %v2561 = vmul.f32 %v2555, %v2559
    %v2563 = vlaneseq
    %v2564 = vshrl.u32 %v2563, 7
    %v2565 = vsub.s32 0, %v2564
    %v2566 = vrot.slane %v2513, %v2565
    %v2568 = vadd.f32 %v2560, %v2566
    %v2569 = vadd.f32 %v2561, %v2566
    %s2570 = scalar_lea.vmem %s6, 32
    %v2571 = vld [vmem:[%s2570] sm:$0xff]
    %v2572 = vld [vmem:[%s2570 + $0x8] sm:$0xff]
    %v2573 = vld [vmem:[%s2570 + $0x10] sm:$0xff]
    %v2574 = vld [vmem:[%s2570 + $0x18] sm:$0xff]
    %s2575 = scalar_lea.vmem %s7, 1
    %v2576 = vld [vmem:[%s2575] sm:$0x1]
    %v2578 = vlaneseq
    %v2579 = vshrl.u32 %v2578, 7
    %v2580 = vsub.s32 0, %v2579
    %v2581 = vrot.slane %v2576, %v2580
    %v2584 = vsel %vm63, %v2568, 0
    %v2587 = vsel %vm63, %v2569, 0
    %2589 = vmatprep.subr.mxu0 0.0
    %2590 = vmatpush1.msra.mxu0 %v2571
    %2591 = vmatprep.subr.mxu0 0.0
    %2592 = vmatpush1.msra.mxu0 %v2572
    %2593 = vmatprep.subr.mxu0 0.0
    %2594 = vmatpush1.msra.mxu0 %v2573
    %2595 = vmatprep.subr.mxu0 0.0
    %2596 = vmatpush1.msra.mxu0 %v2574
    %2597 = vmatprep.subr.mxu0 0.0
    %2598 = vmatpush1.msra.mxu0 0.0
    %2599 = vmatprep.subr.mxu0 0.0
    %2600 = vmatpush1.msra.mxu0 0.0
    %2601 = vmatprep.subr.mxu0 0.0
    %2602 = vmatpush1.msra.mxu0 0.0
    %2603 = vmatprep.subr.mxu0 0.0
    %2604 = vmatpush1.msra.mxu0 0.0
    %2605 = vmatprep.subr.mxu0 0.0
    %2606 = vmatpush1.msra.mxu0 0.0
    %2607 = vmatprep.subr.mxu0 0.0
    %2608 = vmatpush1.msra.mxu0 0.0
    %2609 = vmatprep.subr.mxu0 0.0
    %2610 = vmatpush1.msra.mxu0 0.0
    %2611 = vmatprep.subr.mxu0 0.0
    %2612 = vmatpush1.msra.mxu0 0.0
    %2613 = vmatprep.subr.mxu0 0.0
    %2614 = vmatpush1.msra.mxu0 0.0
    %2615 = vmatprep.subr.mxu0 0.0
    %2616 = vmatpush1.msra.mxu0 0.0
    %2617 = vmatprep.subr.mxu0 0.0
    %2618 = vmatpush1.msra.mxu0 0.0
    %2619 = vmatprep.subr.mxu0 0.0
    %2620 = vmatpush1.msra.mxu0 0.0
    %2621 = vmatprep.subr.mxu0 0.0
    %2622 = vmatpush1.msra.mxu0 0.0
    %2623 = vmatprep.subr.mxu0 0.0
    %2624 = vmatpush1.msra.mxu0 0.0
    %2625 = vmatprep.subr.mxu0 0.0
    %2626 = vmatpush1.msra.mxu0 0.0
    %2627 = vmatprep.subr.mxu0 0.0
    %2628 = vmatpush1.msra.mxu0 0.0
    %2629 = vmatprep.subr.mxu0 0.0
    %2630 = vmatpush1.msra.mxu0 0.0
    %2631 = vmatprep.subr.mxu0 0.0
    %2632 = vmatpush1.msra.mxu0 0.0
    %2633 = vmatprep.subr.mxu0 0.0
    %2634 = vmatpush1.msra.mxu0 0.0
    %2635 = vmatprep.subr.mxu0 0.0
    %2636 = vmatpush1.msra.mxu0 0.0
    %2637 = vmatprep.subr.mxu0 0.0
    %2638 = vmatpush1.msra.mxu0 0.0
    %2639 = vmatprep.subr.mxu0 0.0
    %2640 = vmatpush1.msra.mxu0 0.0
    %2641 = vmatprep.subr.mxu0 0.0
    %2642 = vmatpush1.msra.mxu0 0.0
    %2643 = vmatprep.subr.mxu0 0.0
    %2644 = vmatpush1.msra.mxu0 0.0
    %2645 = vmatprep.subr.mxu0 0.0
    %2646 = vmatpush1.msra.mxu0 0.0
    %2647 = vmatprep.subr.mxu0 0.0
    %2648 = vmatpush1.msra.mxu0 0.0
    %2649 = vmatprep.subr.mxu0 0.0
    %2650 = vmatpush1.msra.mxu0 0.0
    %2651 = vmatprep.subr.mxu0 0.0
    %2652 = vmatpush1.msra.mxu0 0.0
    %2653 = vmatprep.mubr.f32.mxu0 0.0
    %2654 = vmatmul.mubr.f32.gmra.mrb[0].mxu0 %v2584
    %v2655 = vpop.f32.mrb[0].mxu0
    %v2656 = vadd.f32 %v2581, %v2655
    %v2657 = vpop.f32.mrb[0].mxu0
    %2658 = vmatprep.mubr.f32.mxu0 0.0
    %2659 = vmatmul.mubr.f32.gmra.mrb[0].mxu0 %v2587
    %v2660 = vpop.f32.mrb[0].mxu0
    %v2661 = vadd.f32 %v2581, %v2660
    %v2662 = vpop.f32.mrb[0].mxu0
    %2663 = vdwg.mxu0
    %v2664 = vmax.f32 %v2656, 0.0
    %v2665 = vmax.f32 %v2661, 0.0
    %s2666 = scalar_lea.vmem %s8, 64
    %v2667 = vld [vmem:[%s2666] sm:$0xff]
    %v2668 = vld [vmem:[%s2666 + $0x8] sm:$0xff]
    %v2669 = vld [vmem:[%s2666 + $0x10] sm:$0xff]
    %v2670 = vld [vmem:[%s2666 + $0x18] sm:$0xff]
    %v2671 = vld [vmem:[%s2666 + $0x20] sm:$0xff]
    %v2672 = vld [vmem:[%s2666 + $0x28] sm:$0xff]
    %v2673 = vld [vmem:[%s2666 + $0x30] sm:$0xff]
    %v2674 = vld [vmem:[%s2666 + $0x38] sm:$0xff]
    %s2675 = scalar_lea.vmem %s9, 1
    %v2676 = vld [vmem:[%s2675] sm:$0x1]
    %v2678 = vlaneseq
    %v2679 = vshrl.u32 %v2678, 7
    %v2680 = vsub.s32 0, %v2679
    %v2681 = vrot.slane %v2676, %v2680
    %v2684 = vsel %vm1321, %v2664, 0
    %v2687 = vsel %vm1321, %v2665, 0
    %2689 = vmatprep.subr.mxu0 0.0
    %2690 = vmatpush1.msra.mxu0 %v2667
    %2691 = vmatprep.subr.mxu0 0.0
    %2692 = vmatpush1.msra.mxu0 %v2668
    %2693 = vmatprep.subr.mxu0 0.0
    %2694 = vmatpush1.msra.mxu0 %v2669
    %2695 = vmatprep.subr.mxu0 0.0
    %2696 = vmatpush1.msra.mxu0 %v2670
    %2697 = vmatprep.subr.mxu0 0.0
    %2698 = vmatpush1.msra.mxu0 %v2671
    %2699 = vmatprep.subr.mxu0 0.0
    %2700 = vmatpush1.msra.mxu0 %v2672
    %2701 = vmatprep.subr.mxu0 0.0
    %2702 = vmatpush1.msra.mxu0 %v2673
    %2703 = vmatprep.subr.mxu0 0.0
    %2704 = vmatpush1.msra.mxu0 %v2674
    %2705 = vmatprep.subr.mxu0 0.0
    %2706 = vmatpush1.msra.mxu0 0.0
    %2707 = vmatprep.subr.mxu0 0.0
    %2708 = vmatpush1.msra.mxu0 0.0
    %2709 = vmatprep.subr.mxu0 0.0
    %2710 = vmatpush1.msra.mxu0 0.0
    %2711 = vmatprep.subr.mxu0 0.0
    %2712 = vmatpush1.msra.mxu0 0.0
    %2713 = vmatprep.subr.mxu0 0.0
    %2714 = vmatpush1.msra.mxu0 0.0
    %2715 = vmatprep.subr.mxu0 0.0
    %2716 = vmatpush1.msra.mxu0 0.0
    %2717 = vmatprep.subr.mxu0 0.0
    %2718 = vmatpush1.msra.mxu0 0.0
    %2719 = vmatprep.subr.mxu0 0.0
    %2720 = vmatpush1.msra.mxu0 0.0
    %2721 = vmatprep.subr.mxu0 0.0
    %2722 = vmatpush1.msra.mxu0 0.0
    %2723 = vmatprep.subr.mxu0 0.0
    %2724 = vmatpush1.msra.mxu0 0.0
    %2725 = vmatprep.subr.mxu0 0.0
    %2726 = vmatpush1.msra.mxu0 0.0
    %2727 = vmatprep.subr.mxu0 0.0
    %2728 = vmatpush1.msra.mxu0 0.0
    %2729 = vmatprep.subr.mxu0 0.0
    %2730 = vmatpush1.msra.mxu0 0.0
    %2731 = vmatprep.subr.mxu0 0.0
    %2732 = vmatpush1.msra.mxu0 0.0
    %2733 = vmatprep.subr.mxu0 0.0
    %2734 = vmatpush1.msra.mxu0 0.0
    %2735 = vmatprep.subr.mxu0 0.0
    %2736 = vmatpush1.msra.mxu0 0.0
    %2737 = vmatprep.subr.mxu0 0.0
    %2738 = vmatpush1.msra.mxu0 0.0
    %2739 = vmatprep.subr.mxu0 0.0
    %2740 = vmatpush1.msra.mxu0 0.0
    %2741 = vmatprep.subr.mxu0 0.0
    %2742 = vmatpush1.msra.mxu0 0.0
    %2743 = vmatprep.subr.mxu0 0.0
    %2744 = vmatpush1.msra.mxu0 0.0
    %2745 = vmatprep.subr.mxu0 0.0
    %2746 = vmatpush1.msra.mxu0 0.0
    %2747 = vmatprep.subr.mxu0 0.0
    %2748 = vmatpush1.msra.mxu0 0.0
    %2749 = vmatprep.subr.mxu0 0.0
    %2750 = vmatpush1.msra.mxu0 0.0
    %2751 = vmatprep.subr.mxu0 0.0
    %2752 = vmatpush1.msra.mxu0 0.0
    %2753 = vmatprep.mubr.f32.mxu0 0.0
    %2754 = vmatmul.mubr.f32.gmra.mrb[0].mxu0 %v2684
    %v2755 = vpop.f32.mrb[0].mxu0
    %v2756 = vadd.f32 %v2681, %v2755
    %v2757 = vpop.f32.mrb[0].mxu0
    %2758 = vmatprep.mubr.f32.mxu0 0.0
    %2759 = vmatmul.mubr.f32.gmra.mrb[0].mxu0 %v2687
    %v2760 = vpop.f32.mrb[0].mxu0
    %v2761 = vadd.f32 %v2681, %v2760
    %v2762 = vpop.f32.mrb[0].mxu0
    %2763 = vdwg.mxu0
    %v2764 = vadd.f32 %v2508, %v2756
    %v2765 = vadd.f32 %v2509, %v2761
    %v2766 = vld [vmem:[%s14] sm:$0x1]
    %v2767 = vld [vmem:[%s15] sm:$0x1]
    %v2768 = vsel %vm63, %v2764, 0.0
    %2769 = vadd.xlane.f32.xlu0 %v2768
    %v2770 = vpop.xlane.xlu0 %2769
    %v2771 = vsel %vm63, %v2765, 0.0
    %2772 = vadd.xlane.f32.xlu0 %v2771
    %v2773 = vpop.xlane.xlu0 %2772
    %v2774 = vmul.f32 %v2770, %v70
    %v2775 = vmul.f32 %v2773, %v70
    %v2776 = vsub.f32 %v2764, %v2774
    %v2777 = vsub.f32 %v2765, %v2775
    %v2778 = vmul.f32 %v2776, %v2776
    %v2779 = vmul.f32 %v2777, %v2777
    %v2780 = vsel %vm63, %v2778, 0.0
    %2781 = vadd.xlane.f32.xlu0 %v2780
    %v2782 = vpop.xlane.xlu0 %2781
    %v2783 = vsel %vm63, %v2779, 0.0
    %2784 = vadd.xlane.f32.xlu0 %v2783
    %v2785 = vpop.xlane.xlu0 %2784
    %v2786 = vmul.f32 %v2782, 0.032258064
    %v2787 = vmul.f32 %v2785, 0.032258064
    %v2788 = vrsqrt.pop %v2786
    %v2789 = vmul.f32 %v2786, %v2788
    %vm2790 = vcmp.eq.f32.partialorder %v2786, inf
    %v2791 = vsel %vm2790, %v2786, %v2789
    %vm2792 = vcmp.eq.f32.partialorder %v2786, 0.0
    %v2793 = vand.u32 %v2786, 2147483648
    %v2794 = vsel %vm2792, %v2793, %v2791
    %v2795 = vrsqrt.pop %v2787
    %v2796 = vmul.f32 %v2787, %v2795
    %vm2797 = vcmp.eq.f32.partialorder %v2787, inf
    %v2798 = vsel %vm2797, %v2787, %v2796
    %vm2799 = vcmp.eq.f32.partialorder %v2787, 0.0
    %v2800 = vand.u32 %v2787, 2147483648
    %v2801 = vsel %vm2799, %v2800, %v2798
    %v2803 = vlaneseq
    %v2804 = vshrl.u32 %v2803, 7
    %v2805 = vsub.s32 0, %v2804
    %v2806 = vrot.slane %v2766, %v2805
    %v2808 = vmul.f32 %v2806, %v2776
    %v2809 = vmul.f32 %v2806, %v2777
    %v2810 = vadd.f32 %v2794, 1e-06
    %v2811 = vadd.f32 %v2801, 1e-06
    %v2812 = vrcp.pop %v2810
    %v2813 = vrcp.pop %v2811
    %v2814 = vmul.f32 %v2808, %v2812
    %v2815 = vmul.f32 %v2809, %v2813
    %v2817 = vlaneseq
    %v2818 = vshrl.u32 %v2817, 7
    %v2819 = vsub.s32 0, %v2818
    %v2820 = vrot.slane %v2767, %v2819
    %v2822 = vadd.f32 %v2814, %v2820
    %v2823 = vadd.f32 %v2815, %v2820
    %2824 = vst.msk [vmem:[#allocation2] sm:$0xff] %vm63, %v2822
    %2825 = vst.msk [vmem:[#allocation2 + $0x8] sm:$0xff] %vm63, %v2823
    // Predicated region
    $region66: #{encoder_fused.1} parent=1 // pred_check
      _
    $region67: #{encoder_fused.1} parent=1 // pred_check_branch
      %2827 = sbr.rel (0) target = $region69
    $region68: #{encoder_fused.1} parent=1 // pred_region
      %s2829 = ssub.s32 256, 256
      %2830 = vsyncadd [#allocation3], %s2829
      %s2831 = sshll.u32 [#allocation2], 4
      %s2832 = int_to_ptr.vmem [resolvable:$true] %s2831
      %2837 = dma.vmem_to_hbm [thread:$0]  %s2832, 256, %s16, [#allocation3], 128, 128, 8
    $region69: #{encoder_fused.1} parent=1 // pred_fallthru
      _
    // Predicated region
    $region70: #{encoder_fused.1} parent=1 // pred_check
      _
    $region71: #{encoder_fused.1} parent=1 // pred_check_branch
      %2839 = sbr.rel (0) target = $region73
    $region72: #{encoder_fused.1} parent=1 // pred_region
      %s2841 = ssub.s32 1024, 1024
      %2842 = vsyncadd [#allocation5], %s2841
      %s2843 = sshll.u32 [#allocation4], 4
      %s2844 = int_to_ptr.vmem [resolvable:$true] %s2843
      %2849 = dma.vmem_to_hbm [thread:$0]  %s2844, 1024, %s17, [#allocation5], 128, 128, 8
    $region73: #{encoder_fused.1} parent=1 // pred_fallthru
      _
    // Predicated region
    $region74: #{encoder_fused.1} parent=1 // pred_check
      _
    $region75: #{encoder_fused.1} parent=1 // pred_check_branch
      %2851 = sbr.rel (0) target = $region77
    $region76: #{encoder_fused.1} parent=1 // pred_region
      %2852 = dma.done [#allocation3], 256
    $region77: #{encoder_fused.1} parent=1 // pred_fallthru
      _
    // Predicated region
    $region78: #{encoder_fused.1} parent=1 // pred_check
      _
    $region79: #{encoder_fused.1} parent=1 // pred_check_branch
      %2854 = sbr.rel (0) target = $region81
    $region80: #{encoder_fused.1} parent=1 // pred_region
      %2855 = dma.done [#allocation5], 1024
    $region81: #{encoder_fused.1} parent=1 // pred_fallthru
      _
    %2856 = vsyncpa [#allocation3], 1
    %2857 = vsyncpa [#allocation5], 1

</llo_original>
